<compile_context>
chip_gen: v6e
topology: v6e:2x2x1
jax: 0.10.0
libtpu: 0.0.40
codegen_flags: <defaults>
</compile_context>

<pallas_src>
import jax
import jax.numpy as jnp
import numpy as np
from jax import lax
from jax.experimental import pallas as pl
from jax.experimental.pallas import tpu as pltpu

VOCAB = 50
EMBED = 32
HIDDEN = 24      # n_hiddens (PyTorch)
HID_PAD = 32     # padded hidden so 4*HID_PAD = 128 (one lane tile per gate slab)
LABELS = 7
BATCH = 2
SEQ = 8


def _vmem_spec():
    return pl.BlockSpec(memory_space=pltpu.MemorySpace.VMEM)


# --------------------------- fused forward-pass kernel ---------------------------
def fused_rnn_kernel(tok_ref, emb_ref, wih_ref, whh_f_ref, whh_b_ref,
                     b_gate_ref, w_lin_ref, b_lin_ref,
                     out_ref, seq_f_ref, seq_b_ref):
    # tok_ref     : (T*B, 1) int32 token ids, time-major
    # emb_ref     : (VOCAB, E) frozen embedding table (VMEM resident)
    # wih_ref     : (E, 8*Hp)   [fwd i,f,g,o | bwd i,f,g,o], per-gate padded to Hp
    # whh_f/b_ref : (Hp, 4*Hp)
    # b_gate_ref  : (1, 8*Hp)   (b_ih + b_hh folded, per-gate padded)
    # w_lin_ref   : (2*Hp, LABELS), b_lin_ref : (1, LABELS)
    # out_ref     : (B, LABELS)
    # seq_f/b_ref : VMEM scratch (B, T, Hp) holding the per-timestep hidden sequences
    B, T, Hp = seq_f_ref.shape
    vocab = emb_ref.shape[0]

    # ---- embedding lookup as a one-hot MXU matmul (no XLA gather / HBM hop) ----
    tok = tok_ref[...]                                                    # (T*B, 1)
    onehot = (tok == lax.broadcasted_iota(jnp.int32, (1, vocab), 1)
              ).astype(jnp.float32)                                       # (T*B, VOCAB)
    x = jnp.dot(onehot, emb_ref[...], preferred_element_type=jnp.float32)  # (T*B, E)

    # ---- hoisted input projection: both directions, all timesteps, one matmul ----
    gx = (jnp.dot(x, wih_ref[...], preferred_element_type=jnp.float32)
          + b_gate_ref[...])                                              # (T*B, 8*Hp)

    whh_f = whh_f_ref[...]
    whh_b = whh_b_ref[...]

    def cell(g_x, h, c, whh):
        # PyTorch LSTM gate order [i, f, g, o]; one direction's slab = 128 lanes.
        g = g_x + jnp.dot(h, whh, preferred_element_type=jnp.float32)
        i = jax.nn.sigmoid(g[:, 0 * Hp:1 * Hp])
        f = jax.nn.sigmoid(g[:, 1 * Hp:2 * Hp])
        gg = jnp.tanh(g[:, 2 * Hp:3 * Hp])
        o = jax.nn.sigmoid(g[:, 3 * Hp:4 * Hp])
        c_new = f * c + i * gg
        return o * jnp.tanh(c_new), c_new

    hf = jnp.zeros((B, Hp), jnp.float32)
    cf = jnp.zeros((B, Hp), jnp.float32)
    hb = jnp.zeros((B, Hp), jnp.float32)
    cb = jnp.zeros((B, Hp), jnp.float32)

    # ---- interleaved fwd/bwd recurrence, fully unrolled over the static T ----
    for s in range(T):
        tr = T - 1 - s
        hf, cf = cell(gx[s * B:(s + 1) * B, 0:4 * Hp], hf, cf, whh_f)
        hb, cb = cell(gx[tr * B:(tr + 1) * B, 4 * Hp:8 * Hp], hb, cb, whh_b)
        seq_f_ref[:, s, :] = hf          # hidden sequence stays in VMEM scratch
        seq_b_ref[:, tr, :] = hb

    # ---- attention over time (merged final state vs. sequence) + final linear ----
    seq_f = seq_f_ref[...]                                                # (B, T, Hp)
    seq_b = seq_b_ref[...]
    # scores[b, t] = <lstm_out[b, t, :], merged_state[b, :]>, split fwd/bwd halves
    scores = (jnp.sum(seq_f * hf[:, None, :], axis=-1)
              + jnp.sum(seq_b * hb[:, None, :], axis=-1))                 # (B, T)
    m = jnp.max(scores, axis=-1, keepdims=True)
    e = jnp.exp(scores - m)
    denom = jnp.sum(e, axis=-1, keepdims=True)
    # approx=True would route to the EUP fast-reciprocal path; kept exact so the
    # f32 numeric check below stays tight at these tiny sizes.
    attn_w = e * pl.reciprocal(denom, approx=False)                       # (B, T)
    ctx = jnp.concatenate(
        [jnp.sum(seq_f * attn_w[:, :, None], axis=1),
         jnp.sum(seq_b * attn_w[:, :, None], axis=1)], axis=-1)           # (B, 2*Hp)
    out_ref[...] = (jnp.dot(ctx, w_lin_ref[...],
                            preferred_element_type=jnp.float32)
                    + b_lin_ref[...])


# ----------------------- one-time weight repack (outside kernel) -----------------------
def pack_params(p):
    """Pad H 24->32 per gate block and fuse fwd/bwd input projections into one slab."""
    H, Hp = HIDDEN, HID_PAD

    def pad_gates(w):  # w: (..., 4*H) in [i,f,g,o] order -> (..., 4*Hp)
        blocks = jnp.split(w, 4, axis=1)
        pad = [(0, 0)] * (w.ndim - 1) + [(0, Hp - H)]
        return jnp.concatenate([jnp.pad(b, pad) for b in blocks], axis=1)

    wih = jnp.concatenate([pad_gates(p['wih_f']), pad_gates(p['wih_b'])], axis=1)
    whh_f = jnp.pad(pad_gates(p['whh_f']), ((0, Hp - H), (0, 0)))
    whh_b = jnp.pad(pad_gates(p['whh_b']), ((0, Hp - H), (0, 0)))
    b_gate = jnp.concatenate([pad_gates(p['b_f']), pad_gates(p['b_b'])], axis=1)
    w_lin = jnp.concatenate([jnp.pad(p['w_lin'][:H], ((0, Hp - H), (0, 0))),
                             jnp.pad(p['w_lin'][H:], ((0, Hp - H), (0, 0)))], axis=0)
    return {'embedding': p['embedding'].astype(jnp.float32),
            'wih': wih, 'whh_f': whh_f, 'whh_b': whh_b, 'b_gate': b_gate,
            'w_lin': w_lin, 'b_lin': p['b_lin']}


# ------------------------------------ wrapper ------------------------------------
def rnn_forward(tokens, packed):
    B, T = tokens.shape
    Hp = packed['whh_f'].shape[0]
    tok_tm = jnp.transpose(tokens).reshape(T * B, 1).astype(jnp.int32)  # time-major ids
    return pl.pallas_call(
        fused_rnn_kernel,
        out_shape=jax.ShapeDtypeStruct((B, LABELS), jnp.float32),
        in_specs=[_vmem_spec()] * 8,
        out_specs=_vmem_spec(),
        scratch_shapes=[pltpu.VMEM((B, T, Hp), jnp.float32),
                        pltpu.VMEM((B, T, Hp), jnp.float32)],
    )(tok_tm, packed['embedding'], packed['wih'], packed['whh_f'],
      packed['whh_b'], packed['b_gate'], packed['w_lin'], packed['b_lin'])


# ------------------------------- pure-JAX reference -------------------------------
def _ref_lstm_dir(x, wih, whh, b, reverse):
    T, B, _ = x.shape
    H = whh.shape[0]
    h = jnp.zeros((B, H), jnp.float32)
    c = jnp.zeros((B, H), jnp.float32)
    outs = [None] * T
    order = range(T - 1, -1, -1) if reverse else range(T)
    for t in order:
        gates = x[t] @ wih + h @ whh + b
        i = jax.nn.sigmoid(gates[:, :H])
        f = jax.nn.sigmoid(gates[:, H:2 * H])
        g = jnp.tanh(gates[:, 2 * H:3 * H])
        o = jax.nn.sigmoid(gates[:, 3 * H:])
        c = f * c + i * g
        h = o * jnp.tanh(c)
        outs[t] = h
    return jnp.stack(outs, axis=0), h


def rnn_forward_reference(tokens, params):
    emb = jnp.take(params['embedding'], tokens, axis=0)
    x = jnp.transpose(emb, (1, 0, 2)).astype(jnp.float32)
    out_f, h_f = _ref_lstm_dir(x, params['wih_f'], params['whh_f'], params['b_f'], False)
    out_b, h_b = _ref_lstm_dir(x, params['wih_b'], params['whh_b'], params['b_b'], True)
    lstm_out = jnp.transpose(jnp.concatenate([out_f, out_b], axis=-1), (1, 0, 2))
    merged = jnp.concatenate([h_f, h_b], axis=-1)
    scores = jnp.einsum('btd,bd->bt', lstm_out, merged)
    attn_w = jax.nn.softmax(scores, axis=1)
    attn = jnp.einsum('btd,bt->bd', lstm_out, attn_w)
    return attn @ params['w_lin'] + params['b_lin']


def make_params(key):
    ks = jax.random.split(key, 10)
    H, E = HIDDEN, EMBED
    s = 1.0 / np.sqrt(H)
    return {
        'embedding': jax.random.normal(ks[0], (VOCAB, E), jnp.float32),
        # weights stored transposed relative to PyTorch ((E,4H)/(H,4H)) for x @ W layout
        'wih_f': jax.random.uniform(ks[1], (E, 4 * H), jnp.float32, -s, s),
        'whh_f': jax.random.uniform(ks[2], (H, 4 * H), jnp.float32, -s, s),
        'b_f':   jax.random.uniform(ks[3], (1, 4 * H), jnp.float32, -s, s),  # b_ih + b_hh
        'wih_b': jax.random.uniform(ks[4], (E, 4 * H), jnp.float32, -s, s),
        'whh_b': jax.random.uniform(ks[5], (H, 4 * H), jnp.float32, -s, s),
        'b_b':   jax.random.uniform(ks[6], (1, 4 * H), jnp.float32, -s, s),
        'w_lin': jax.random.uniform(ks[7], (2 * H, LABELS), jnp.float32, -s, s),
        'b_lin': jax.random.uniform(ks[8], (1, LABELS), jnp.float32, -s, s),
    }


if __name__ == "__main__":
    key = jax.random.PRNGKey(0)
    pkey, tkey = jax.random.split(key)
    params = make_params(pkey)
    tokens = jax.random.randint(tkey, (BATCH, SEQ), 0, VOCAB, dtype=jnp.int32)

    packed = pack_params(params)          # one-time repack, not part of the hot path
    logits = jax.block_until_ready(rnn_forward(tokens, packed))
    ref = jax.block_until_ready(rnn_forward_reference(tokens, params))

    # One-hot-matmul embedding + reassociated gate adds introduce only ~1e-6-level
    # f32 deviations; any semantic error would show up at O(0.1).
    np.testing.assert_allclose(np.asarray(logits), np.asarray(ref), rtol=1e-3, atol=1e-5)
    assert logits.shape == (BATCH, LABELS)
    print("KERNEL_OK")
</pallas_src>

<mosaic_0001>
module attributes {stable_mosaic.version = 11 : i64} {
  func.func @fused_rnn_kernel(%arg0: memref<16x1xi32, #tpu.memory_space<vmem>>, %arg1: memref<50x32xf32, #tpu.memory_space<vmem>>, %arg2: memref<32x256xf32, #tpu.memory_space<vmem>>, %arg3: memref<32x128xf32, #tpu.memory_space<vmem>>, %arg4: memref<32x128xf32, #tpu.memory_space<vmem>>, %arg5: memref<1x256xf32, #tpu.memory_space<vmem>>, %arg6: memref<64x7xf32, #tpu.memory_space<vmem>>, %arg7: memref<1x7xf32, #tpu.memory_space<vmem>>, %arg8: memref<2x7xf32, #tpu.memory_space<vmem>>, %arg9: memref<2x8x32xf32, #tpu.memory_space<vmem>>, %arg10: memref<2x8x32xf32, #tpu.memory_space<vmem>>) attributes {dimension_semantics = [], scalar_prefetch = 0 : i64, scratch_operands = 2 : i64, tpu.core_type = #tpu.core_type<tc>} {
    %c0 = arith.constant 0 : index
    %c0_0 = arith.constant 0 : index
    %0 = vector.load %arg0[%c0, %c0_0] : memref<16x1xi32, #tpu.memory_space<vmem>>, vector<16x1xi32>
    %1 = tpu.iota {dimensions = array<i32: 1>} : vector<1x50xi32>
    %2 = vector.broadcast %0 : vector<16x1xi32> to vector<16x50xi32>
    %3 = vector.broadcast %1 : vector<1x50xi32> to vector<16x50xi32>
    %4 = arith.cmpi eq, %2, %3 : vector<16x50xi32>
    %5 = arith.extui %4 : vector<16x50xi1> to vector<16x50xi32>
    %6 = arith.sitofp %5 : vector<16x50xi32> to vector<16x50xf32>
    %c0_1 = arith.constant 0 : index
    %c0_2 = arith.constant 0 : index
    %7 = vector.load %arg1[%c0_1, %c0_2] : memref<50x32xf32, #tpu.memory_space<vmem>>, vector<50x32xf32>
    %cst = arith.constant dense<0.000000e+00> : vector<16x32xf32>
    %8 = tpu.matmul %6, %7, %cst {dimension_numbers = #tpu.dot_dimension_numbers<[1], [0], [0], [1], [0, 0, 1, 1], [], []>} : vector<16x50xf32>, vector<50x32xf32>, vector<16x32xf32> -> vector<16x32xf32>
    %c0_3 = arith.constant 0 : index
    %c0_4 = arith.constant 0 : index
    %9 = vector.load %arg2[%c0_3, %c0_4] : memref<32x256xf32, #tpu.memory_space<vmem>>, vector<32x256xf32>
    %cst_5 = arith.constant dense<0.000000e+00> : vector<16x256xf32>
    %10 = tpu.matmul %8, %9, %cst_5 {dimension_numbers = #tpu.dot_dimension_numbers<[1], [0], [0], [1], [0, 0, 1, 1], [], []>} : vector<16x32xf32>, vector<32x256xf32>, vector<16x256xf32> -> vector<16x256xf32>
    %c0_6 = arith.constant 0 : index
    %c0_7 = arith.constant 0 : index
    %11 = vector.load %arg5[%c0_6, %c0_7] : memref<1x256xf32, #tpu.memory_space<vmem>>, vector<1x256xf32>
    %12 = vector.broadcast %11 : vector<1x256xf32> to vector<16x256xf32>
    %13 = arith.addf %10, %12 : vector<16x256xf32>
    %c0_8 = arith.constant 0 : index
    %c0_9 = arith.constant 0 : index
    %14 = vector.load %arg3[%c0_8, %c0_9] : memref<32x128xf32, #tpu.memory_space<vmem>>, vector<32x128xf32>
    %c0_10 = arith.constant 0 : index
    %c0_11 = arith.constant 0 : index
    %15 = vector.load %arg4[%c0_10, %c0_11] : memref<32x128xf32, #tpu.memory_space<vmem>>, vector<32x128xf32>
    %cst_12 = arith.constant 0.000000e+00 : f32
    %16 = vector.broadcast %cst_12 : f32 to vector<2x32xf32>
    %cst_13 = arith.constant 0.000000e+00 : f32
    %17 = vector.broadcast %cst_13 : f32 to vector<2x32xf32>
    %cst_14 = arith.constant 0.000000e+00 : f32
    %18 = vector.broadcast %cst_14 : f32 to vector<2x32xf32>
    %cst_15 = arith.constant 0.000000e+00 : f32
    %19 = vector.broadcast %cst_15 : f32 to vector<2x32xf32>
    %20 = vector.extract_strided_slice %13 {offsets = [0, 0], sizes = [2, 128], strides = [1, 1]} : vector<16x256xf32> to vector<2x128xf32>
    %cst_16 = arith.constant dense<0.000000e+00> : vector<2x128xf32>
    %21 = tpu.matmul %16, %14, %cst_16 {dimension_numbers = #tpu.dot_dimension_numbers<[1], [0], [0], [1], [0, 0, 1, 1], [], []>} : vector<2x32xf32>, vector<32x128xf32>, vector<2x128xf32> -> vector<2x128xf32>
    %22 = arith.addf %20, %21 : vector<2x128xf32>
    %23 = vector.extract_strided_slice %22 {offsets = [0, 0], sizes = [2, 32], strides = [1, 1]} : vector<2x128xf32> to vector<2x32xf32>
    %24 = arith.negf %23 : vector<2x32xf32>
    %25 = math.exp %24 : vector<2x32xf32>
    %cst_17 = arith.constant 1.000000e+00 : f32
    %26 = vector.broadcast %cst_17 : f32 to vector<2x32xf32>
    %27 = arith.addf %26, %25 : vector<2x32xf32>
    %28 = arith.divf %26, %27 : vector<2x32xf32>
    %29 = vector.extract_strided_slice %22 {offsets = [0, 32], sizes = [2, 32], strides = [1, 1]} : vector<2x128xf32> to vector<2x32xf32>
    %30 = arith.negf %29 : vector<2x32xf32>
    %31 = math.exp %30 : vector<2x32xf32>
    %cst_18 = arith.constant 1.000000e+00 : f32
    %32 = vector.broadcast %cst_18 : f32 to vector<2x32xf32>
    %33 = arith.addf %32, %31 : vector<2x32xf32>
    %34 = arith.divf %32, %33 : vector<2x32xf32>
    %35 = vector.extract_strided_slice %22 {offsets = [0, 64], sizes = [2, 32], strides = [1, 1]} : vector<2x128xf32> to vector<2x32xf32>
    %36 = math.tanh %35 : vector<2x32xf32>
    %37 = vector.extract_strided_slice %22 {offsets = [0, 96], sizes = [2, 32], strides = [1, 1]} : vector<2x128xf32> to vector<2x32xf32>
    %38 = arith.negf %37 : vector<2x32xf32>
    %39 = math.exp %38 : vector<2x32xf32>
    %cst_19 = arith.constant 1.000000e+00 : f32
    %40 = vector.broadcast %cst_19 : f32 to vector<2x32xf32>
    %41 = arith.addf %40, %39 : vector<2x32xf32>
    %42 = arith.divf %40, %41 : vector<2x32xf32>
    %43 = arith.mulf %34, %17 : vector<2x32xf32>
    %44 = arith.mulf %28, %36 : vector<2x32xf32>
    %45 = arith.addf %43, %44 : vector<2x32xf32>
    %46 = math.tanh %45 : vector<2x32xf32>
    %47 = arith.mulf %42, %46 : vector<2x32xf32>
    %48 = vector.extract_strided_slice %13 {offsets = [14, 128], sizes = [2, 128], strides = [1, 1]} : vector<16x256xf32> to vector<2x128xf32>
    %cst_20 = arith.constant dense<0.000000e+00> : vector<2x128xf32>
    %49 = tpu.matmul %18, %15, %cst_20 {dimension_numbers = #tpu.dot_dimension_numbers<[1], [0], [0], [1], [0, 0, 1, 1], [], []>} : vector<2x32xf32>, vector<32x128xf32>, vector<2x128xf32> -> vector<2x128xf32>
    %50 = arith.addf %48, %49 : vector<2x128xf32>
    %51 = vector.extract_strided_slice %50 {offsets = [0, 0], sizes = [2, 32], strides = [1, 1]} : vector<2x128xf32> to vector<2x32xf32>
    %52 = arith.negf %51 : vector<2x32xf32>
    %53 = math.exp %52 : vector<2x32xf32>
    %cst_21 = arith.constant 1.000000e+00 : f32
    %54 = vector.broadcast %cst_21 : f32 to vector<2x32xf32>
    %55 = arith.addf %54, %53 : vector<2x32xf32>
    %56 = arith.divf %54, %55 : vector<2x32xf32>
    %57 = vector.extract_strided_slice %50 {offsets = [0, 32], sizes = [2, 32], strides = [1, 1]} : vector<2x128xf32> to vector<2x32xf32>
    %58 = arith.negf %57 : vector<2x32xf32>
    %59 = math.exp %58 : vector<2x32xf32>
    %cst_22 = arith.constant 1.000000e+00 : f32
    %60 = vector.broadcast %cst_22 : f32 to vector<2x32xf32>
    %61 = arith.addf %60, %59 : vector<2x32xf32>
    %62 = arith.divf %60, %61 : vector<2x32xf32>
    %63 = vector.extract_strided_slice %50 {offsets = [0, 64], sizes = [2, 32], strides = [1, 1]} : vector<2x128xf32> to vector<2x32xf32>
    %64 = math.tanh %63 : vector<2x32xf32>
    %65 = vector.extract_strided_slice %50 {offsets = [0, 96], sizes = [2, 32], strides = [1, 1]} : vector<2x128xf32> to vector<2x32xf32>
    %66 = arith.negf %65 : vector<2x32xf32>
    %67 = math.exp %66 : vector<2x32xf32>
    %cst_23 = arith.constant 1.000000e+00 : f32
    %68 = vector.broadcast %cst_23 : f32 to vector<2x32xf32>
    %69 = arith.addf %68, %67 : vector<2x32xf32>
    %70 = arith.divf %68, %69 : vector<2x32xf32>
    %71 = arith.mulf %62, %19 : vector<2x32xf32>
    %72 = arith.mulf %56, %64 : vector<2x32xf32>
    %73 = arith.addf %71, %72 : vector<2x32xf32>
    %74 = math.tanh %73 : vector<2x32xf32>
    %75 = arith.mulf %70, %74 : vector<2x32xf32>
    %c0_24 = arith.constant 0 : index
    %c0_25 = arith.constant 0 : index
    %c0_26 = arith.constant 0 : index
    %76 = vector.load %arg9[%c0_24, %c0_25, %c0_26] : memref<2x8x32xf32, #tpu.memory_space<vmem>>, vector<2x1x32xf32>
    %77 = vector.shape_cast %76 : vector<2x1x32xf32> to vector<2x32xf32>
    %78 = vector.shape_cast %47 : vector<2x32xf32> to vector<2x1x32xf32>
    tpu.vector_store %arg9[%c0_24, %c0_25, %c0_26], %78 {strides = array<i32>} : memref<2x8x32xf32, #tpu.memory_space<vmem>>, vector<2x1x32xf32>,
    %c0_27 = arith.constant 0 : index
    %c7 = arith.constant 7 : index
    %c0_28 = arith.constant 0 : index
    %79 = vector.load %arg10[%c0_27, %c7, %c0_28] : memref<2x8x32xf32, #tpu.memory_space<vmem>>, vector<2x1x32xf32>
    %80 = vector.shape_cast %79 : vector<2x1x32xf32> to vector<2x32xf32>
    %81 = vector.shape_cast %75 : vector<2x32xf32> to vector<2x1x32xf32>
    tpu.vector_store %arg10[%c0_27, %c7, %c0_28], %81 {strides = array<i32>} : memref<2x8x32xf32, #tpu.memory_space<vmem>>, vector<2x1x32xf32>,
    %82 = vector.extract_strided_slice %13 {offsets = [2, 0], sizes = [2, 128], strides = [1, 1]} : vector<16x256xf32> to vector<2x128xf32>
    %cst_29 = arith.constant dense<0.000000e+00> : vector<2x128xf32>
    %83 = tpu.matmul %47, %14, %cst_29 {dimension_numbers = #tpu.dot_dimension_numbers<[1], [0], [0], [1], [0, 0, 1, 1], [], []>} : vector<2x32xf32>, vector<32x128xf32>, vector<2x128xf32> -> vector<2x128xf32>
    %84 = arith.addf %82, %83 : vector<2x128xf32>
    %85 = vector.extract_strided_slice %84 {offsets = [0, 0], sizes = [2, 32], strides = [1, 1]} : vector<2x128xf32> to vector<2x32xf32>
    %86 = arith.negf %85 : vector<2x32xf32>
    %87 = math.exp %86 : vector<2x32xf32>
    %cst_30 = arith.constant 1.000000e+00 : f32
    %88 = vector.broadcast %cst_30 : f32 to vector<2x32xf32>
    %89 = arith.addf %88, %87 : vector<2x32xf32>
    %90 = arith.divf %88, %89 : vector<2x32xf32>
    %91 = vector.extract_strided_slice %84 {offsets = [0, 32], sizes = [2, 32], strides = [1, 1]} : vector<2x128xf32> to vector<2x32xf32>
    %92 = arith.negf %91 : vector<2x32xf32>
    %93 = math.exp %92 : vector<2x32xf32>
    %cst_31 = arith.constant 1.000000e+00 : f32
    %94 = vector.broadcast %cst_31 : f32 to vector<2x32xf32>
    %95 = arith.addf %94, %93 : vector<2x32xf32>
    %96 = arith.divf %94, %95 : vector<2x32xf32>
    %97 = vector.extract_strided_slice %84 {offsets = [0, 64], sizes = [2, 32], strides = [1, 1]} : vector<2x128xf32> to vector<2x32xf32>
    %98 = math.tanh %97 : vector<2x32xf32>
    %99 = vector.extract_strided_slice %84 {offsets = [0, 96], sizes = [2, 32], strides = [1, 1]} : vector<2x128xf32> to vector<2x32xf32>
    %100 = arith.negf %99 : vector<2x32xf32>
    %101 = math.exp %100 : vector<2x32xf32>
    %cst_32 = arith.constant 1.000000e+00 : f32
    %102 = vector.broadcast %cst_32 : f32 to vector<2x32xf32>
    %103 = arith.addf %102, %101 : vector<2x32xf32>
    %104 = arith.divf %102, %103 : vector<2x32xf32>
    %105 = arith.mulf %96, %45 : vector<2x32xf32>
    %106 = arith.mulf %90, %98 : vector<2x32xf32>
    %107 = arith.addf %105, %106 : vector<2x32xf32>
    %108 = math.tanh %107 : vector<2x32xf32>
    %109 = arith.mulf %104, %108 : vector<2x32xf32>
    %110 = vector.extract_strided_slice %13 {offsets = [12, 128], sizes = [2, 128], strides = [1, 1]} : vector<16x256xf32> to vector<2x128xf32>
    %cst_33 = arith.constant dense<0.000000e+00> : vector<2x128xf32>
    %111 = tpu.matmul %75, %15, %cst_33 {dimension_numbers = #tpu.dot_dimension_numbers<[1], [0], [0], [1], [0, 0, 1, 1], [], []>} : vector<2x32xf32>, vector<32x128xf32>, vector<2x128xf32> -> vector<2x128xf32>
    %112 = arith.addf %110, %111 : vector<2x128xf32>
    %113 = vector.extract_strided_slice %112 {offsets = [0, 0], sizes = [2, 32], strides = [1, 1]} : vector<2x128xf32> to vector<2x32xf32>
    %114 = arith.negf %113 : vector<2x32xf32>
    %115 = math.exp %114 : vector<2x32xf32>
    %cst_34 = arith.constant 1.000000e+00 : f32
    %116 = vector.broadcast %cst_34 : f32 to vector<2x32xf32>
    %117 = arith.addf %116, %115 : vector<2x32xf32>
    %118 = arith.divf %116, %117 : vector<2x32xf32>
    %119 = vector.extract_strided_slice %112 {offsets = [0, 32], sizes = [2, 32], strides = [1, 1]} : vector<2x128xf32> to vector<2x32xf32>
    %120 = arith.negf %119 : vector<2x32xf32>
    %121 = math.exp %120 : vector<2x32xf32>
    %cst_35 = arith.constant 1.000000e+00 : f32
    %122 = vector.broadcast %cst_35 : f32 to vector<2x32xf32>
    %123 = arith.addf %122, %121 : vector<2x32xf32>
    %124 = arith.divf %122, %123 : vector<2x32xf32>
    %125 = vector.extract_strided_slice %112 {offsets = [0, 64], sizes = [2, 32], strides = [1, 1]} : vector<2x128xf32> to vector<2x32xf32>
    %126 = math.tanh %125 : vector<2x32xf32>
    %127 = vector.extract_strided_slice %112 {offsets = [0, 96], sizes = [2, 32], strides = [1, 1]} : vector<2x128xf32> to vector<2x32xf32>
    %128 = arith.negf %127 : vector<2x32xf32>
    %129 = math.exp %128 : vector<2x32xf32>
    %cst_36 = arith.constant 1.000000e+00 : f32
    %130 = vector.broadcast %cst_36 : f32 to vector<2x32xf32>
    %131 = arith.addf %130, %129 : vector<2x32xf32>
    %132 = arith.divf %130, %131 : vector<2x32xf32>
    %133 = arith.mulf %124, %73 : vector<2x32xf32>
    %134 = arith.mulf %118, %126 : vector<2x32xf32>
    %135 = arith.addf %133, %134 : vector<2x32xf32>
    %136 = math.tanh %135 : vector<2x32xf32>
    %137 = arith.mulf %132, %136 : vector<2x32xf32>
    %c0_37 = arith.constant 0 : index
    %c1 = arith.constant 1 : index
    %c0_38 = arith.constant 0 : index
    %138 = vector.load %arg9[%c0_37, %c1, %c0_38] : memref<2x8x32xf32, #tpu.memory_space<vmem>>, vector<2x1x32xf32>
    %139 = vector.shape_cast %138 : vector<2x1x32xf32> to vector<2x32xf32>
    %140 = vector.shape_cast %109 : vector<2x32xf32> to vector<2x1x32xf32>
    tpu.vector_store %arg9[%c0_37, %c1, %c0_38], %140 {strides = array<i32>} : memref<2x8x32xf32, #tpu.memory_space<vmem>>, vector<2x1x32xf32>,
    %c0_39 = arith.constant 0 : index
    %c6 = arith.constant 6 : index
    %c0_40 = arith.constant 0 : index
    %141 = vector.load %arg10[%c0_39, %c6, %c0_40] : memref<2x8x32xf32, #tpu.memory_space<vmem>>, vector<2x1x32xf32>
    %142 = vector.shape_cast %141 : vector<2x1x32xf32> to vector<2x32xf32>
    %143 = vector.shape_cast %137 : vector<2x32xf32> to vector<2x1x32xf32>
    tpu.vector_store %arg10[%c0_39, %c6, %c0_40], %143 {strides = array<i32>} : memref<2x8x32xf32, #tpu.memory_space<vmem>>, vector<2x1x32xf32>,
    %144 = vector.extract_strided_slice %13 {offsets = [4, 0], sizes = [2, 128], strides = [1, 1]} : vector<16x256xf32> to vector<2x128xf32>
    %cst_41 = arith.constant dense<0.000000e+00> : vector<2x128xf32>
    %145 = tpu.matmul %109, %14, %cst_41 {dimension_numbers = #tpu.dot_dimension_numbers<[1], [0], [0], [1], [0, 0, 1, 1], [], []>} : vector<2x32xf32>, vector<32x128xf32>, vector<2x128xf32> -> vector<2x128xf32>
    %146 = arith.addf %144, %145 : vector<2x128xf32>
    %147 = vector.extract_strided_slice %146 {offsets = [0, 0], sizes = [2, 32], strides = [1, 1]} : vector<2x128xf32> to vector<2x32xf32>
    %148 = arith.negf %147 : vector<2x32xf32>
    %149 = math.exp %148 : vector<2x32xf32>
    %cst_42 = arith.constant 1.000000e+00 : f32
    %150 = vector.broadcast %cst_42 : f32 to vector<2x32xf32>
    %151 = arith.addf %150, %149 : vector<2x32xf32>
    %152 = arith.divf %150, %151 : vector<2x32xf32>
    %153 = vector.extract_strided_slice %146 {offsets = [0, 32], sizes = [2, 32], strides = [1, 1]} : vector<2x128xf32> to vector<2x32xf32>
    %154 = arith.negf %153 : vector<2x32xf32>
    %155 = math.exp %154 : vector<2x32xf32>
    %cst_43 = arith.constant 1.000000e+00 : f32
    %156 = vector.broadcast %cst_43 : f32 to vector<2x32xf32>
    %157 = arith.addf %156, %155 : vector<2x32xf32>
    %158 = arith.divf %156, %157 : vector<2x32xf32>
    %159 = vector.extract_strided_slice %146 {offsets = [0, 64], sizes = [2, 32], strides = [1, 1]} : vector<2x128xf32> to vector<2x32xf32>
    %160 = math.tanh %159 : vector<2x32xf32>
    %161 = vector.extract_strided_slice %146 {offsets = [0, 96], sizes = [2, 32], strides = [1, 1]} : vector<2x128xf32> to vector<2x32xf32>
    %162 = arith.negf %161 : vector<2x32xf32>
    %163 = math.exp %162 : vector<2x32xf32>
    %cst_44 = arith.constant 1.000000e+00 : f32
    %164 = vector.broadcast %cst_44 : f32 to vector<2x32xf32>
    %165 = arith.addf %164, %163 : vector<2x32xf32>
    %166 = arith.divf %164, %165 : vector<2x32xf32>
    %167 = arith.mulf %158, %107 : vector<2x32xf32>
    %168 = arith.mulf %152, %160 : vector<2x32xf32>
    %169 = arith.addf %167, %168 : vector<2x32xf32>
    %170 = math.tanh %169 : vector<2x32xf32>
    %171 = arith.mulf %166, %170 : vector<2x32xf32>
    %172 = vector.extract_strided_slice %13 {offsets = [10, 128], sizes = [2, 128], strides = [1, 1]} : vector<16x256xf32> to vector<2x128xf32>
    %cst_45 = arith.constant dense<0.000000e+00> : vector<2x128xf32>
    %173 = tpu.matmul %137, %15, %cst_45 {dimension_numbers = #tpu.dot_dimension_numbers<[1], [0], [0], [1], [0, 0, 1, 1], [], []>} : vector<2x32xf32>, vector<32x128xf32>, vector<2x128xf32> -> vector<2x128xf32>
    %174 = arith.addf %172, %173 : vector<2x128xf32>
    %175 = vector.extract_strided_slice %174 {offsets = [0, 0], sizes = [2, 32], strides = [1, 1]} : vector<2x128xf32> to vector<2x32xf32>
    %176 = arith.negf %175 : vector<2x32xf32>
    %177 = math.exp %176 : vector<2x32xf32>
    %cst_46 = arith.constant 1.000000e+00 : f32
    %178 = vector.broadcast %cst_46 : f32 to vector<2x32xf32>
    %179 = arith.addf %178, %177 : vector<2x32xf32>
    %180 = arith.divf %178, %179 : vector<2x32xf32>
    %181 = vector.extract_strided_slice %174 {offsets = [0, 32], sizes = [2, 32], strides = [1, 1]} : vector<2x128xf32> to vector<2x32xf32>
    %182 = arith.negf %181 : vector<2x32xf32>
    %183 = math.exp %182 : vector<2x32xf32>
    %cst_47 = arith.constant 1.000000e+00 : f32
    %184 = vector.broadcast %cst_47 : f32 to vector<2x32xf32>
    %185 = arith.addf %184, %183 : vector<2x32xf32>
    %186 = arith.divf %184, %185 : vector<2x32xf32>
    %187 = vector.extract_strided_slice %174 {offsets = [0, 64], sizes = [2, 32], strides = [1, 1]} : vector<2x128xf32> to vector<2x32xf32>
    %188 = math.tanh %187 : vector<2x32xf32>
    %189 = vector.extract_strided_slice %174 {offsets = [0, 96], sizes = [2, 32], strides = [1, 1]} : vector<2x128xf32> to vector<2x32xf32>
    %190 = arith.negf %189 : vector<2x32xf32>
    %191 = math.exp %190 : vector<2x32xf32>
    %cst_48 = arith.constant 1.000000e+00 : f32
    %192 = vector.broadcast %cst_48 : f32 to vector<2x32xf32>
    %193 = arith.addf %192, %191 : vector<2x32xf32>
    %194 = arith.divf %192, %193 : vector<2x32xf32>
    %195 = arith.mulf %186, %135 : vector<2x32xf32>
    %196 = arith.mulf %180, %188 : vector<2x32xf32>
    %197 = arith.addf %195, %196 : vector<2x32xf32>
    %198 = math.tanh %197 : vector<2x32xf32>
    %199 = arith.mulf %194, %198 : vector<2x32xf32>
    %c0_49 = arith.constant 0 : index
    %c2 = arith.constant 2 : index
    %c0_50 = arith.constant 0 : index
    %200 = vector.load %arg9[%c0_49, %c2, %c0_50] : memref<2x8x32xf32, #tpu.memory_space<vmem>>, vector<2x1x32xf32>
    %201 = vector.shape_cast %200 : vector<2x1x32xf32> to vector<2x32xf32>
    %202 = vector.shape_cast %171 : vector<2x32xf32> to vector<2x1x32xf32>
    tpu.vector_store %arg9[%c0_49, %c2, %c0_50], %202 {strides = array<i32>} : memref<2x8x32xf32, #tpu.memory_space<vmem>>, vector<2x1x32xf32>,
    %c0_51 = arith.constant 0 : index
    %c5 = arith.constant 5 : index
    %c0_52 = arith.constant 0 : index
    %203 = vector.load %arg10[%c0_51, %c5, %c0_52] : memref<2x8x32xf32, #tpu.memory_space<vmem>>, vector<2x1x32xf32>
    %204 = vector.shape_cast %203 : vector<2x1x32xf32> to vector<2x32xf32>
    %205 = vector.shape_cast %199 : vector<2x32xf32> to vector<2x1x32xf32>
    tpu.vector_store %arg10[%c0_51, %c5, %c0_52], %205 {strides = array<i32>} : memref<2x8x32xf32, #tpu.memory_space<vmem>>, vector<2x1x32xf32>,
    %206 = vector.extract_strided_slice %13 {offsets = [6, 0], sizes = [2, 128], strides = [1, 1]} : vector<16x256xf32> to vector<2x128xf32>
    %cst_53 = arith.constant dense<0.000000e+00> : vector<2x128xf32>
    %207 = tpu.matmul %171, %14, %cst_53 {dimension_numbers = #tpu.dot_dimension_numbers<[1], [0], [0], [1], [0, 0, 1, 1], [], []>} : vector<2x32xf32>, vector<32x128xf32>, vector<2x128xf32> -> vector<2x128xf32>
    %208 = arith.addf %206, %207 : vector<2x128xf32>
    %209 = vector.extract_strided_slice %208 {offsets = [0, 0], sizes = [2, 32], strides = [1, 1]} : vector<2x128xf32> to vector<2x32xf32>
    %210 = arith.negf %209 : vector<2x32xf32>
    %211 = math.exp %210 : vector<2x32xf32>
    %cst_54 = arith.constant 1.000000e+00 : f32
    %212 = vector.broadcast %cst_54 : f32 to vector<2x32xf32>
    %213 = arith.addf %212, %211 : vector<2x32xf32>
    %214 = arith.divf %212, %213 : vector<2x32xf32>
    %215 = vector.extract_strided_slice %208 {offsets = [0, 32], sizes = [2, 32], strides = [1, 1]} : vector<2x128xf32> to vector<2x32xf32>
    %216 = arith.negf %215 : vector<2x32xf32>
    %217 = math.exp %216 : vector<2x32xf32>
    %cst_55 = arith.constant 1.000000e+00 : f32
    %218 = vector.broadcast %cst_55 : f32 to vector<2x32xf32>
    %219 = arith.addf %218, %217 : vector<2x32xf32>
    %220 = arith.divf %218, %219 : vector<2x32xf32>
    %221 = vector.extract_strided_slice %208 {offsets = [0, 64], sizes = [2, 32], strides = [1, 1]} : vector<2x128xf32> to vector<2x32xf32>
    %222 = math.tanh %221 : vector<2x32xf32>
    %223 = vector.extract_strided_slice %208 {offsets = [0, 96], sizes = [2, 32], strides = [1, 1]} : vector<2x128xf32> to vector<2x32xf32>
    %224 = arith.negf %223 : vector<2x32xf32>
    %225 = math.exp %224 : vector<2x32xf32>
    %cst_56 = arith.constant 1.000000e+00 : f32
    %226 = vector.broadcast %cst_56 : f32 to vector<2x32xf32>
    %227 = arith.addf %226, %225 : vector<2x32xf32>
    %228 = arith.divf %226, %227 : vector<2x32xf32>
    %229 = arith.mulf %220, %169 : vector<2x32xf32>
    %230 = arith.mulf %214, %222 : vector<2x32xf32>
    %231 = arith.addf %229, %230 : vector<2x32xf32>
    %232 = math.tanh %231 : vector<2x32xf32>
    %233 = arith.mulf %228, %232 : vector<2x32xf32>
    %234 = vector.extract_strided_slice %13 {offsets = [8, 128], sizes = [2, 128], strides = [1, 1]} : vector<16x256xf32> to vector<2x128xf32>
    %cst_57 = arith.constant dense<0.000000e+00> : vector<2x128xf32>
    %235 = tpu.matmul %199, %15, %cst_57 {dimension_numbers = #tpu.dot_dimension_numbers<[1], [0], [0], [1], [0, 0, 1, 1], [], []>} : vector<2x32xf32>, vector<32x128xf32>, vector<2x128xf32> -> vector<2x128xf32>
    %236 = arith.addf %234, %235 : vector<2x128xf32>
    %237 = vector.extract_strided_slice %236 {offsets = [0, 0], sizes = [2, 32], strides = [1, 1]} : vector<2x128xf32> to vector<2x32xf32>
    %238 = arith.negf %237 : vector<2x32xf32>
    %239 = math.exp %238 : vector<2x32xf32>
    %cst_58 = arith.constant 1.000000e+00 : f32
    %240 = vector.broadcast %cst_58 : f32 to vector<2x32xf32>
    %241 = arith.addf %240, %239 : vector<2x32xf32>
    %242 = arith.divf %240, %241 : vector<2x32xf32>
    %243 = vector.extract_strided_slice %236 {offsets = [0, 32], sizes = [2, 32], strides = [1, 1]} : vector<2x128xf32> to vector<2x32xf32>
    %244 = arith.negf %243 : vector<2x32xf32>
    %245 = math.exp %244 : vector<2x32xf32>
    %cst_59 = arith.constant 1.000000e+00 : f32
    %246 = vector.broadcast %cst_59 : f32 to vector<2x32xf32>
    %247 = arith.addf %246, %245 : vector<2x32xf32>
    %248 = arith.divf %246, %247 : vector<2x32xf32>
    %249 = vector.extract_strided_slice %236 {offsets = [0, 64], sizes = [2, 32], strides = [1, 1]} : vector<2x128xf32> to vector<2x32xf32>
    %250 = math.tanh %249 : vector<2x32xf32>
    %251 = vector.extract_strided_slice %236 {offsets = [0, 96], sizes = [2, 32], strides = [1, 1]} : vector<2x128xf32> to vector<2x32xf32>
    %252 = arith.negf %251 : vector<2x32xf32>
    %253 = math.exp %252 : vector<2x32xf32>
    %cst_60 = arith.constant 1.000000e+00 : f32
    %254 = vector.broadcast %cst_60 : f32 to vector<2x32xf32>
    %255 = arith.addf %254, %253 : vector<2x32xf32>
    %256 = arith.divf %254, %255 : vector<2x32xf32>
    %257 = arith.mulf %248, %197 : vector<2x32xf32>
    %258 = arith.mulf %242, %250 : vector<2x32xf32>
    %259 = arith.addf %257, %258 : vector<2x32xf32>
    %260 = math.tanh %259 : vector<2x32xf32>
    %261 = arith.mulf %256, %260 : vector<2x32xf32>
    %c0_61 = arith.constant 0 : index
    %c3 = arith.constant 3 : index
    %c0_62 = arith.constant 0 : index
    %262 = vector.load %arg9[%c0_61, %c3, %c0_62] : memref<2x8x32xf32, #tpu.memory_space<vmem>>, vector<2x1x32xf32>
    %263 = vector.shape_cast %262 : vector<2x1x32xf32> to vector<2x32xf32>
    %264 = vector.shape_cast %233 : vector<2x32xf32> to vector<2x1x32xf32>
    tpu.vector_store %arg9[%c0_61, %c3, %c0_62], %264 {strides = array<i32>} : memref<2x8x32xf32, #tpu.memory_space<vmem>>, vector<2x1x32xf32>,
    %c0_63 = arith.constant 0 : index
    %c4 = arith.constant 4 : index
    %c0_64 = arith.constant 0 : index
    %265 = vector.load %arg10[%c0_63, %c4, %c0_64] : memref<2x8x32xf32, #tpu.memory_space<vmem>>, vector<2x1x32xf32>
    %266 = vector.shape_cast %265 : vector<2x1x32xf32> to vector<2x32xf32>
    %267 = vector.shape_cast %261 : vector<2x32xf32> to vector<2x1x32xf32>
    tpu.vector_store %arg10[%c0_63, %c4, %c0_64], %267 {strides = array<i32>} : memref<2x8x32xf32, #tpu.memory_space<vmem>>, vector<2x1x32xf32>,
    %268 = vector.extract_strided_slice %13 {offsets = [8, 0], sizes = [2, 128], strides = [1, 1]} : vector<16x256xf32> to vector<2x128xf32>
    %cst_65 = arith.constant dense<0.000000e+00> : vector<2x128xf32>
    %269 = tpu.matmul %233, %14, %cst_65 {dimension_numbers = #tpu.dot_dimension_numbers<[1], [0], [0], [1], [0, 0, 1, 1], [], []>} : vector<2x32xf32>, vector<32x128xf32>, vector<2x128xf32> -> vector<2x128xf32>
    %270 = arith.addf %268, %269 : vector<2x128xf32>
    %271 = vector.extract_strided_slice %270 {offsets = [0, 0], sizes = [2, 32], strides = [1, 1]} : vector<2x128xf32> to vector<2x32xf32>
    %272 = arith.negf %271 : vector<2x32xf32>
    %273 = math.exp %272 : vector<2x32xf32>
    %cst_66 = arith.constant 1.000000e+00 : f32
    %274 = vector.broadcast %cst_66 : f32 to vector<2x32xf32>
    %275 = arith.addf %274, %273 : vector<2x32xf32>
    %276 = arith.divf %274, %275 : vector<2x32xf32>
    %277 = vector.extract_strided_slice %270 {offsets = [0, 32], sizes = [2, 32], strides = [1, 1]} : vector<2x128xf32> to vector<2x32xf32>
    %278 = arith.negf %277 : vector<2x32xf32>
    %279 = math.exp %278 : vector<2x32xf32>
    %cst_67 = arith.constant 1.000000e+00 : f32
    %280 = vector.broadcast %cst_67 : f32 to vector<2x32xf32>
    %281 = arith.addf %280, %279 : vector<2x32xf32>
    %282 = arith.divf %280, %281 : vector<2x32xf32>
    %283 = vector.extract_strided_slice %270 {offsets = [0, 64], sizes = [2, 32], strides = [1, 1]} : vector<2x128xf32> to vector<2x32xf32>
    %284 = math.tanh %283 : vector<2x32xf32>
    %285 = vector.extract_strided_slice %270 {offsets = [0, 96], sizes = [2, 32], strides = [1, 1]} : vector<2x128xf32> to vector<2x32xf32>
    %286 = arith.negf %285 : vector<2x32xf32>
    %287 = math.exp %286 : vector<2x32xf32>
    %cst_68 = arith.constant 1.000000e+00 : f32
    %288 = vector.broadcast %cst_68 : f32 to vector<2x32xf32>
    %289 = arith.addf %288, %287 : vector<2x32xf32>
    %290 = arith.divf %288, %289 : vector<2x32xf32>
    %291 = arith.mulf %282, %231 : vector<2x32xf32>
    %292 = arith.mulf %276, %284 : vector<2x32xf32>
    %293 = arith.addf %291, %292 : vector<2x32xf32>
    %294 = math.tanh %293 : vector<2x32xf32>
    %295 = arith.mulf %290, %294 : vector<2x32xf32>
    %296 = vector.extract_strided_slice %13 {offsets = [6, 128], sizes = [2, 128], strides = [1, 1]} : vector<16x256xf32> to vector<2x128xf32>
    %cst_69 = arith.constant dense<0.000000e+00> : vector<2x128xf32>
    %297 = tpu.matmul %261, %15, %cst_69 {dimension_numbers = #tpu.dot_dimension_numbers<[1], [0], [0], [1], [0, 0, 1, 1], [], []>} : vector<2x32xf32>, vector<32x128xf32>, vector<2x128xf32> -> vector<2x128xf32>
    %298 = arith.addf %296, %297 : vector<2x128xf32>
    %299 = vector.extract_strided_slice %298 {offsets = [0, 0], sizes = [2, 32], strides = [1, 1]} : vector<2x128xf32> to vector<2x32xf32>
    %300 = arith.negf %299 : vector<2x32xf32>
    %301 = math.exp %300 : vector<2x32xf32>
    %cst_70 = arith.constant 1.000000e+00 : f32
    %302 = vector.broadcast %cst_70 : f32 to vector<2x32xf32>
    %303 = arith.addf %302, %301 : vector<2x32xf32>
    %304 = arith.divf %302, %303 : vector<2x32xf32>
    %305 = vector.extract_strided_slice %298 {offsets = [0, 32], sizes = [2, 32], strides = [1, 1]} : vector<2x128xf32> to vector<2x32xf32>
    %306 = arith.negf %305 : vector<2x32xf32>
    %307 = math.exp %306 : vector<2x32xf32>
    %cst_71 = arith.constant 1.000000e+00 : f32
    %308 = vector.broadcast %cst_71 : f32 to vector<2x32xf32>
    %309 = arith.addf %308, %307 : vector<2x32xf32>
    %310 = arith.divf %308, %309 : vector<2x32xf32>
    %311 = vector.extract_strided_slice %298 {offsets = [0, 64], sizes = [2, 32], strides = [1, 1]} : vector<2x128xf32> to vector<2x32xf32>
    %312 = math.tanh %311 : vector<2x32xf32>
    %313 = vector.extract_strided_slice %298 {offsets = [0, 96], sizes = [2, 32], strides = [1, 1]} : vector<2x128xf32> to vector<2x32xf32>
    %314 = arith.negf %313 : vector<2x32xf32>
    %315 = math.exp %314 : vector<2x32xf32>
    %cst_72 = arith.constant 1.000000e+00 : f32
    %316 = vector.broadcast %cst_72 : f32 to vector<2x32xf32>
    %317 = arith.addf %316, %315 : vector<2x32xf32>
    %318 = arith.divf %316, %317 : vector<2x32xf32>
    %319 = arith.mulf %310, %259 : vector<2x32xf32>
    %320 = arith.mulf %304, %312 : vector<2x32xf32>
    %321 = arith.addf %319, %320 : vector<2x32xf32>
    %322 = math.tanh %321 : vector<2x32xf32>
    %323 = arith.mulf %318, %322 : vector<2x32xf32>
    %c0_73 = arith.constant 0 : index
    %c4_74 = arith.constant 4 : index
    %c0_75 = arith.constant 0 : index
    %324 = vector.load %arg9[%c0_73, %c4_74, %c0_75] : memref<2x8x32xf32, #tpu.memory_space<vmem>>, vector<2x1x32xf32>
    %325 = vector.shape_cast %324 : vector<2x1x32xf32> to vector<2x32xf32>
    %326 = vector.shape_cast %295 : vector<2x32xf32> to vector<2x1x32xf32>
    tpu.vector_store %arg9[%c0_73, %c4_74, %c0_75], %326 {strides = array<i32>} : memref<2x8x32xf32, #tpu.memory_space<vmem>>, vector<2x1x32xf32>,
    %c0_76 = arith.constant 0 : index
    %c3_77 = arith.constant 3 : index
    %c0_78 = arith.constant 0 : index
    %327 = vector.load %arg10[%c0_76, %c3_77, %c0_78] : memref<2x8x32xf32, #tpu.memory_space<vmem>>, vector<2x1x32xf32>
    %328 = vector.shape_cast %327 : vector<2x1x32xf32> to vector<2x32xf32>
    %329 = vector.shape_cast %323 : vector<2x32xf32> to vector<2x1x32xf32>
    tpu.vector_store %arg10[%c0_76, %c3_77, %c0_78], %329 {strides = array<i32>} : memref<2x8x32xf32, #tpu.memory_space<vmem>>, vector<2x1x32xf32>,
    %330 = vector.extract_strided_slice %13 {offsets = [10, 0], sizes = [2, 128], strides = [1, 1]} : vector<16x256xf32> to vector<2x128xf32>
    %cst_79 = arith.constant dense<0.000000e+00> : vector<2x128xf32>
    %331 = tpu.matmul %295, %14, %cst_79 {dimension_numbers = #tpu.dot_dimension_numbers<[1], [0], [0], [1], [0, 0, 1, 1], [], []>} : vector<2x32xf32>, vector<32x128xf32>, vector<2x128xf32> -> vector<2x128xf32>
    %332 = arith.addf %330, %331 : vector<2x128xf32>
    %333 = vector.extract_strided_slice %332 {offsets = [0, 0], sizes = [2, 32], strides = [1, 1]} : vector<2x128xf32> to vector<2x32xf32>
    %334 = arith.negf %333 : vector<2x32xf32>
    %335 = math.exp %334 : vector<2x32xf32>
    %cst_80 = arith.constant 1.000000e+00 : f32
    %336 = vector.broadcast %cst_80 : f32 to vector<2x32xf32>
    %337 = arith.addf %336, %335 : vector<2x32xf32>
    %338 = arith.divf %336, %337 : vector<2x32xf32>
    %339 = vector.extract_strided_slice %332 {offsets = [0, 32], sizes = [2, 32], strides = [1, 1]} : vector<2x128xf32> to vector<2x32xf32>
    %340 = arith.negf %339 : vector<2x32xf32>
    %341 = math.exp %340 : vector<2x32xf32>
    %cst_81 = arith.constant 1.000000e+00 : f32
    %342 = vector.broadcast %cst_81 : f32 to vector<2x32xf32>
    %343 = arith.addf %342, %341 : vector<2x32xf32>
    %344 = arith.divf %342, %343 : vector<2x32xf32>
    %345 = vector.extract_strided_slice %332 {offsets = [0, 64], sizes = [2, 32], strides = [1, 1]} : vector<2x128xf32> to vector<2x32xf32>
    %346 = math.tanh %345 : vector<2x32xf32>
    %347 = vector.extract_strided_slice %332 {offsets = [0, 96], sizes = [2, 32], strides = [1, 1]} : vector<2x128xf32> to vector<2x32xf32>
    %348 = arith.negf %347 : vector<2x32xf32>
    %349 = math.exp %348 : vector<2x32xf32>
    %cst_82 = arith.constant 1.000000e+00 : f32
    %350 = vector.broadcast %cst_82 : f32 to vector<2x32xf32>
    %351 = arith.addf %350, %349 : vector<2x32xf32>
    %352 = arith.divf %350, %351 : vector<2x32xf32>
    %353 = arith.mulf %344, %293 : vector<2x32xf32>
    %354 = arith.mulf %338, %346 : vector<2x32xf32>
    %355 = arith.addf %353, %354 : vector<2x32xf32>
    %356 = math.tanh %355 : vector<2x32xf32>
    %357 = arith.mulf %352, %356 : vector<2x32xf32>
    %358 = vector.extract_strided_slice %13 {offsets = [4, 128], sizes = [2, 128], strides = [1, 1]} : vector<16x256xf32> to vector<2x128xf32>
    %cst_83 = arith.constant dense<0.000000e+00> : vector<2x128xf32>
    %359 = tpu.matmul %323, %15, %cst_83 {dimension_numbers = #tpu.dot_dimension_numbers<[1], [0], [0], [1], [0, 0, 1, 1], [], []>} : vector<2x32xf32>, vector<32x128xf32>, vector<2x128xf32> -> vector<2x128xf32>
    %360 = arith.addf %358, %359 : vector<2x128xf32>
    %361 = vector.extract_strided_slice %360 {offsets = [0, 0], sizes = [2, 32], strides = [1, 1]} : vector<2x128xf32> to vector<2x32xf32>
    %362 = arith.negf %361 : vector<2x32xf32>
    %363 = math.exp %362 : vector<2x32xf32>
    %cst_84 = arith.constant 1.000000e+00 : f32
    %364 = vector.broadcast %cst_84 : f32 to vector<2x32xf32>
    %365 = arith.addf %364, %363 : vector<2x32xf32>
    %366 = arith.divf %364, %365 : vector<2x32xf32>
    %367 = vector.extract_strided_slice %360 {offsets = [0, 32], sizes = [2, 32], strides = [1, 1]} : vector<2x128xf32> to vector<2x32xf32>
    %368 = arith.negf %367 : vector<2x32xf32>
    %369 = math.exp %368 : vector<2x32xf32>
    %cst_85 = arith.constant 1.000000e+00 : f32
    %370 = vector.broadcast %cst_85 : f32 to vector<2x32xf32>
    %371 = arith.addf %370, %369 : vector<2x32xf32>
    %372 = arith.divf %370, %371 : vector<2x32xf32>
    %373 = vector.extract_strided_slice %360 {offsets = [0, 64], sizes = [2, 32], strides = [1, 1]} : vector<2x128xf32> to vector<2x32xf32>
    %374 = math.tanh %373 : vector<2x32xf32>
    %375 = vector.extract_strided_slice %360 {offsets = [0, 96], sizes = [2, 32], strides = [1, 1]} : vector<2x128xf32> to vector<2x32xf32>
    %376 = arith.negf %375 : vector<2x32xf32>
    %377 = math.exp %376 : vector<2x32xf32>
    %cst_86 = arith.constant 1.000000e+00 : f32
    %378 = vector.broadcast %cst_86 : f32 to vector<2x32xf32>
    %379 = arith.addf %378, %377 : vector<2x32xf32>
    %380 = arith.divf %378, %379 : vector<2x32xf32>
    %381 = arith.mulf %372, %321 : vector<2x32xf32>
    %382 = arith.mulf %366, %374 : vector<2x32xf32>
    %383 = arith.addf %381, %382 : vector<2x32xf32>
    %384 = math.tanh %383 : vector<2x32xf32>
    %385 = arith.mulf %380, %384 : vector<2x32xf32>
    %c0_87 = arith.constant 0 : index
    %c5_88 = arith.constant 5 : index
    %c0_89 = arith.constant 0 : index
    %386 = vector.load %arg9[%c0_87, %c5_88, %c0_89] : memref<2x8x32xf32, #tpu.memory_space<vmem>>, vector<2x1x32xf32>
    %387 = vector.shape_cast %386 : vector<2x1x32xf32> to vector<2x32xf32>
    %388 = vector.shape_cast %357 : vector<2x32xf32> to vector<2x1x32xf32>
    tpu.vector_store %arg9[%c0_87, %c5_88, %c0_89], %388 {strides = array<i32>} : memref<2x8x32xf32, #tpu.memory_space<vmem>>, vector<2x1x32xf32>,
    %c0_90 = arith.constant 0 : index
    %c2_91 = arith.constant 2 : index
    %c0_92 = arith.constant 0 : index
    %389 = vector.load %arg10[%c0_90, %c2_91, %c0_92] : memref<2x8x32xf32, #tpu.memory_space<vmem>>, vector<2x1x32xf32>
    %390 = vector.shape_cast %389 : vector<2x1x32xf32> to vector<2x32xf32>
    %391 = vector.shape_cast %385 : vector<2x32xf32> to vector<2x1x32xf32>
    tpu.vector_store %arg10[%c0_90, %c2_91, %c0_92], %391 {strides = array<i32>} : memref<2x8x32xf32, #tpu.memory_space<vmem>>, vector<2x1x32xf32>,
    %392 = vector.extract_strided_slice %13 {offsets = [12, 0], sizes = [2, 128], strides = [1, 1]} : vector<16x256xf32> to vector<2x128xf32>
    %cst_93 = arith.constant dense<0.000000e+00> : vector<2x128xf32>
    %393 = tpu.matmul %357, %14, %cst_93 {dimension_numbers = #tpu.dot_dimension_numbers<[1], [0], [0], [1], [0, 0, 1, 1], [], []>} : vector<2x32xf32>, vector<32x128xf32>, vector<2x128xf32> -> vector<2x128xf32>
    %394 = arith.addf %392, %393 : vector<2x128xf32>
    %395 = vector.extract_strided_slice %394 {offsets = [0, 0], sizes = [2, 32], strides = [1, 1]} : vector<2x128xf32> to vector<2x32xf32>
    %396 = arith.negf %395 : vector<2x32xf32>
    %397 = math.exp %396 : vector<2x32xf32>
    %cst_94 = arith.constant 1.000000e+00 : f32
    %398 = vector.broadcast %cst_94 : f32 to vector<2x32xf32>
    %399 = arith.addf %398, %397 : vector<2x32xf32>
    %400 = arith.divf %398, %399 : vector<2x32xf32>
    %401 = vector.extract_strided_slice %394 {offsets = [0, 32], sizes = [2, 32], strides = [1, 1]} : vector<2x128xf32> to vector<2x32xf32>
    %402 = arith.negf %401 : vector<2x32xf32>
    %403 = math.exp %402 : vector<2x32xf32>
    %cst_95 = arith.constant 1.000000e+00 : f32
    %404 = vector.broadcast %cst_95 : f32 to vector<2x32xf32>
    %405 = arith.addf %404, %403 : vector<2x32xf32>
    %406 = arith.divf %404, %405 : vector<2x32xf32>
    %407 = vector.extract_strided_slice %394 {offsets = [0, 64], sizes = [2, 32], strides = [1, 1]} : vector<2x128xf32> to vector<2x32xf32>
    %408 = math.tanh %407 : vector<2x32xf32>
    %409 = vector.extract_strided_slice %394 {offsets = [0, 96], sizes = [2, 32], strides = [1, 1]} : vector<2x128xf32> to vector<2x32xf32>
    %410 = arith.negf %409 : vector<2x32xf32>
    %411 = math.exp %410 : vector<2x32xf32>
    %cst_96 = arith.constant 1.000000e+00 : f32
    %412 = vector.broadcast %cst_96 : f32 to vector<2x32xf32>
    %413 = arith.addf %412, %411 : vector<2x32xf32>
    %414 = arith.divf %412, %413 : vector<2x32xf32>
    %415 = arith.mulf %406, %355 : vector<2x32xf32>
    %416 = arith.mulf %400, %408 : vector<2x32xf32>
    %417 = arith.addf %415, %416 : vector<2x32xf32>
    %418 = math.tanh %417 : vector<2x32xf32>
    %419 = arith.mulf %414, %418 : vector<2x32xf32>
    %420 = vector.extract_strided_slice %13 {offsets = [2, 128], sizes = [2, 128], strides = [1, 1]} : vector<16x256xf32> to vector<2x128xf32>
    %cst_97 = arith.constant dense<0.000000e+00> : vector<2x128xf32>
    %421 = tpu.matmul %385, %15, %cst_97 {dimension_numbers = #tpu.dot_dimension_numbers<[1], [0], [0], [1], [0, 0, 1, 1], [], []>} : vector<2x32xf32>, vector<32x128xf32>, vector<2x128xf32> -> vector<2x128xf32>
    %422 = arith.addf %420, %421 : vector<2x128xf32>
    %423 = vector.extract_strided_slice %422 {offsets = [0, 0], sizes = [2, 32], strides = [1, 1]} : vector<2x128xf32> to vector<2x32xf32>
    %424 = arith.negf %423 : vector<2x32xf32>
    %425 = math.exp %424 : vector<2x32xf32>
    %cst_98 = arith.constant 1.000000e+00 : f32
    %426 = vector.broadcast %cst_98 : f32 to vector<2x32xf32>
    %427 = arith.addf %426, %425 : vector<2x32xf32>
    %428 = arith.divf %426, %427 : vector<2x32xf32>
    %429 = vector.extract_strided_slice %422 {offsets = [0, 32], sizes = [2, 32], strides = [1, 1]} : vector<2x128xf32> to vector<2x32xf32>
    %430 = arith.negf %429 : vector<2x32xf32>
    %431 = math.exp %430 : vector<2x32xf32>
    %cst_99 = arith.constant 1.000000e+00 : f32
    %432 = vector.broadcast %cst_99 : f32 to vector<2x32xf32>
    %433 = arith.addf %432, %431 : vector<2x32xf32>
    %434 = arith.divf %432, %433 : vector<2x32xf32>
    %435 = vector.extract_strided_slice %422 {offsets = [0, 64], sizes = [2, 32], strides = [1, 1]} : vector<2x128xf32> to vector<2x32xf32>
    %436 = math.tanh %435 : vector<2x32xf32>
    %437 = vector.extract_strided_slice %422 {offsets = [0, 96], sizes = [2, 32], strides = [1, 1]} : vector<2x128xf32> to vector<2x32xf32>
    %438 = arith.negf %437 : vector<2x32xf32>
    %439 = math.exp %438 : vector<2x32xf32>
    %cst_100 = arith.constant 1.000000e+00 : f32
    %440 = vector.broadcast %cst_100 : f32 to vector<2x32xf32>
    %441 = arith.addf %440, %439 : vector<2x32xf32>
    %442 = arith.divf %440, %441 : vector<2x32xf32>
    %443 = arith.mulf %434, %383 : vector<2x32xf32>
    %444 = arith.mulf %428, %436 : vector<2x32xf32>
    %445 = arith.addf %443, %444 : vector<2x32xf32>
    %446 = math.tanh %445 : vector<2x32xf32>
    %447 = arith.mulf %442, %446 : vector<2x32xf32>
    %c0_101 = arith.constant 0 : index
    %c6_102 = arith.constant 6 : index
    %c0_103 = arith.constant 0 : index
    %448 = vector.load %arg9[%c0_101, %c6_102, %c0_103] : memref<2x8x32xf32, #tpu.memory_space<vmem>>, vector<2x1x32xf32>
    %449 = vector.shape_cast %448 : vector<2x1x32xf32> to vector<2x32xf32>
    %450 = vector.shape_cast %419 : vector<2x32xf32> to vector<2x1x32xf32>
    tpu.vector_store %arg9[%c0_101, %c6_102, %c0_103], %450 {strides = array<i32>} : memref<2x8x32xf32, #tpu.memory_space<vmem>>, vector<2x1x32xf32>,
    %c0_104 = arith.constant 0 : index
    %c1_105 = arith.constant 1 : index
    %c0_106 = arith.constant 0 : index
    %451 = vector.load %arg10[%c0_104, %c1_105, %c0_106] : memref<2x8x32xf32, #tpu.memory_space<vmem>>, vector<2x1x32xf32>
    %452 = vector.shape_cast %451 : vector<2x1x32xf32> to vector<2x32xf32>
    %453 = vector.shape_cast %447 : vector<2x32xf32> to vector<2x1x32xf32>
    tpu.vector_store %arg10[%c0_104, %c1_105, %c0_106], %453 {strides = array<i32>} : memref<2x8x32xf32, #tpu.memory_space<vmem>>, vector<2x1x32xf32>,
    %454 = vector.extract_strided_slice %13 {offsets = [14, 0], sizes = [2, 128], strides = [1, 1]} : vector<16x256xf32> to vector<2x128xf32>
    %cst_107 = arith.constant dense<0.000000e+00> : vector<2x128xf32>
    %455 = tpu.matmul %419, %14, %cst_107 {dimension_numbers = #tpu.dot_dimension_numbers<[1], [0], [0], [1], [0, 0, 1, 1], [], []>} : vector<2x32xf32>, vector<32x128xf32>, vector<2x128xf32> -> vector<2x128xf32>
    %456 = arith.addf %454, %455 : vector<2x128xf32>
    %457 = vector.extract_strided_slice %456 {offsets = [0, 0], sizes = [2, 32], strides = [1, 1]} : vector<2x128xf32> to vector<2x32xf32>
    %458 = arith.negf %457 : vector<2x32xf32>
    %459 = math.exp %458 : vector<2x32xf32>
    %cst_108 = arith.constant 1.000000e+00 : f32
    %460 = vector.broadcast %cst_108 : f32 to vector<2x32xf32>
    %461 = arith.addf %460, %459 : vector<2x32xf32>
    %462 = arith.divf %460, %461 : vector<2x32xf32>
    %463 = vector.extract_strided_slice %456 {offsets = [0, 32], sizes = [2, 32], strides = [1, 1]} : vector<2x128xf32> to vector<2x32xf32>
    %464 = arith.negf %463 : vector<2x32xf32>
    %465 = math.exp %464 : vector<2x32xf32>
    %cst_109 = arith.constant 1.000000e+00 : f32
    %466 = vector.broadcast %cst_109 : f32 to vector<2x32xf32>
    %467 = arith.addf %466, %465 : vector<2x32xf32>
    %468 = arith.divf %466, %467 : vector<2x32xf32>
    %469 = vector.extract_strided_slice %456 {offsets = [0, 64], sizes = [2, 32], strides = [1, 1]} : vector<2x128xf32> to vector<2x32xf32>
    %470 = math.tanh %469 : vector<2x32xf32>
    %471 = vector.extract_strided_slice %456 {offsets = [0, 96], sizes = [2, 32], strides = [1, 1]} : vector<2x128xf32> to vector<2x32xf32>
    %472 = arith.negf %471 : vector<2x32xf32>
    %473 = math.exp %472 : vector<2x32xf32>
    %cst_110 = arith.constant 1.000000e+00 : f32
    %474 = vector.broadcast %cst_110 : f32 to vector<2x32xf32>
    %475 = arith.addf %474, %473 : vector<2x32xf32>
    %476 = arith.divf %474, %475 : vector<2x32xf32>
    %477 = arith.mulf %468, %417 : vector<2x32xf32>
    %478 = arith.mulf %462, %470 : vector<2x32xf32>
    %479 = arith.addf %477, %478 : vector<2x32xf32>
    %480 = math.tanh %479 : vector<2x32xf32>
    %481 = arith.mulf %476, %480 : vector<2x32xf32>
    %482 = vector.extract_strided_slice %13 {offsets = [0, 128], sizes = [2, 128], strides = [1, 1]} : vector<16x256xf32> to vector<2x128xf32>
    %cst_111 = arith.constant dense<0.000000e+00> : vector<2x128xf32>
    %483 = tpu.matmul %447, %15, %cst_111 {dimension_numbers = #tpu.dot_dimension_numbers<[1], [0], [0], [1], [0, 0, 1, 1], [], []>} : vector<2x32xf32>, vector<32x128xf32>, vector<2x128xf32> -> vector<2x128xf32>
    %484 = arith.addf %482, %483 : vector<2x128xf32>
    %485 = vector.extract_strided_slice %484 {offsets = [0, 0], sizes = [2, 32], strides = [1, 1]} : vector<2x128xf32> to vector<2x32xf32>
    %486 = arith.negf %485 : vector<2x32xf32>
    %487 = math.exp %486 : vector<2x32xf32>
    %cst_112 = arith.constant 1.000000e+00 : f32
    %488 = vector.broadcast %cst_112 : f32 to vector<2x32xf32>
    %489 = arith.addf %488, %487 : vector<2x32xf32>
    %490 = arith.divf %488, %489 : vector<2x32xf32>
    %491 = vector.extract_strided_slice %484 {offsets = [0, 32], sizes = [2, 32], strides = [1, 1]} : vector<2x128xf32> to vector<2x32xf32>
    %492 = arith.negf %491 : vector<2x32xf32>
    %493 = math.exp %492 : vector<2x32xf32>
    %cst_113 = arith.constant 1.000000e+00 : f32
    %494 = vector.broadcast %cst_113 : f32 to vector<2x32xf32>
    %495 = arith.addf %494, %493 : vector<2x32xf32>
    %496 = arith.divf %494, %495 : vector<2x32xf32>
    %497 = vector.extract_strided_slice %484 {offsets = [0, 64], sizes = [2, 32], strides = [1, 1]} : vector<2x128xf32> to vector<2x32xf32>
    %498 = math.tanh %497 : vector<2x32xf32>
    %499 = vector.extract_strided_slice %484 {offsets = [0, 96], sizes = [2, 32], strides = [1, 1]} : vector<2x128xf32> to vector<2x32xf32>
    %500 = arith.negf %499 : vector<2x32xf32>
    %501 = math.exp %500 : vector<2x32xf32>
    %cst_114 = arith.constant 1.000000e+00 : f32
    %502 = vector.broadcast %cst_114 : f32 to vector<2x32xf32>
    %503 = arith.addf %502, %501 : vector<2x32xf32>
    %504 = arith.divf %502, %503 : vector<2x32xf32>
    %505 = arith.mulf %496, %445 : vector<2x32xf32>
    %506 = arith.mulf %490, %498 : vector<2x32xf32>
    %507 = arith.addf %505, %506 : vector<2x32xf32>
    %508 = math.tanh %507 : vector<2x32xf32>
    %509 = arith.mulf %504, %508 : vector<2x32xf32>
    %c0_115 = arith.constant 0 : index
    %c7_116 = arith.constant 7 : index
    %c0_117 = arith.constant 0 : index
    %510 = vector.load %arg9[%c0_115, %c7_116, %c0_117] : memref<2x8x32xf32, #tpu.memory_space<vmem>>, vector<2x1x32xf32>
    %511 = vector.shape_cast %510 : vector<2x1x32xf32> to vector<2x32xf32>
    %512 = vector.shape_cast %481 : vector<2x32xf32> to vector<2x1x32xf32>
    tpu.vector_store %arg9[%c0_115, %c7_116, %c0_117], %512 {strides = array<i32>} : memref<2x8x32xf32, #tpu.memory_space<vmem>>, vector<2x1x32xf32>,
    %c0_118 = arith.constant 0 : index
    %c0_119 = arith.constant 0 : index
    %c0_120 = arith.constant 0 : index
    %513 = vector.load %arg10[%c0_118, %c0_119, %c0_120] : memref<2x8x32xf32, #tpu.memory_space<vmem>>, vector<2x1x32xf32>
    %514 = vector.shape_cast %513 : vector<2x1x32xf32> to vector<2x32xf32>
    %515 = vector.shape_cast %509 : vector<2x32xf32> to vector<2x1x32xf32>
    tpu.vector_store %arg10[%c0_118, %c0_119, %c0_120], %515 {strides = array<i32>} : memref<2x8x32xf32, #tpu.memory_space<vmem>>, vector<2x1x32xf32>,
    %c0_121 = arith.constant 0 : index
    %c0_122 = arith.constant 0 : index
    %c0_123 = arith.constant 0 : index
    %516 = vector.load %arg9[%c0_121, %c0_122, %c0_123] : memref<2x8x32xf32, #tpu.memory_space<vmem>>, vector<2x8x32xf32>
    %c0_124 = arith.constant 0 : index
    %c0_125 = arith.constant 0 : index
    %c0_126 = arith.constant 0 : index
    %517 = vector.load %arg10[%c0_124, %c0_125, %c0_126] : memref<2x8x32xf32, #tpu.memory_space<vmem>>, vector<2x8x32xf32>
    %518 = vector.shape_cast %481 : vector<2x32xf32> to vector<2x1x32xf32>
    %519 = vector.broadcast %518 : vector<2x1x32xf32> to vector<2x8x32xf32>
    %520 = arith.mulf %516, %519 : vector<2x8x32xf32>
    %cst_127 = arith.constant dense<0.000000e+00> : vector<2x8xf32>
    %521 = vector.multi_reduction <add>, %520, %cst_127 [2] : vector<2x8x32xf32> to vector<2x8xf32>
    %522 = vector.shape_cast %509 : vector<2x32xf32> to vector<2x1x32xf32>
    %523 = vector.broadcast %522 : vector<2x1x32xf32> to vector<2x8x32xf32>
    %524 = arith.mulf %517, %523 : vector<2x8x32xf32>
    %cst_128 = arith.constant dense<0.000000e+00> : vector<2x8xf32>
    %525 = vector.multi_reduction <add>, %524, %cst_128 [2] : vector<2x8x32xf32> to vector<2x8xf32>
    %526 = arith.addf %521, %525 : vector<2x8xf32>
    %cst_129 = arith.constant dense<0xFF800000> : vector<2xf32>
    %527 = vector.multi_reduction <maximumf>, %526, %cst_129 [1] : vector<2x8xf32> to vector<2xf32>
    %528 = vector.shape_cast %527 : vector<2xf32> to vector<2x1xf32>
    %529 = vector.broadcast %528 : vector<2x1xf32> to vector<2x8xf32>
    %530 = arith.subf %526, %529 : vector<2x8xf32>
    %531 = math.exp %530 : vector<2x8xf32>
    %cst_130 = arith.constant dense<0.000000e+00> : vector<2xf32>
    %532 = vector.multi_reduction <add>, %531, %cst_130 [1] : vector<2x8xf32> to vector<2xf32>
    %533 = vector.shape_cast %532 : vector<2xf32> to vector<2x1xf32>
    %534 = tpu.reciprocal %533 : vector<2x1xf32> -> vector<2x1xf32>
    %535 = vector.broadcast %534 : vector<2x1xf32> to vector<2x8xf32>
    %536 = arith.mulf %531, %535 : vector<2x8xf32>
    %537 = vector.shape_cast %536 : vector<2x8xf32> to vector<2x8x1xf32>
    %538 = vector.broadcast %537 : vector<2x8x1xf32> to vector<2x8x32xf32>
    %539 = arith.mulf %516, %538 : vector<2x8x32xf32>
    %cst_131 = arith.constant dense<0.000000e+00> : vector<2x32xf32>
    %540 = vector.multi_reduction <add>, %539, %cst_131 [1] : vector<2x8x32xf32> to vector<2x32xf32>
    %541 = vector.shape_cast %536 : vector<2x8xf32> to vector<2x8x1xf32>
    %542 = vector.broadcast %541 : vector<2x8x1xf32> to vector<2x8x32xf32>
    %543 = arith.mulf %517, %542 : vector<2x8x32xf32>
    %cst_132 = arith.constant dense<0.000000e+00> : vector<2x32xf32>
    %544 = vector.multi_reduction <add>, %543, %cst_132 [1] : vector<2x8x32xf32> to vector<2x32xf32>
    %545 = tpu.concatenate %540, %544 in 1 : vector<2x32xf32>, vector<2x32xf32> -> vector<2x64xf32>
    %c0_133 = arith.constant 0 : index
    %c0_134 = arith.constant 0 : index
    %546 = vector.load %arg6[%c0_133, %c0_134] : memref<64x7xf32, #tpu.memory_space<vmem>>, vector<64x7xf32>
    %cst_135 = arith.constant dense<0.000000e+00> : vector<2x7xf32>
    %547 = tpu.matmul %545, %546, %cst_135 {dimension_numbers = #tpu.dot_dimension_numbers<[1], [0], [0], [1], [0, 0, 1, 1], [], []>} : vector<2x64xf32>, vector<64x7xf32>, vector<2x7xf32> -> vector<2x7xf32>
    %c0_136 = arith.constant 0 : index
    %c0_137 = arith.constant 0 : index
    %548 = vector.load %arg7[%c0_136, %c0_137] : memref<1x7xf32, #tpu.memory_space<vmem>>, vector<1x7xf32>
    %549 = vector.broadcast %548 : vector<1x7xf32> to vector<2x7xf32>
    %550 = arith.addf %547, %549 : vector<2x7xf32>
    %c0_138 = arith.constant 0 : index
    %c0_139 = arith.constant 0 : index
    %551 = vector.load %arg8[%c0_138, %c0_139] : memref<2x7xf32, #tpu.memory_space<vmem>>, vector<2x7xf32>
    tpu.vector_store %arg8[%c0_138, %c0_139], %550 {strides = array<i32>} : memref<2x7xf32, #tpu.memory_space<vmem>>, vector<2x7xf32>,
    return
  }
}

</mosaic_0001>

<llo_original>
// kernel: tpu_custom_call.1
$region0: #{tpu_custom_call.1}
  #allocation0 [shape = 'u32[]', space=smem, size = 0x4, offset = 0x4, fixed_abs, tag = 'smem constant byte address 0x4 - core index']
  #allocation1 [shape = 'u32[144,128]{1,0:T(1,128)}', space=vmem, size = 0x12000, scoped, tag = 'internal scratch']
  #allocation2 [shape = 'f32[2,8,32]{2,1,0:T(8,128)}', space=vmem, size = 0x2000, scoped, tag = 'scratch operand']
  #allocation3 [shape = 'f32[2,8,32]{2,1,0:T(8,128)}', space=vmem, size = 0x2000, scoped, tag = 'scratch operand']
  %s0 = inlined_call_operand.vmem [shape: s32[16,1], index: 0, kind: input, shape index: {}]
  %s1 = inlined_call_operand.vmem [shape: f32[50,32], index: 1, kind: input, shape index: {}]
  %s2 = inlined_call_operand.vmem [shape: f32[32,256], index: 2, kind: input, shape index: {}]
  %s3 = inlined_call_operand.vmem [shape: f32[32,128], index: 3, kind: input, shape index: {}]
  %s4 = inlined_call_operand.vmem [shape: f32[32,128], index: 4, kind: input, shape index: {}]
  %s5 = inlined_call_operand.vmem [shape: f32[1,256], index: 5, kind: input, shape index: {}]
  %s6 = inlined_call_operand.vmem [shape: f32[64,7], index: 6, kind: input, shape index: {}]
  %s7 = inlined_call_operand.vmem [shape: f32[1,7], index: 7, kind: input, shape index: {}]
  %s8 = inlined_call_operand.hbm [shape: f32[2,7], index: 8, kind: output, shape index: {}]
  %s9 = sld [smem:[#allocation0]]
  $region42: #{tpu_custom_call.1} parent=0
    _
  %s11 = ssub.s32 1, %s9
  %s12 = scalar_select 0, %s11, %s9
  $region1: #{tpu_custom_call.1} parent=0
    #allocation4 [shape = 'u8[1024]{0}', space=vmem, size = 0x400, scoped, tag = 'output window, operand 0, single buffered']
    #allocation5 [shape = 's32[1]{0}', space=sflag, size = 0x4, scoped, tag = 'scoped memory for tpu_custom_call.1']
    %13 = vsyncpa [#allocation5], 0
    // Predicated region
    $region2: #{tpu_custom_call.1} parent=1 // pred_check
      _
    $region3: #{tpu_custom_call.1} parent=1 // pred_check_branch
      %15 = sbr.rel (0) target = $region5
    $region4: #{tpu_custom_call.1} parent=1 // pred_region
      _
    $region5: #{tpu_custom_call.1} parent=1 // pred_fallthru
      _
    // Predicated region
    $region6: #{tpu_custom_call.1} parent=1 // pred_check
      _
    $region7: #{tpu_custom_call.1} parent=1 // pred_check_branch
      %17 = sbr.rel (0) target = $region9
    $region8: #{tpu_custom_call.1} parent=1 // pred_region
      _
    $region9: #{tpu_custom_call.1} parent=1 // pred_fallthru
      _
    // Predicated region
    $region10: #{tpu_custom_call.1} parent=1 // pred_check
      _
    $region11: #{tpu_custom_call.1} parent=1 // pred_check_branch
      %19 = sbr.rel (0) target = $region13
    $region12: #{tpu_custom_call.1} parent=1 // pred_region
      _
    $region13: #{tpu_custom_call.1} parent=1 // pred_fallthru
      _
    // Predicated region
    $region14: #{tpu_custom_call.1} parent=1 // pred_check
      _
    $region15: #{tpu_custom_call.1} parent=1 // pred_check_branch
      %21 = sbr.rel (0) target = $region17
    $region16: #{tpu_custom_call.1} parent=1 // pred_region
      _
    $region17: #{tpu_custom_call.1} parent=1 // pred_fallthru
      _
    // Predicated region
    $region18: #{tpu_custom_call.1} parent=1 // pred_check
      _
    $region19: #{tpu_custom_call.1} parent=1 // pred_check_branch
      %23 = sbr.rel (0) target = $region21
    $region20: #{tpu_custom_call.1} parent=1 // pred_region
      _
    $region21: #{tpu_custom_call.1} parent=1 // pred_fallthru
      _
    // Predicated region
    $region22: #{tpu_custom_call.1} parent=1 // pred_check
      _
    $region23: #{tpu_custom_call.1} parent=1 // pred_check_branch
      %25 = sbr.rel (0) target = $region25
    $region24: #{tpu_custom_call.1} parent=1 // pred_region
      _
    $region25: #{tpu_custom_call.1} parent=1 // pred_fallthru
      _
    // Predicated region
    $region26: #{tpu_custom_call.1} parent=1 // pred_check
      _
    $region27: #{tpu_custom_call.1} parent=1 // pred_check_branch
      %27 = sbr.rel (0) target = $region29
    $region28: #{tpu_custom_call.1} parent=1 // pred_region
      _
    $region29: #{tpu_custom_call.1} parent=1 // pred_fallthru
      _
    // Predicated region
    $region30: #{tpu_custom_call.1} parent=1 // pred_check
      _
    $region31: #{tpu_custom_call.1} parent=1 // pred_check_branch
      %29 = sbr.rel (0) target = $region33
    $region32: #{tpu_custom_call.1} parent=1 // pred_region
      _
    $region33: #{tpu_custom_call.1} parent=1 // pred_fallthru
      _
    %v30 = vld [vmem:[%s0] sm:$0xff]
    %v31 = vld [vmem:[%s0 + $0x8] sm:$0xff]
    %v32 = vlaneseq
    %v33 = vand.u32 %v32, 127
    %34 = vset.pattern.permute.xlu0 0
    %35 = vperm.xlu0 %34, %v30
    %v36 = vpop.permute.xlu0 %35
    %37 = vset.pattern.permute.xlu0 0
    %38 = vperm.xlu0 %37, %v31
    %v39 = vpop.permute.xlu0 %38
    %vm40 = vcmp.eq.s32.totalorder %v36, %v33
    %vm41 = vcmp.eq.s32.totalorder %v39, %v33
    %v42 = vsel %vm40, 1, 0
    %v43 = vsel %vm41, 1, 0
    %v44 = vcvt.s32.f32 %v42
    %v45 = vcvt.s32.f32 %v43
    %v46 = vld [vmem:[%s1] sm:$0xff]
    %v47 = vld [vmem:[%s1 + $0x8] sm:$0xff]
    %v48 = vld [vmem:[%s1 + $0x10] sm:$0xff]
    %v49 = vld [vmem:[%s1 + $0x18] sm:$0xff]
    %v50 = vld [vmem:[%s1 + $0x20] sm:$0xff]
    %v51 = vld [vmem:[%s1 + $0x28] sm:$0xff]
    %v52 = vld [vmem:[%s1 + $0x30] sm:$0x3]
    %vm53 = vcmask 408576
    %v55 = vsel %vm53, %v44, 0
    %v58 = vsel %vm53, %v45, 0
    %vm60 = vcmask 1041408
    %v62 = vsel %vm60, %v52, 0
    %64 = vmatprep.subr.mxu0 0.0
    %65 = vmatpush1.msra.mxu0 0.0
    %66 = vmatprep.subr.mxu0 0.0
    %67 = vmatpush1.msra.mxu0 0.0
    %68 = vmatprep.subr.mxu0 0.0
    %69 = vmatpush1.msra.mxu0 0.0
    %70 = vmatprep.subr.mxu0 0.0
    %71 = vmatpush1.msra.mxu0 0.0
    %72 = vmatprep.subr.mxu0 0.0
    %73 = vmatpush1.msra.mxu0 0.0
    %74 = vmatprep.subr.mxu0 0.0
    %75 = vmatpush1.msra.mxu0 0.0
    %76 = vmatprep.subr.mxu0 0.0
    %77 = vmatpush1.msra.mxu0 0.0
    %78 = vmatprep.subr.mxu0 0.0
    %79 = vmatpush1.msra.mxu0 0.0
    %80 = vmatprep.subr.mxu0 0.0
    %81 = vmatpush1.msra.mxu0 0.0
    %82 = vmatprep.subr.mxu0 0.0
    %83 = vmatpush1.msra.mxu0 %v62
    %84 = vmatprep.subr.mxu0 0.0
    %85 = vmatpush1.msra.mxu0 %v51
    %86 = vmatprep.subr.mxu0 0.0
    %87 = vmatpush1.msra.mxu0 %v50
    %88 = vmatprep.subr.mxu0 0.0
    %89 = vmatpush1.msra.mxu0 %v49
    %90 = vmatprep.subr.mxu0 0.0
    %91 = vmatpush1.msra.mxu0 %v48
    %92 = vmatprep.subr.mxu0 0.0
    %93 = vmatpush1.msra.mxu0 %v47
    %94 = vmatprep.subr.mxu0 0.0
    %95 = vmatpush1.msra.mxu0 %v46
    %96 = vmatprep.subr.mxu0 0.0
    %97 = vmatpush2.msra.mxu0 0.0
    %98 = vmatprep.subr.mxu0 0.0
    %99 = vmatpush2.msra.mxu0 0.0
    %100 = vmatprep.subr.mxu0 0.0
    %101 = vmatpush2.msra.mxu0 0.0
    %102 = vmatprep.subr.mxu0 0.0
    %103 = vmatpush2.msra.mxu0 0.0
    %104 = vmatprep.subr.mxu0 0.0
    %105 = vmatpush2.msra.mxu0 0.0
    %106 = vmatprep.subr.mxu0 0.0
    %107 = vmatpush2.msra.mxu0 0.0
    %108 = vmatprep.subr.mxu0 0.0
    %109 = vmatpush2.msra.mxu0 0.0
    %110 = vmatprep.subr.mxu0 0.0
    %111 = vmatpush2.msra.mxu0 0.0
    %112 = vmatprep.subr.mxu0 0.0
    %113 = vmatpush2.msra.mxu0 0.0
    %114 = vmatprep.subr.mxu0 0.0
    %115 = vmatpush2.msra.mxu0 0.0
    %116 = vmatprep.subr.mxu0 0.0
    %117 = vmatpush2.msra.mxu0 0.0
    %118 = vmatprep.subr.mxu0 0.0
    %119 = vmatpush2.msra.mxu0 0.0
    %120 = vmatprep.subr.mxu0 0.0
    %121 = vmatpush2.msra.mxu0 0.0
    %122 = vmatprep.subr.mxu0 0.0
    %123 = vmatpush2.msra.mxu0 0.0
    %124 = vmatprep.subr.mxu0 0.0
    %125 = vmatpush2.msra.mxu0 0.0
    %126 = vmatprep.subr.mxu0 0.0
    %127 = vmatpush2.msra.mxu0 0.0
    %128 = vmatprep.mubr.f32.mxu0 0.0
    %129 = vmatmul.mubr.f32.gmra.mxu0 %v55
    %v130 = vpop.f32.mrf.mxu0
    %v131 = vadd.f32 0.0, %v130
    %v132 = vpop.f32.mrf.mxu0
    %133 = vmatprep.mubr.f32.mxu0 0.0
    %134 = vmatmul.mubr.f32.gmra.mxu0 %v58
    %v135 = vpop.f32.mrf.mxu0
    %v136 = vadd.f32 0.0, %v135
    %v137 = vpop.f32.mrf.mxu0
    %138 = vdwg.mxu0
    %v139 = vld [vmem:[%s2] sm:$0xff]
    %v140 = vld [vmem:[%s2 + $0x8] sm:$0xff]
    %v141 = vld [vmem:[%s2 + $0x10] sm:$0xff]
    %v142 = vld [vmem:[%s2 + $0x18] sm:$0xff]
    %v143 = vld [vmem:[%s2 + $0x20] sm:$0xff]
    %v144 = vld [vmem:[%s2 + $0x28] sm:$0xff]
    %v145 = vld [vmem:[%s2 + $0x30] sm:$0xff]
    %v146 = vld [vmem:[%s2 + $0x38] sm:$0xff]
    %v147 = vld [vmem:[%s5] sm:$0x3]
    %v149 = vlaneseq
    %v150 = vshrl.u32 %v149, 7
    %v151 = vsub.s32 0, %v150
    %v152 = vrot.slane %v147, %v151
    %v153 = vlaneseq
    %v154 = vshrl.u32 %v153, 7
    %v155 = vsub.s32 1, %v154
    %v156 = vrot.slane %v147, %v155
    %vm159 = vcmask 261120
    %v161 = vsel %vm159, %v131, 0
    %v164 = vsel %vm159, %v136, 0
    %166 = vmatprep.subr.mxu0 0.0
    %167 = vmatpush1.msra.mxu0 0.0
    %168 = vmatprep.subr.mxu0 0.0
    %169 = vmatpush1.msra.mxu0 0.0
    %170 = vmatprep.subr.mxu0 0.0
    %171 = vmatpush1.msra.mxu0 0.0
    %172 = vmatprep.subr.mxu0 0.0
    %173 = vmatpush1.msra.mxu0 0.0
    %174 = vmatprep.subr.mxu0 0.0
    %175 = vmatpush1.msra.mxu0 0.0
    %176 = vmatprep.subr.mxu0 0.0
    %177 = vmatpush1.msra.mxu0 0.0
    %178 = vmatprep.subr.mxu0 0.0
    %179 = vmatpush1.msra.mxu0 0.0
    %180 = vmatprep.subr.mxu0 0.0
    %181 = vmatpush1.msra.mxu0 0.0
    %182 = vmatprep.subr.mxu0 0.0
    %183 = vmatpush1.msra.mxu0 0.0
    %184 = vmatprep.subr.mxu0 0.0
    %185 = vmatpush1.msra.mxu0 0.0
    %186 = vmatprep.subr.mxu0 0.0
    %187 = vmatpush1.msra.mxu0 0.0
    %188 = vmatprep.subr.mxu0 0.0
    %189 = vmatpush1.msra.mxu0 0.0
    %190 = vmatprep.subr.mxu0 %v146
    %191 = vmatpush1.msra.mxu0 %v145
    %192 = vmatprep.subr.mxu0 %v144
    %193 = vmatpush1.msra.mxu0 %v143
    %194 = vmatprep.subr.mxu0 %v142
    %195 = vmatpush1.msra.mxu0 %v141
    %196 = vmatprep.subr.mxu0 %v140
    %197 = vmatpush1.msra.mxu0 %v139
    %198 = vmatprep.subr.mxu0 0.0
    %199 = vmatpush2.msra.mxu0 0.0
    %200 = vmatprep.subr.mxu0 0.0
    %201 = vmatpush2.msra.mxu0 0.0
    %202 = vmatprep.subr.mxu0 0.0
    %203 = vmatpush2.msra.mxu0 0.0
    %204 = vmatprep.subr.mxu0 0.0
    %205 = vmatpush2.msra.mxu0 0.0
    %206 = vmatprep.subr.mxu0 0.0
    %207 = vmatpush2.msra.mxu0 0.0
    %208 = vmatprep.subr.mxu0 0.0
    %209 = vmatpush2.msra.mxu0 0.0
    %210 = vmatprep.subr.mxu0 0.0
    %211 = vmatpush2.msra.mxu0 0.0
    %212 = vmatprep.subr.mxu0 0.0
    %213 = vmatpush2.msra.mxu0 0.0
    %214 = vmatprep.subr.mxu0 0.0
    %215 = vmatpush2.msra.mxu0 0.0
    %216 = vmatprep.subr.mxu0 0.0
    %217 = vmatpush2.msra.mxu0 0.0
    %218 = vmatprep.subr.mxu0 0.0
    %219 = vmatpush2.msra.mxu0 0.0
    %220 = vmatprep.subr.mxu0 0.0
    %221 = vmatpush2.msra.mxu0 0.0
    %222 = vmatprep.subr.mxu0 0.0
    %223 = vmatpush2.msra.mxu0 0.0
    %224 = vmatprep.subr.mxu0 0.0
    %225 = vmatpush2.msra.mxu0 0.0
    %226 = vmatprep.subr.mxu0 0.0
    %227 = vmatpush2.msra.mxu0 0.0
    %228 = vmatprep.subr.mxu0 0.0
    %229 = vmatpush2.msra.mxu0 0.0
    %230 = vmatprep.mubr.f32.mxu0 0.0
    %231 = vmatmul.mubr.f32.gmra.mxu0 %v161
    %v232 = vpop.f32.mrf.mxu0
    %v233 = vadd.f32 %v152, %v232
    %v234 = vpop.f32.mrf.mxu0
    %v235 = vadd.f32 %v156, %v234
    %236 = vmatprep.mubr.f32.mxu0 0.0
    %237 = vmatmul.mubr.f32.gmra.mxu0 %v164
    %v238 = vpop.f32.mrf.mxu0
    %v239 = vadd.f32 %v152, %v238
    %v240 = vpop.f32.mrf.mxu0
    %v241 = vadd.f32 %v156, %v240
    %242 = vdwg.mxu0
    %v243 = vld [vmem:[%s3] sm:$0xff]
    %v244 = vld [vmem:[%s3 + $0x8] sm:$0xff]
    %v245 = vld [vmem:[%s3 + $0x10] sm:$0xff]
    %v246 = vld [vmem:[%s3 + $0x18] sm:$0xff]
    %v247 = vld [vmem:[%s4] sm:$0xff]
    %v248 = vld [vmem:[%s4 + $0x8] sm:$0xff]
    %v249 = vld [vmem:[%s4 + $0x10] sm:$0xff]
    %v250 = vld [vmem:[%s4 + $0x18] sm:$0xff]
    %v252 = vsel %vm159, 0.0, 0
    %254 = vmatprep.subr.mxu0 0.0
    %255 = vmatpush1.msra.mxu0 0.0
    %256 = vmatprep.subr.mxu0 0.0
    %257 = vmatpush1.msra.mxu0 0.0
    %258 = vmatprep.subr.mxu0 0.0
    %259 = vmatpush1.msra.mxu0 0.0
    %260 = vmatprep.subr.mxu0 0.0
    %261 = vmatpush1.msra.mxu0 0.0
    %262 = vmatprep.subr.mxu0 0.0
    %263 = vmatpush1.msra.mxu0 0.0
    %264 = vmatprep.subr.mxu0 0.0
    %265 = vmatpush1.msra.mxu0 0.0
    %266 = vmatprep.subr.mxu0 0.0
    %267 = vmatpush1.msra.mxu0 0.0
    %268 = vmatprep.subr.mxu0 0.0
    %269 = vmatpush1.msra.mxu0 0.0
    %270 = vmatprep.subr.mxu0 0.0
    %271 = vmatpush1.msra.mxu0 0.0
    %272 = vmatprep.subr.mxu0 0.0
    %273 = vmatpush1.msra.mxu0 0.0
    %274 = vmatprep.subr.mxu0 0.0
    %275 = vmatpush1.msra.mxu0 0.0
    %276 = vmatprep.subr.mxu0 0.0
    %277 = vmatpush1.msra.mxu0 0.0
    %278 = vmatprep.subr.mxu0 0.0
    %279 = vmatpush1.msra.mxu0 %v246
    %280 = vmatprep.subr.mxu0 0.0
    %281 = vmatpush1.msra.mxu0 %v245
    %282 = vmatprep.subr.mxu0 0.0
    %283 = vmatpush1.msra.mxu0 %v244
    %284 = vmatprep.subr.mxu0 0.0
    %285 = vmatpush1.msra.mxu0 %v243
    %286 = vmatprep.subr.mxu0 0.0
    %287 = vmatpush2.msra.mxu0 0.0
    %288 = vmatprep.subr.mxu0 0.0
    %289 = vmatpush2.msra.mxu0 0.0
    %290 = vmatprep.subr.mxu0 0.0
    %291 = vmatpush2.msra.mxu0 0.0
    %292 = vmatprep.subr.mxu0 0.0
    %293 = vmatpush2.msra.mxu0 0.0
    %294 = vmatprep.subr.mxu0 0.0
    %295 = vmatpush2.msra.mxu0 0.0
    %296 = vmatprep.subr.mxu0 0.0
    %297 = vmatpush2.msra.mxu0 0.0
    %298 = vmatprep.subr.mxu0 0.0
    %299 = vmatpush2.msra.mxu0 0.0
    %300 = vmatprep.subr.mxu0 0.0
    %301 = vmatpush2.msra.mxu0 0.0
    %302 = vmatprep.subr.mxu0 0.0
    %303 = vmatpush2.msra.mxu0 0.0
    %304 = vmatprep.subr.mxu0 0.0
    %305 = vmatpush2.msra.mxu0 0.0
    %306 = vmatprep.subr.mxu0 0.0
    %307 = vmatpush2.msra.mxu0 0.0
    %308 = vmatprep.subr.mxu0 0.0
    %309 = vmatpush2.msra.mxu0 0.0
    %310 = vmatprep.subr.mxu0 0.0
    %311 = vmatpush2.msra.mxu0 0.0
    %312 = vmatprep.subr.mxu0 0.0
    %313 = vmatpush2.msra.mxu0 0.0
    %314 = vmatprep.subr.mxu0 0.0
    %315 = vmatpush2.msra.mxu0 0.0
    %316 = vmatprep.subr.mxu0 0.0
    %317 = vmatpush2.msra.mxu0 0.0
    %318 = vmatprep.mubr.f32.mxu0 0.0
    %319 = vmatmul.mubr.f32.gmra.mxu0 %v252
    %v320 = vpop.f32.mrf.mxu0
    %v321 = vadd.f32 0.0, %v320
    %v322 = vpop.f32.mrf.mxu0
    %323 = vdwg.mxu0
    %v324 = vadd.f32 %v233, %v321
    %v325 = vxor.u32 %v324, 2147483648
    %v326 = vmul.f32 %v325, 1.442695
    %v327 = vpow.pop %v326
    %v328 = vadd.f32 %v327, 1.0
    %v329 = vrcp.pop %v328
    %v330 = vmul.f32 1.0, %v329
    %v331 = vtanh.pop %v324
    %v332 = vmul.f32 %v330, 0.0
    %334 = vrot.lane.b32.xlu0 %v331, 64
    %v335 = vpop.permute.xlu0 %334
    %v337 = vmul.f32 %v330, %v335
    %339 = vrot.lane.b32.xlu0 %v337, 32
    %v340 = vpop.permute.xlu0 %339
    %v342 = vadd.f32 %v332, %v340
    %v343 = vtanh.pop %v342
    %345 = vrot.lane.b32.xlu0 %v343, 64
    %v346 = vpop.permute.xlu0 %345
    %v348 = vmul.f32 %v330, %v346
    %349 = vmatprep.subr.mxu0 0.0
    %350 = vmatpush1.msra.mxu0 0.0
    %351 = vmatprep.subr.mxu0 0.0
    %352 = vmatpush1.msra.mxu0 0.0
    %353 = vmatprep.subr.mxu0 0.0
    %354 = vmatpush1.msra.mxu0 0.0
    %355 = vmatprep.subr.mxu0 0.0
    %356 = vmatpush1.msra.mxu0 0.0
    %357 = vmatprep.subr.mxu0 0.0
    %358 = vmatpush1.msra.mxu0 0.0
    %359 = vmatprep.subr.mxu0 0.0
    %360 = vmatpush1.msra.mxu0 0.0
    %361 = vmatprep.subr.mxu0 0.0
    %362 = vmatpush1.msra.mxu0 0.0
    %363 = vmatprep.subr.mxu0 0.0
    %364 = vmatpush1.msra.mxu0 0.0
    %365 = vmatprep.subr.mxu0 0.0
    %366 = vmatpush1.msra.mxu0 0.0
    %367 = vmatprep.subr.mxu0 0.0
    %368 = vmatpush1.msra.mxu0 0.0
    %369 = vmatprep.subr.mxu0 0.0
    %370 = vmatpush1.msra.mxu0 0.0
    %371 = vmatprep.subr.mxu0 0.0
    %372 = vmatpush1.msra.mxu0 0.0
    %373 = vmatprep.subr.mxu0 0.0
    %374 = vmatpush1.msra.mxu0 %v250
    %375 = vmatprep.subr.mxu0 0.0
    %376 = vmatpush1.msra.mxu0 %v249
    %377 = vmatprep.subr.mxu0 0.0
    %378 = vmatpush1.msra.mxu0 %v248
    %379 = vmatprep.subr.mxu0 0.0
    %380 = vmatpush1.msra.mxu0 %v247
    %381 = vmatprep.subr.mxu0 0.0
    %382 = vmatpush2.msra.mxu0 0.0
    %383 = vmatprep.subr.mxu0 0.0
    %384 = vmatpush2.msra.mxu0 0.0
    %385 = vmatprep.subr.mxu0 0.0
    %386 = vmatpush2.msra.mxu0 0.0
    %387 = vmatprep.subr.mxu0 0.0
    %388 = vmatpush2.msra.mxu0 0.0
    %389 = vmatprep.subr.mxu0 0.0
    %390 = vmatpush2.msra.mxu0 0.0
    %391 = vmatprep.subr.mxu0 0.0
    %392 = vmatpush2.msra.mxu0 0.0
    %393 = vmatprep.subr.mxu0 0.0
    %394 = vmatpush2.msra.mxu0 0.0
    %395 = vmatprep.subr.mxu0 0.0
    %396 = vmatpush2.msra.mxu0 0.0
    %397 = vmatprep.subr.mxu0 0.0
    %398 = vmatpush2.msra.mxu0 0.0
    %399 = vmatprep.subr.mxu0 0.0
    %400 = vmatpush2.msra.mxu0 0.0
    %401 = vmatprep.subr.mxu0 0.0
    %402 = vmatpush2.msra.mxu0 0.0
    %403 = vmatprep.subr.mxu0 0.0
    %404 = vmatpush2.msra.mxu0 0.0
    %405 = vmatprep.subr.mxu0 0.0
    %406 = vmatpush2.msra.mxu0 0.0
    %407 = vmatprep.subr.mxu0 0.0
    %408 = vmatpush2.msra.mxu0 0.0
    %409 = vmatprep.subr.mxu0 0.0
    %410 = vmatpush2.msra.mxu0 0.0
    %411 = vmatprep.subr.mxu0 0.0
    %412 = vmatpush2.msra.mxu0 0.0
    %413 = vmatprep.mubr.f32.mxu0 0.0
    %414 = vmatmul.mubr.f32.gmra.mxu0 %v252
    %v415 = vpop.f32.mrf.mxu0
    %v416 = vadd.f32 0.0, %v415
    %v417 = vpop.f32.mrf.mxu0
    %418 = vdwg.mxu0
    %v420 = vrot.slane %v416, 2
    %v422 = vadd.f32 %v241, %v420
    %v423 = vxor.u32 %v422, 2147483648
    %v424 = vmul.f32 %v423, 1.442695
    %v425 = vpow.pop %v424
    %v426 = vadd.f32 %v425, 1.0
    %v427 = vrcp.pop %v426
    %v428 = vmul.f32 1.0, %v427
    %v429 = vtanh.pop %v422
    %v430 = vmul.f32 %v428, 0.0
    %432 = vrot.lane.b32.xlu0 %v429, 64
    %v433 = vpop.permute.xlu0 %432
    %v435 = vmul.f32 %v428, %v433
    %437 = vrot.lane.b32.xlu0 %v435, 32
    %v438 = vpop.permute.xlu0 %437
    %v440 = vadd.f32 %v430, %v438
    %v441 = vtanh.pop %v440
    %443 = vrot.lane.b32.xlu0 %v441, 64
    %v444 = vpop.permute.xlu0 %443
    %v446 = vmul.f32 %v428, %v444
    %v449 = vunpack.c.l.s4 1966171168
    %v450 = vunpack.c.0.s8 %v449
    %v451 = vlaneseq
    %v452 = vshrl.u32 %v451, 7
    %v453 = vsub.s32 %v450, %v452
    %v454 = vrot.slane %v348, %v453
    %v455 = vcombine.high %v454, %v454
    %v457 = vunpack.c.l.s4 1966171168
    %v458 = vunpack.c.0.s8 %v457
    %v459 = vlaneseq
    %v460 = vshrl.u32 %v459, 7
    %v461 = vsub.s32 %v458, %v460
    %v462 = vrot.slane %v454, %v461
    %v464 = vunpack.c.l.s4 1966171168
    %v465 = vunpack.c.0.s8 %v464
    %v466 = vlaneseq
    %v467 = vshrl.u32 %v466, 7
    %v468 = vsub.s32 %v465, %v467
    %v469 = vrot.slane %v455, %v468
    %v470 = vlaneseq
    %v471 = vshrl.u32 %v470, 7
    %v472 = vsub.s32 0, %v471
    %v473 = vrot.slane %v462, %v472
    %v474 = vlaneseq
    %v475 = vshrl.u32 %v474, 7
    %v476 = vsub.s32 0, %v475
    %v477 = vrot.slane %v469, %v476
    %478 = vrot.lane.b32.xlu0 %v473, 32
    %v479 = vpop.permute.xlu0 %478
    %480 = vrot.lane.b32.xlu0 %v477, 32
    %v481 = vpop.permute.xlu0 %480
    %vm484 = vcmask 253952
    %485 = vst.msk [vmem:[#allocation2] sm:$0x1] %vm484, %v479
    %486 = vst.msk [vmem:[#allocation2 + $0x8] sm:$0x1] %vm484, %v481
    %v488 = vcombine.high %v446, %v446
    %v490 = vunpack.c.l.s4 1966171168
    %v491 = vunpack.c.0.s8 %v490
    %v492 = vlaneseq
    %v493 = vshrl.u32 %v492, 7
    %v494 = vsub.s32 %v491, %v493
    %v495 = vrot.slane %v488, %v494
    %v496 = vcombine.high %v495, %v495
    %v498 = vunpack.c.l.s4 1966171168
    %v499 = vunpack.c.0.s8 %v498
    %v500 = vlaneseq
    %v501 = vshrl.u32 %v500, 7
    %v502 = vsub.s32 %v499, %v501
    %v503 = vrot.slane %v495, %v502
    %v505 = vunpack.c.l.s4 1966171168
    %v506 = vunpack.c.0.s8 %v505
    %v507 = vlaneseq
    %v508 = vshrl.u32 %v507, 7
    %v509 = vsub.s32 %v506, %v508
    %v510 = vrot.slane %v496, %v509
    %v511 = vcombine.high %v503, %v503
    %v512 = vcombine.high %v510, %v510
    %v513 = vlaneseq
    %v514 = vshrl.u32 %v513, 7
    %v515 = vsub.s32 0, %v514
    %v516 = vrot.slane %v511, %v515
    %v517 = vlaneseq
    %v518 = vshrl.u32 %v517, 7
    %v519 = vsub.s32 0, %v518
    %v520 = vrot.slane %v512, %v519
    %521 = vrot.lane.b32.xlu0 %v516, 32
    %v522 = vpop.permute.xlu0 %521
    %523 = vrot.lane.b32.xlu0 %v520, 32
    %v524 = vpop.permute.xlu0 %523
    %527 = vst.msk [vmem:[#allocation3 + $0x7] sm:$0x1] %vm484, %v522
    %528 = vst.msk [vmem:[#allocation3 + $0xf] sm:$0x1] %vm484, %v524
    %529 = vrot.lane.b32.xlu0 %v348, 32
    %v530 = vpop.permute.xlu0 %529
    %v531 = vsel %vm159, %v530, 0
    %533 = vmatprep.subr.mxu0 0.0
    %534 = vmatpush1.msra.mxu0 0.0
    %535 = vmatprep.subr.mxu0 0.0
    %536 = vmatpush1.msra.mxu0 0.0
    %537 = vmatprep.subr.mxu0 0.0
    %538 = vmatpush1.msra.mxu0 0.0
    %539 = vmatprep.subr.mxu0 0.0
    %540 = vmatpush1.msra.mxu0 0.0
    %541 = vmatprep.subr.mxu0 0.0
    %542 = vmatpush1.msra.mxu0 0.0
    %543 = vmatprep.subr.mxu0 0.0
    %544 = vmatpush1.msra.mxu0 0.0
    %545 = vmatprep.subr.mxu0 0.0
    %546 = vmatpush1.msra.mxu0 0.0
    %547 = vmatprep.subr.mxu0 0.0
    %548 = vmatpush1.msra.mxu0 0.0
    %549 = vmatprep.subr.mxu0 0.0
    %550 = vmatpush1.msra.mxu0 0.0
    %551 = vmatprep.subr.mxu0 0.0
    %552 = vmatpush1.msra.mxu0 0.0
    %553 = vmatprep.subr.mxu0 0.0
    %554 = vmatpush1.msra.mxu0 0.0
    %555 = vmatprep.subr.mxu0 0.0
    %556 = vmatpush1.msra.mxu0 0.0
    %557 = vmatprep.subr.mxu0 0.0
    %558 = vmatpush1.msra.mxu0 %v246
    %559 = vmatprep.subr.mxu0 0.0
    %560 = vmatpush1.msra.mxu0 %v245
    %561 = vmatprep.subr.mxu0 0.0
    %562 = vmatpush1.msra.mxu0 %v244
    %563 = vmatprep.subr.mxu0 0.0
    %564 = vmatpush1.msra.mxu0 %v243
    %565 = vmatprep.subr.mxu0 0.0
    %566 = vmatpush2.msra.mxu0 0.0
    %567 = vmatprep.subr.mxu0 0.0
    %568 = vmatpush2.msra.mxu0 0.0
    %569 = vmatprep.subr.mxu0 0.0
    %570 = vmatpush2.msra.mxu0 0.0
    %571 = vmatprep.subr.mxu0 0.0
    %572 = vmatpush2.msra.mxu0 0.0
    %573 = vmatprep.subr.mxu0 0.0
    %574 = vmatpush2.msra.mxu0 0.0
    %575 = vmatprep.subr.mxu0 0.0
    %576 = vmatpush2.msra.mxu0 0.0
    %577 = vmatprep.subr.mxu0 0.0
    %578 = vmatpush2.msra.mxu0 0.0
    %579 = vmatprep.subr.mxu0 0.0
    %580 = vmatpush2.msra.mxu0 0.0
    %581 = vmatprep.subr.mxu0 0.0
    %582 = vmatpush2.msra.mxu0 0.0
    %583 = vmatprep.subr.mxu0 0.0
    %584 = vmatpush2.msra.mxu0 0.0
    %585 = vmatprep.subr.mxu0 0.0
    %586 = vmatpush2.msra.mxu0 0.0
    %587 = vmatprep.subr.mxu0 0.0
    %588 = vmatpush2.msra.mxu0 0.0
    %589 = vmatprep.subr.mxu0 0.0
    %590 = vmatpush2.msra.mxu0 0.0
    %591 = vmatprep.subr.mxu0 0.0
    %592 = vmatpush2.msra.mxu0 0.0
    %593 = vmatprep.subr.mxu0 0.0
    %594 = vmatpush2.msra.mxu0 0.0
    %595 = vmatprep.subr.mxu0 0.0
    %596 = vmatpush2.msra.mxu0 0.0
    %597 = vmatprep.mubr.f32.mxu0 0.0
    %598 = vmatmul.mubr.f32.gmra.mxu0 %v531
    %v599 = vpop.f32.mrf.mxu0
    %v600 = vadd.f32 0.0, %v599
    %v601 = vpop.f32.mrf.mxu0
    %602 = vdwg.mxu0
    %v604 = vrot.slane %v600, 6
    %v606 = vadd.f32 %v233, %v604
    %v607 = vxor.u32 %v606, 2147483648
    %v608 = vmul.f32 %v607, 1.442695
    %v609 = vpow.pop %v608
    %v610 = vadd.f32 %v609, 1.0
    %v611 = vrcp.pop %v610
    %v612 = vmul.f32 1.0, %v611
    %v613 = vtanh.pop %v606
    %v615 = vrot.slane %v342, 6
    %v617 = vmul.f32 %v612, %v615
    %619 = vrot.lane.b32.xlu0 %v613, 64
    %v620 = vpop.permute.xlu0 %619
    %v622 = vmul.f32 %v612, %v620
    %624 = vrot.lane.b32.xlu0 %v622, 32
    %v625 = vpop.permute.xlu0 %624
    %v627 = vadd.f32 %v617, %v625
    %v628 = vtanh.pop %v627
    %630 = vrot.lane.b32.xlu0 %v628, 64
    %v631 = vpop.permute.xlu0 %630
    %v633 = vmul.f32 %v612, %v631
    %v634 = vrot.slane %v446, 6
    %635 = vrot.lane.b32.xlu0 %v634, 32
    %v636 = vpop.permute.xlu0 %635
    %v637 = vsel %vm159, %v636, 0
    %639 = vmatprep.subr.mxu0 0.0
    %640 = vmatpush1.msra.mxu0 0.0
    %641 = vmatprep.subr.mxu0 0.0
    %642 = vmatpush1.msra.mxu0 0.0
    %643 = vmatprep.subr.mxu0 0.0
    %644 = vmatpush1.msra.mxu0 0.0
    %645 = vmatprep.subr.mxu0 0.0
    %646 = vmatpush1.msra.mxu0 0.0
    %647 = vmatprep.subr.mxu0 0.0
    %648 = vmatpush1.msra.mxu0 0.0
    %649 = vmatprep.subr.mxu0 0.0
    %650 = vmatpush1.msra.mxu0 0.0
    %651 = vmatprep.subr.mxu0 0.0
    %652 = vmatpush1.msra.mxu0 0.0
    %653 = vmatprep.subr.mxu0 0.0
    %654 = vmatpush1.msra.mxu0 0.0
    %655 = vmatprep.subr.mxu0 0.0
    %656 = vmatpush1.msra.mxu0 0.0
    %657 = vmatprep.subr.mxu0 0.0
    %658 = vmatpush1.msra.mxu0 0.0
    %659 = vmatprep.subr.mxu0 0.0
    %660 = vmatpush1.msra.mxu0 0.0
    %661 = vmatprep.subr.mxu0 0.0
    %662 = vmatpush1.msra.mxu0 0.0
    %663 = vmatprep.subr.mxu0 0.0
    %664 = vmatpush1.msra.mxu0 %v250
    %665 = vmatprep.subr.mxu0 0.0
    %666 = vmatpush1.msra.mxu0 %v249
    %667 = vmatprep.subr.mxu0 0.0
    %668 = vmatpush1.msra.mxu0 %v248
    %669 = vmatprep.subr.mxu0 0.0
    %670 = vmatpush1.msra.mxu0 %v247
    %671 = vmatprep.subr.mxu0 0.0
    %672 = vmatpush2.msra.mxu0 0.0
    %673 = vmatprep.subr.mxu0 0.0
    %674 = vmatpush2.msra.mxu0 0.0
    %675 = vmatprep.subr.mxu0 0.0
    %676 = vmatpush2.msra.mxu0 0.0
    %677 = vmatprep.subr.mxu0 0.0
    %678 = vmatpush2.msra.mxu0 0.0
    %679 = vmatprep.subr.mxu0 0.0
    %680 = vmatpush2.msra.mxu0 0.0
    %681 = vmatprep.subr.mxu0 0.0
    %682 = vmatpush2.msra.mxu0 0.0
    %683 = vmatprep.subr.mxu0 0.0
    %684 = vmatpush2.msra.mxu0 0.0
    %685 = vmatprep.subr.mxu0 0.0
    %686 = vmatpush2.msra.mxu0 0.0
    %687 = vmatprep.subr.mxu0 0.0
    %688 = vmatpush2.msra.mxu0 0.0
    %689 = vmatprep.subr.mxu0 0.0
    %690 = vmatpush2.msra.mxu0 0.0
    %691 = vmatprep.subr.mxu0 0.0
    %692 = vmatpush2.msra.mxu0 0.0
    %693 = vmatprep.subr.mxu0 0.0
    %694 = vmatpush2.msra.mxu0 0.0
    %695 = vmatprep.subr.mxu0 0.0
    %696 = vmatpush2.msra.mxu0 0.0
    %697 = vmatprep.subr.mxu0 0.0
    %698 = vmatpush2.msra.mxu0 0.0
    %699 = vmatprep.subr.mxu0 0.0
    %700 = vmatpush2.msra.mxu0 0.0
    %701 = vmatprep.subr.mxu0 0.0
    %702 = vmatpush2.msra.mxu0 0.0
    %703 = vmatprep.mubr.f32.mxu0 0.0
    %704 = vmatmul.mubr.f32.gmra.mxu0 %v637
    %v705 = vpop.f32.mrf.mxu0
    %v706 = vadd.f32 0.0, %v705
    %v707 = vpop.f32.mrf.mxu0
    %708 = vdwg.mxu0
    %v710 = vrot.slane %v706, 4
    %v712 = vadd.f32 %v241, %v710
    %v713 = vxor.u32 %v712, 2147483648
    %v714 = vmul.f32 %v713, 1.442695
    %v715 = vpow.pop %v714
    %v716 = vadd.f32 %v715, 1.0
    %v717 = vrcp.pop %v716
    %v718 = vmul.f32 1.0, %v717
    %v719 = vtanh.pop %v712
    %v721 = vrot.slane %v440, 2
    %v723 = vmul.f32 %v718, %v721
    %725 = vrot.lane.b32.xlu0 %v719, 64
    %v726 = vpop.permute.xlu0 %725
    %v728 = vmul.f32 %v718, %v726
    %730 = vrot.lane.b32.xlu0 %v728, 32
    %v731 = vpop.permute.xlu0 %730
    %v733 = vadd.f32 %v723, %v731
    %v734 = vtanh.pop %v733
    %736 = vrot.lane.b32.xlu0 %v734, 64
    %v737 = vpop.permute.xlu0 %736
    %v739 = vmul.f32 %v718, %v737
    %v742 = vunpack.c.l.s4 1966171168
    %v743 = vunpack.c.0.s8 %v742
    %v744 = vlaneseq
    %v745 = vshrl.u32 %v744, 7
    %v746 = vsub.s32 %v743, %v745
    %v747 = vrot.slane %v633, %v746
    %v748 = vcombine.high %v747, %v747
    %v750 = vunpack.c.l.s4 1966171168
    %v751 = vunpack.c.0.s8 %v750
    %v752 = vlaneseq
    %v753 = vshrl.u32 %v752, 7
    %v754 = vsub.s32 %v751, %v753
    %v755 = vrot.slane %v747, %v754
    %v757 = vunpack.c.l.s4 1966171168
    %v758 = vunpack.c.0.s8 %v757
    %v759 = vlaneseq
    %v760 = vshrl.u32 %v759, 7
    %v761 = vsub.s32 %v758, %v760
    %v762 = vrot.slane %v748, %v761
    %v763 = vcombine.high %v755, %v755
    %v764 = vcombine.high %v762, %v762
    %v765 = vlaneseq
    %v766 = vshrl.u32 %v765, 7
    %v767 = vsub.s32 0, %v766
    %v768 = vrot.slane %v763, %v767
    %v769 = vlaneseq
    %v770 = vshrl.u32 %v769, 7
    %v771 = vsub.s32 0, %v770
    %v772 = vrot.slane %v764, %v771
    %773 = vrot.lane.b32.xlu0 %v768, 32
    %v774 = vpop.permute.xlu0 %773
    %775 = vrot.lane.b32.xlu0 %v772, 32
    %v776 = vpop.permute.xlu0 %775
    %779 = vst.msk [vmem:[#allocation2 + $0x1] sm:$0x1] %vm484, %v774
    %780 = vst.msk [vmem:[#allocation2 + $0x9] sm:$0x1] %vm484, %v776
    %v782 = vcombine.high %v739, %v739
    %v784 = vunpack.c.l.s4 1966171168
    %v785 = vunpack.c.0.s8 %v784
    %v786 = vlaneseq
    %v787 = vshrl.u32 %v786, 7
    %v788 = vsub.s32 %v785, %v787
    %v789 = vrot.slane %v782, %v788
    %v790 = vcombine.high %v789, %v789
    %v792 = vunpack.c.l.s4 1966171168
    %v793 = vunpack.c.0.s8 %v792
    %v794 = vlaneseq
    %v795 = vshrl.u32 %v794, 7
    %v796 = vsub.s32 %v793, %v795
    %v797 = vrot.slane %v789, %v796
    %v799 = vunpack.c.l.s4 1966171168
    %v800 = vunpack.c.0.s8 %v799
    %v801 = vlaneseq
    %v802 = vshrl.u32 %v801, 7
    %v803 = vsub.s32 %v800, %v802
    %v804 = vrot.slane %v790, %v803
    %v805 = vlaneseq
    %v806 = vshrl.u32 %v805, 7
    %v807 = vsub.s32 0, %v806
    %v808 = vrot.slane %v797, %v807
    %v809 = vlaneseq
    %v810 = vshrl.u32 %v809, 7
    %v811 = vsub.s32 0, %v810
    %v812 = vrot.slane %v804, %v811
    %813 = vrot.lane.b32.xlu0 %v808, 32
    %v814 = vpop.permute.xlu0 %813
    %815 = vrot.lane.b32.xlu0 %v812, 32
    %v816 = vpop.permute.xlu0 %815
    %819 = vst.msk [vmem:[#allocation3 + $0x6] sm:$0x1] %vm484, %v814
    %820 = vst.msk [vmem:[#allocation3 + $0xe] sm:$0x1] %vm484, %v816
    %v821 = vrot.slane %v633, 2
    %822 = vrot.lane.b32.xlu0 %v821, 32
    %v823 = vpop.permute.xlu0 %822
    %v824 = vsel %vm159, %v823, 0
    %826 = vmatprep.subr.mxu0 0.0
    %827 = vmatpush1.msra.mxu0 0.0
    %828 = vmatprep.subr.mxu0 0.0
    %829 = vmatpush1.msra.mxu0 0.0
    %830 = vmatprep.subr.mxu0 0.0
    %831 = vmatpush1.msra.mxu0 0.0
    %832 = vmatprep.subr.mxu0 0.0
    %833 = vmatpush1.msra.mxu0 0.0
    %834 = vmatprep.subr.mxu0 0.0
    %835 = vmatpush1.msra.mxu0 0.0
    %836 = vmatprep.subr.mxu0 0.0
    %837 = vmatpush1.msra.mxu0 0.0
    %838 = vmatprep.subr.mxu0 0.0
    %839 = vmatpush1.msra.mxu0 0.0
    %840 = vmatprep.subr.mxu0 0.0
    %841 = vmatpush1.msra.mxu0 0.0
    %842 = vmatprep.subr.mxu0 0.0
    %843 = vmatpush1.msra.mxu0 0.0
    %844 = vmatprep.subr.mxu0 0.0
    %845 = vmatpush1.msra.mxu0 0.0
    %846 = vmatprep.subr.mxu0 0.0
    %847 = vmatpush1.msra.mxu0 0.0
    %848 = vmatprep.subr.mxu0 0.0
    %849 = vmatpush1.msra.mxu0 0.0
    %850 = vmatprep.subr.mxu0 0.0
    %851 = vmatpush1.msra.mxu0 %v246
    %852 = vmatprep.subr.mxu0 0.0
    %853 = vmatpush1.msra.mxu0 %v245
    %854 = vmatprep.subr.mxu0 0.0
    %855 = vmatpush1.msra.mxu0 %v244
    %856 = vmatprep.subr.mxu0 0.0
    %857 = vmatpush1.msra.mxu0 %v243
    %858 = vmatprep.subr.mxu0 0.0
    %859 = vmatpush2.msra.mxu0 0.0
    %860 = vmatprep.subr.mxu0 0.0
    %861 = vmatpush2.msra.mxu0 0.0
    %862 = vmatprep.subr.mxu0 0.0
    %863 = vmatpush2.msra.mxu0 0.0
    %864 = vmatprep.subr.mxu0 0.0
    %865 = vmatpush2.msra.mxu0 0.0
    %866 = vmatprep.subr.mxu0 0.0
    %867 = vmatpush2.msra.mxu0 0.0
    %868 = vmatprep.subr.mxu0 0.0
    %869 = vmatpush2.msra.mxu0 0.0
    %870 = vmatprep.subr.mxu0 0.0
    %871 = vmatpush2.msra.mxu0 0.0
    %872 = vmatprep.subr.mxu0 0.0
    %873 = vmatpush2.msra.mxu0 0.0
    %874 = vmatprep.subr.mxu0 0.0
    %875 = vmatpush2.msra.mxu0 0.0
    %876 = vmatprep.subr.mxu0 0.0
    %877 = vmatpush2.msra.mxu0 0.0
    %878 = vmatprep.subr.mxu0 0.0
    %879 = vmatpush2.msra.mxu0 0.0
    %880 = vmatprep.subr.mxu0 0.0
    %881 = vmatpush2.msra.mxu0 0.0
    %882 = vmatprep.subr.mxu0 0.0
    %883 = vmatpush2.msra.mxu0 0.0
    %884 = vmatprep.subr.mxu0 0.0
    %885 = vmatpush2.msra.mxu0 0.0
    %886 = vmatprep.subr.mxu0 0.0
    %887 = vmatpush2.msra.mxu0 0.0
    %888 = vmatprep.subr.mxu0 0.0
    %889 = vmatpush2.msra.mxu0 0.0
    %890 = vmatprep.mubr.f32.mxu0 0.0
    %891 = vmatmul.mubr.f32.gmra.mxu0 %v824
    %v892 = vpop.f32.mrf.mxu0
    %v893 = vadd.f32 0.0, %v892
    %v894 = vpop.f32.mrf.mxu0
    %895 = vdwg.mxu0
    %v897 = vrot.slane %v893, 4
    %v899 = vadd.f32 %v233, %v897
    %v900 = vxor.u32 %v899, 2147483648
    %v901 = vmul.f32 %v900, 1.442695
    %v902 = vpow.pop %v901
    %v903 = vadd.f32 %v902, 1.0
    %v904 = vrcp.pop %v903
    %v905 = vmul.f32 1.0, %v904
    %v906 = vtanh.pop %v899
    %v908 = vrot.slane %v627, 6
    %v910 = vmul.f32 %v905, %v908
    %912 = vrot.lane.b32.xlu0 %v906, 64
    %v913 = vpop.permute.xlu0 %912
    %v915 = vmul.f32 %v905, %v913
    %917 = vrot.lane.b32.xlu0 %v915, 32
    %v918 = vpop.permute.xlu0 %917
    %v920 = vadd.f32 %v910, %v918
    %v921 = vtanh.pop %v920
    %923 = vrot.lane.b32.xlu0 %v921, 64
    %v924 = vpop.permute.xlu0 %923
    %v926 = vmul.f32 %v905, %v924
    %v927 = vrot.slane %v739, 4
    %928 = vrot.lane.b32.xlu0 %v927, 32
    %v929 = vpop.permute.xlu0 %928
    %v930 = vsel %vm159, %v929, 0
    %932 = vmatprep.subr.mxu0 0.0
    %933 = vmatpush1.msra.mxu0 0.0
    %934 = vmatprep.subr.mxu0 0.0
    %935 = vmatpush1.msra.mxu0 0.0
    %936 = vmatprep.subr.mxu0 0.0
    %937 = vmatpush1.msra.mxu0 0.0
    %938 = vmatprep.subr.mxu0 0.0
    %939 = vmatpush1.msra.mxu0 0.0
    %940 = vmatprep.subr.mxu0 0.0
    %941 = vmatpush1.msra.mxu0 0.0
    %942 = vmatprep.subr.mxu0 0.0
    %943 = vmatpush1.msra.mxu0 0.0
    %944 = vmatprep.subr.mxu0 0.0
    %945 = vmatpush1.msra.mxu0 0.0
    %946 = vmatprep.subr.mxu0 0.0
    %947 = vmatpush1.msra.mxu0 0.0
    %948 = vmatprep.subr.mxu0 0.0
    %949 = vmatpush1.msra.mxu0 0.0
    %950 = vmatprep.subr.mxu0 0.0
    %951 = vmatpush1.msra.mxu0 0.0
    %952 = vmatprep.subr.mxu0 0.0
    %953 = vmatpush1.msra.mxu0 0.0
    %954 = vmatprep.subr.mxu0 0.0
    %955 = vmatpush1.msra.mxu0 0.0
    %956 = vmatprep.subr.mxu0 0.0
    %957 = vmatpush1.msra.mxu0 %v250
    %958 = vmatprep.subr.mxu0 0.0
    %959 = vmatpush1.msra.mxu0 %v249
    %960 = vmatprep.subr.mxu0 0.0
    %961 = vmatpush1.msra.mxu0 %v248
    %962 = vmatprep.subr.mxu0 0.0
    %963 = vmatpush1.msra.mxu0 %v247
    %964 = vmatprep.subr.mxu0 0.0
    %965 = vmatpush2.msra.mxu0 0.0
    %966 = vmatprep.subr.mxu0 0.0
    %967 = vmatpush2.msra.mxu0 0.0
    %968 = vmatprep.subr.mxu0 0.0
    %969 = vmatpush2.msra.mxu0 0.0
    %970 = vmatprep.subr.mxu0 0.0
    %971 = vmatpush2.msra.mxu0 0.0
    %972 = vmatprep.subr.mxu0 0.0
    %973 = vmatpush2.msra.mxu0 0.0
    %974 = vmatprep.subr.mxu0 0.0
    %975 = vmatpush2.msra.mxu0 0.0
    %976 = vmatprep.subr.mxu0 0.0
    %977 = vmatpush2.msra.mxu0 0.0
    %978 = vmatprep.subr.mxu0 0.0
    %979 = vmatpush2.msra.mxu0 0.0
    %980 = vmatprep.subr.mxu0 0.0
    %981 = vmatpush2.msra.mxu0 0.0
    %982 = vmatprep.subr.mxu0 0.0
    %983 = vmatpush2.msra.mxu0 0.0
    %984 = vmatprep.subr.mxu0 0.0
    %985 = vmatpush2.msra.mxu0 0.0
    %986 = vmatprep.subr.mxu0 0.0
    %987 = vmatpush2.msra.mxu0 0.0
    %988 = vmatprep.subr.mxu0 0.0
    %989 = vmatpush2.msra.mxu0 0.0
    %990 = vmatprep.subr.mxu0 0.0
    %991 = vmatpush2.msra.mxu0 0.0
    %992 = vmatprep.subr.mxu0 0.0
    %993 = vmatpush2.msra.mxu0 0.0
    %994 = vmatprep.subr.mxu0 0.0
    %995 = vmatpush2.msra.mxu0 0.0
    %996 = vmatprep.mubr.f32.mxu0 0.0
    %997 = vmatmul.mubr.f32.gmra.mxu0 %v930
    %v998 = vpop.f32.mrf.mxu0
    %v999 = vadd.f32 0.0, %v998
    %v1000 = vpop.f32.mrf.mxu0
    %1001 = vdwg.mxu0
    %v1003 = vrot.slane %v999, 6
    %v1005 = vadd.f32 %v241, %v1003
    %v1006 = vxor.u32 %v1005, 2147483648
    %v1007 = vmul.f32 %v1006, 1.442695
    %v1008 = vpow.pop %v1007
    %v1009 = vadd.f32 %v1008, 1.0
    %v1010 = vrcp.pop %v1009
    %v1011 = vmul.f32 1.0, %v1010
    %v1012 = vtanh.pop %v1005
    %v1014 = vrot.slane %v733, 2
    %v1016 = vmul.f32 %v1011, %v1014
    %1018 = vrot.lane.b32.xlu0 %v1012, 64
    %v1019 = vpop.permute.xlu0 %1018
    %v1021 = vmul.f32 %v1011, %v1019
    %1023 = vrot.lane.b32.xlu0 %v1021, 32
    %v1024 = vpop.permute.xlu0 %1023
    %v1026 = vadd.f32 %v1016, %v1024
    %v1027 = vtanh.pop %v1026
    %1029 = vrot.lane.b32.xlu0 %v1027, 64
    %v1030 = vpop.permute.xlu0 %1029
    %v1032 = vmul.f32 %v1011, %v1030
    %v1034 = vcombine.high %v926, %v926
    %v1036 = vunpack.c.l.s4 1966171168
    %v1037 = vunpack.c.0.s8 %v1036
    %v1038 = vlaneseq
    %v1039 = vshrl.u32 %v1038, 7
    %v1040 = vsub.s32 %v1037, %v1039
    %v1041 = vrot.slane %v1034, %v1040
    %v1042 = vcombine.high %v1041, %v1041
    %v1044 = vunpack.c.l.s4 1966171168
    %v1045 = vunpack.c.0.s8 %v1044
    %v1046 = vlaneseq
    %v1047 = vshrl.u32 %v1046, 7
    %v1048 = vsub.s32 %v1045, %v1047
    %v1049 = vrot.slane %v1041, %v1048
    %v1051 = vunpack.c.l.s4 1966171168
    %v1052 = vunpack.c.0.s8 %v1051
    %v1053 = vlaneseq
    %v1054 = vshrl.u32 %v1053, 7
    %v1055 = vsub.s32 %v1052, %v1054
    %v1056 = vrot.slane %v1042, %v1055
    %v1057 = vlaneseq
    %v1058 = vshrl.u32 %v1057, 7
    %v1059 = vsub.s32 0, %v1058
    %v1060 = vrot.slane %v1049, %v1059
    %v1061 = vlaneseq
    %v1062 = vshrl.u32 %v1061, 7
    %v1063 = vsub.s32 0, %v1062
    %v1064 = vrot.slane %v1056, %v1063
    %1065 = vrot.lane.b32.xlu0 %v1060, 32
    %v1066 = vpop.permute.xlu0 %1065
    %1067 = vrot.lane.b32.xlu0 %v1064, 32
    %v1068 = vpop.permute.xlu0 %1067
    %1071 = vst.msk [vmem:[#allocation2 + $0x2] sm:$0x1] %vm484, %v1066
    %1072 = vst.msk [vmem:[#allocation2 + $0xa] sm:$0x1] %vm484, %v1068
    %v1075 = vunpack.c.l.s4 1966171168
    %v1076 = vunpack.c.0.s8 %v1075
    %v1077 = vlaneseq
    %v1078 = vshrl.u32 %v1077, 7
    %v1079 = vsub.s32 %v1076, %v1078
    %v1080 = vrot.slane %v1032, %v1079
    %v1081 = vcombine.high %v1080, %v1080
    %v1083 = vunpack.c.l.s4 1966171168
    %v1084 = vunpack.c.0.s8 %v1083
    %v1085 = vlaneseq
    %v1086 = vshrl.u32 %v1085, 7
    %v1087 = vsub.s32 %v1084, %v1086
    %v1088 = vrot.slane %v1080, %v1087
    %v1090 = vunpack.c.l.s4 1966171168
    %v1091 = vunpack.c.0.s8 %v1090
    %v1092 = vlaneseq
    %v1093 = vshrl.u32 %v1092, 7
    %v1094 = vsub.s32 %v1091, %v1093
    %v1095 = vrot.slane %v1081, %v1094
    %v1096 = vcombine.high %v1088, %v1088
    %v1097 = vcombine.high %v1095, %v1095
    %v1098 = vlaneseq
    %v1099 = vshrl.u32 %v1098, 7
    %v1100 = vsub.s32 0, %v1099
    %v1101 = vrot.slane %v1096, %v1100
    %v1102 = vlaneseq
    %v1103 = vshrl.u32 %v1102, 7
    %v1104 = vsub.s32 0, %v1103
    %v1105 = vrot.slane %v1097, %v1104
    %1106 = vrot.lane.b32.xlu0 %v1101, 32
    %v1107 = vpop.permute.xlu0 %1106
    %1108 = vrot.lane.b32.xlu0 %v1105, 32
    %v1109 = vpop.permute.xlu0 %1108
    %1112 = vst.msk [vmem:[#allocation3 + $0x5] sm:$0x1] %vm484, %v1107
    %1113 = vst.msk [vmem:[#allocation3 + $0xd] sm:$0x1] %vm484, %v1109
    %v1114 = vrot.slane %v926, 4
    %1115 = vrot.lane.b32.xlu0 %v1114, 32
    %v1116 = vpop.permute.xlu0 %1115
    %v1117 = vsel %vm159, %v1116, 0
    %1119 = vmatprep.subr.mxu0 0.0
    %1120 = vmatpush1.msra.mxu0 0.0
    %1121 = vmatprep.subr.mxu0 0.0
    %1122 = vmatpush1.msra.mxu0 0.0
    %1123 = vmatprep.subr.mxu0 0.0
    %1124 = vmatpush1.msra.mxu0 0.0
    %1125 = vmatprep.subr.mxu0 0.0
    %1126 = vmatpush1.msra.mxu0 0.0
    %1127 = vmatprep.subr.mxu0 0.0
    %1128 = vmatpush1.msra.mxu0 0.0
    %1129 = vmatprep.subr.mxu0 0.0
    %1130 = vmatpush1.msra.mxu0 0.0
    %1131 = vmatprep.subr.mxu0 0.0
    %1132 = vmatpush1.msra.mxu0 0.0
    %1133 = vmatprep.subr.mxu0 0.0
    %1134 = vmatpush1.msra.mxu0 0.0
    %1135 = vmatprep.subr.mxu0 0.0
    %1136 = vmatpush1.msra.mxu0 0.0
    %1137 = vmatprep.subr.mxu0 0.0
    %1138 = vmatpush1.msra.mxu0 0.0
    %1139 = vmatprep.subr.mxu0 0.0
    %1140 = vmatpush1.msra.mxu0 0.0
    %1141 = vmatprep.subr.mxu0 0.0
    %1142 = vmatpush1.msra.mxu0 0.0
    %1143 = vmatprep.subr.mxu0 0.0
    %1144 = vmatpush1.msra.mxu0 %v246
    %1145 = vmatprep.subr.mxu0 0.0
    %1146 = vmatpush1.msra.mxu0 %v245
    %1147 = vmatprep.subr.mxu0 0.0
    %1148 = vmatpush1.msra.mxu0 %v244
    %1149 = vmatprep.subr.mxu0 0.0
    %1150 = vmatpush1.msra.mxu0 %v243
    %1151 = vmatprep.subr.mxu0 0.0
    %1152 = vmatpush2.msra.mxu0 0.0
    %1153 = vmatprep.subr.mxu0 0.0
    %1154 = vmatpush2.msra.mxu0 0.0
    %1155 = vmatprep.subr.mxu0 0.0
    %1156 = vmatpush2.msra.mxu0 0.0
    %1157 = vmatprep.subr.mxu0 0.0
    %1158 = vmatpush2.msra.mxu0 0.0
    %1159 = vmatprep.subr.mxu0 0.0
    %1160 = vmatpush2.msra.mxu0 0.0
    %1161 = vmatprep.subr.mxu0 0.0
    %1162 = vmatpush2.msra.mxu0 0.0
    %1163 = vmatprep.subr.mxu0 0.0
    %1164 = vmatpush2.msra.mxu0 0.0
    %1165 = vmatprep.subr.mxu0 0.0
    %1166 = vmatpush2.msra.mxu0 0.0
    %1167 = vmatprep.subr.mxu0 0.0
    %1168 = vmatpush2.msra.mxu0 0.0
    %1169 = vmatprep.subr.mxu0 0.0
    %1170 = vmatpush2.msra.mxu0 0.0
    %1171 = vmatprep.subr.mxu0 0.0
    %1172 = vmatpush2.msra.mxu0 0.0
    %1173 = vmatprep.subr.mxu0 0.0
    %1174 = vmatpush2.msra.mxu0 0.0
    %1175 = vmatprep.subr.mxu0 0.0
    %1176 = vmatpush2.msra.mxu0 0.0
    %1177 = vmatprep.subr.mxu0 0.0
    %1178 = vmatpush2.msra.mxu0 0.0
    %1179 = vmatprep.subr.mxu0 0.0
    %1180 = vmatpush2.msra.mxu0 0.0
    %1181 = vmatprep.subr.mxu0 0.0
    %1182 = vmatpush2.msra.mxu0 0.0
    %1183 = vmatprep.mubr.f32.mxu0 0.0
    %1184 = vmatmul.mubr.f32.gmra.mxu0 %v1117
    %v1185 = vpop.f32.mrf.mxu0
    %v1186 = vadd.f32 0.0, %v1185
    %v1187 = vpop.f32.mrf.mxu0
    %1188 = vdwg.mxu0
    %v1190 = vrot.slane %v1186, 2
    %v1192 = vadd.f32 %v233, %v1190
    %v1193 = vxor.u32 %v1192, 2147483648
    %v1194 = vmul.f32 %v1193, 1.442695
    %v1195 = vpow.pop %v1194
    %v1196 = vadd.f32 %v1195, 1.0
    %v1197 = vrcp.pop %v1196
    %v1198 = vmul.f32 1.0, %v1197
    %v1199 = vtanh.pop %v1192
    %v1201 = vrot.slane %v920, 6
    %v1203 = vmul.f32 %v1198, %v1201
    %1205 = vrot.lane.b32.xlu0 %v1199, 64
    %v1206 = vpop.permute.xlu0 %1205
    %v1208 = vmul.f32 %v1198, %v1206
    %1210 = vrot.lane.b32.xlu0 %v1208, 32
    %v1211 = vpop.permute.xlu0 %1210
    %v1213 = vadd.f32 %v1203, %v1211
    %v1214 = vtanh.pop %v1213
    %1216 = vrot.lane.b32.xlu0 %v1214, 64
    %v1217 = vpop.permute.xlu0 %1216
    %v1219 = vmul.f32 %v1198, %v1217
    %v1220 = vrot.slane %v1032, 2
    %1221 = vrot.lane.b32.xlu0 %v1220, 32
    %v1222 = vpop.permute.xlu0 %1221
    %v1223 = vsel %vm159, %v1222, 0
    %1225 = vmatprep.subr.mxu0 0.0
    %1226 = vmatpush1.msra.mxu0 0.0
    %1227 = vmatprep.subr.mxu0 0.0
    %1228 = vmatpush1.msra.mxu0 0.0
    %1229 = vmatprep.subr.mxu0 0.0
    %1230 = vmatpush1.msra.mxu0 0.0
    %1231 = vmatprep.subr.mxu0 0.0
    %1232 = vmatpush1.msra.mxu0 0.0
    %1233 = vmatprep.subr.mxu0 0.0
    %1234 = vmatpush1.msra.mxu0 0.0
    %1235 = vmatprep.subr.mxu0 0.0
    %1236 = vmatpush1.msra.mxu0 0.0
    %1237 = vmatprep.subr.mxu0 0.0
    %1238 = vmatpush1.msra.mxu0 0.0
    %1239 = vmatprep.subr.mxu0 0.0
    %1240 = vmatpush1.msra.mxu0 0.0
    %1241 = vmatprep.subr.mxu0 0.0
    %1242 = vmatpush1.msra.mxu0 0.0
    %1243 = vmatprep.subr.mxu0 0.0
    %1244 = vmatpush1.msra.mxu0 0.0
    %1245 = vmatprep.subr.mxu0 0.0
    %1246 = vmatpush1.msra.mxu0 0.0
    %1247 = vmatprep.subr.mxu0 0.0
    %1248 = vmatpush1.msra.mxu0 0.0
    %1249 = vmatprep.subr.mxu0 0.0
    %1250 = vmatpush1.msra.mxu0 %v250
    %1251 = vmatprep.subr.mxu0 0.0
    %1252 = vmatpush1.msra.mxu0 %v249
    %1253 = vmatprep.subr.mxu0 0.0
    %1254 = vmatpush1.msra.mxu0 %v248
    %1255 = vmatprep.subr.mxu0 0.0
    %1256 = vmatpush1.msra.mxu0 %v247
    %1257 = vmatprep.subr.mxu0 0.0
    %1258 = vmatpush2.msra.mxu0 0.0
    %1259 = vmatprep.subr.mxu0 0.0
    %1260 = vmatpush2.msra.mxu0 0.0
    %1261 = vmatprep.subr.mxu0 0.0
    %1262 = vmatpush2.msra.mxu0 0.0
    %1263 = vmatprep.subr.mxu0 0.0
    %1264 = vmatpush2.msra.mxu0 0.0
    %1265 = vmatprep.subr.mxu0 0.0
    %1266 = vmatpush2.msra.mxu0 0.0
    %1267 = vmatprep.subr.mxu0 0.0
    %1268 = vmatpush2.msra.mxu0 0.0
    %1269 = vmatprep.subr.mxu0 0.0
    %1270 = vmatpush2.msra.mxu0 0.0
    %1271 = vmatprep.subr.mxu0 0.0
    %1272 = vmatpush2.msra.mxu0 0.0
    %1273 = vmatprep.subr.mxu0 0.0
    %1274 = vmatpush2.msra.mxu0 0.0
    %1275 = vmatprep.subr.mxu0 0.0
    %1276 = vmatpush2.msra.mxu0 0.0
    %1277 = vmatprep.subr.mxu0 0.0
    %1278 = vmatpush2.msra.mxu0 0.0
    %1279 = vmatprep.subr.mxu0 0.0
    %1280 = vmatpush2.msra.mxu0 0.0
    %1281 = vmatprep.subr.mxu0 0.0
    %1282 = vmatpush2.msra.mxu0 0.0
    %1283 = vmatprep.subr.mxu0 0.0
    %1284 = vmatpush2.msra.mxu0 0.0
    %1285 = vmatprep.subr.mxu0 0.0
    %1286 = vmatpush2.msra.mxu0 0.0
    %1287 = vmatprep.subr.mxu0 0.0
    %1288 = vmatpush2.msra.mxu0 0.0
    %1289 = vmatprep.mubr.f32.mxu0 0.0
    %1290 = vmatmul.mubr.f32.gmra.mxu0 %v1223
    %v1291 = vpop.f32.mrf.mxu0
    %v1292 = vadd.f32 0.0, %v1291
    %v1293 = vpop.f32.mrf.mxu0
    %1294 = vdwg.mxu0
    %v1295 = vadd.f32 %v241, %v1292
    %v1296 = vxor.u32 %v1295, 2147483648
    %v1297 = vmul.f32 %v1296, 1.442695
    %v1298 = vpow.pop %v1297
    %v1299 = vadd.f32 %v1298, 1.0
    %v1300 = vrcp.pop %v1299
    %v1301 = vmul.f32 1.0, %v1300
    %v1302 = vtanh.pop %v1295
    %v1304 = vrot.slane %v1026, 2
    %v1306 = vmul.f32 %v1301, %v1304
    %1308 = vrot.lane.b32.xlu0 %v1302, 64
    %v1309 = vpop.permute.xlu0 %1308
    %v1311 = vmul.f32 %v1301, %v1309
    %1313 = vrot.lane.b32.xlu0 %v1311, 32
    %v1314 = vpop.permute.xlu0 %1313
    %v1316 = vadd.f32 %v1306, %v1314
    %v1317 = vtanh.pop %v1316
    %1319 = vrot.lane.b32.xlu0 %v1317, 64
    %v1320 = vpop.permute.xlu0 %1319
    %v1322 = vmul.f32 %v1301, %v1320
    %v1324 = vcombine.high %v1219, %v1219
    %v1326 = vunpack.c.l.s4 1966171168
    %v1327 = vunpack.c.0.s8 %v1326
    %v1328 = vlaneseq
    %v1329 = vshrl.u32 %v1328, 7
    %v1330 = vsub.s32 %v1327, %v1329
    %v1331 = vrot.slane %v1324, %v1330
    %v1332 = vcombine.high %v1331, %v1331
    %v1334 = vunpack.c.l.s4 1966171168
    %v1335 = vunpack.c.0.s8 %v1334
    %v1336 = vlaneseq
    %v1337 = vshrl.u32 %v1336, 7
    %v1338 = vsub.s32 %v1335, %v1337
    %v1339 = vrot.slane %v1331, %v1338
    %v1341 = vunpack.c.l.s4 1966171168
    %v1342 = vunpack.c.0.s8 %v1341
    %v1343 = vlaneseq
    %v1344 = vshrl.u32 %v1343, 7
    %v1345 = vsub.s32 %v1342, %v1344
    %v1346 = vrot.slane %v1332, %v1345
    %v1347 = vcombine.high %v1339, %v1339
    %v1348 = vcombine.high %v1346, %v1346
    %v1349 = vlaneseq
    %v1350 = vshrl.u32 %v1349, 7
    %v1351 = vsub.s32 0, %v1350
    %v1352 = vrot.slane %v1347, %v1351
    %v1353 = vlaneseq
    %v1354 = vshrl.u32 %v1353, 7
    %v1355 = vsub.s32 0, %v1354
    %v1356 = vrot.slane %v1348, %v1355
    %1357 = vrot.lane.b32.xlu0 %v1352, 32
    %v1358 = vpop.permute.xlu0 %1357
    %1359 = vrot.lane.b32.xlu0 %v1356, 32
    %v1360 = vpop.permute.xlu0 %1359
    %1363 = vst.msk [vmem:[#allocation2 + $0x3] sm:$0x1] %vm484, %v1358
    %1364 = vst.msk [vmem:[#allocation2 + $0xb] sm:$0x1] %vm484, %v1360
    %v1367 = vunpack.c.l.s4 1966171168
    %v1368 = vunpack.c.0.s8 %v1367
    %v1369 = vlaneseq
    %v1370 = vshrl.u32 %v1369, 7
    %v1371 = vsub.s32 %v1368, %v1370
    %v1372 = vrot.slane %v1322, %v1371
    %v1373 = vcombine.high %v1372, %v1372
    %v1375 = vunpack.c.l.s4 1966171168
    %v1376 = vunpack.c.0.s8 %v1375
    %v1377 = vlaneseq
    %v1378 = vshrl.u32 %v1377, 7
    %v1379 = vsub.s32 %v1376, %v1378
    %v1380 = vrot.slane %v1372, %v1379
    %v1382 = vunpack.c.l.s4 1966171168
    %v1383 = vunpack.c.0.s8 %v1382
    %v1384 = vlaneseq
    %v1385 = vshrl.u32 %v1384, 7
    %v1386 = vsub.s32 %v1383, %v1385
    %v1387 = vrot.slane %v1373, %v1386
    %v1388 = vlaneseq
    %v1389 = vshrl.u32 %v1388, 7
    %v1390 = vsub.s32 0, %v1389
    %v1391 = vrot.slane %v1380, %v1390
    %v1392 = vlaneseq
    %v1393 = vshrl.u32 %v1392, 7
    %v1394 = vsub.s32 0, %v1393
    %v1395 = vrot.slane %v1387, %v1394
    %1396 = vrot.lane.b32.xlu0 %v1391, 32
    %v1397 = vpop.permute.xlu0 %1396
    %1398 = vrot.lane.b32.xlu0 %v1395, 32
    %v1399 = vpop.permute.xlu0 %1398
    %1402 = vst.msk [vmem:[#allocation3 + $0x4] sm:$0x1] %vm484, %v1397
    %1403 = vst.msk [vmem:[#allocation3 + $0xc] sm:$0x1] %vm484, %v1399
    %v1404 = vrot.slane %v1219, 6
    %1405 = vrot.lane.b32.xlu0 %v1404, 32
    %v1406 = vpop.permute.xlu0 %1405
    %v1407 = vsel %vm159, %v1406, 0
    %1409 = vmatprep.subr.mxu0 0.0
    %1410 = vmatpush1.msra.mxu0 0.0
    %1411 = vmatprep.subr.mxu0 0.0
    %1412 = vmatpush1.msra.mxu0 0.0
    %1413 = vmatprep.subr.mxu0 0.0
    %1414 = vmatpush1.msra.mxu0 0.0
    %1415 = vmatprep.subr.mxu0 0.0
    %1416 = vmatpush1.msra.mxu0 0.0
    %1417 = vmatprep.subr.mxu0 0.0
    %1418 = vmatpush1.msra.mxu0 0.0
    %1419 = vmatprep.subr.mxu0 0.0
    %1420 = vmatpush1.msra.mxu0 0.0
    %1421 = vmatprep.subr.mxu0 0.0
    %1422 = vmatpush1.msra.mxu0 0.0
    %1423 = vmatprep.subr.mxu0 0.0
    %1424 = vmatpush1.msra.mxu0 0.0
    %1425 = vmatprep.subr.mxu0 0.0
    %1426 = vmatpush1.msra.mxu0 0.0
    %1427 = vmatprep.subr.mxu0 0.0
    %1428 = vmatpush1.msra.mxu0 0.0
    %1429 = vmatprep.subr.mxu0 0.0
    %1430 = vmatpush1.msra.mxu0 0.0
    %1431 = vmatprep.subr.mxu0 0.0
    %1432 = vmatpush1.msra.mxu0 0.0
    %1433 = vmatprep.subr.mxu0 0.0
    %1434 = vmatpush1.msra.mxu0 %v246
    %1435 = vmatprep.subr.mxu0 0.0
    %1436 = vmatpush1.msra.mxu0 %v245
    %1437 = vmatprep.subr.mxu0 0.0
    %1438 = vmatpush1.msra.mxu0 %v244
    %1439 = vmatprep.subr.mxu0 0.0
    %1440 = vmatpush1.msra.mxu0 %v243
    %1441 = vmatprep.subr.mxu0 0.0
    %1442 = vmatpush2.msra.mxu0 0.0
    %1443 = vmatprep.subr.mxu0 0.0
    %1444 = vmatpush2.msra.mxu0 0.0
    %1445 = vmatprep.subr.mxu0 0.0
    %1446 = vmatpush2.msra.mxu0 0.0
    %1447 = vmatprep.subr.mxu0 0.0
    %1448 = vmatpush2.msra.mxu0 0.0
    %1449 = vmatprep.subr.mxu0 0.0
    %1450 = vmatpush2.msra.mxu0 0.0
    %1451 = vmatprep.subr.mxu0 0.0
    %1452 = vmatpush2.msra.mxu0 0.0
    %1453 = vmatprep.subr.mxu0 0.0
    %1454 = vmatpush2.msra.mxu0 0.0
    %1455 = vmatprep.subr.mxu0 0.0
    %1456 = vmatpush2.msra.mxu0 0.0
    %1457 = vmatprep.subr.mxu0 0.0
    %1458 = vmatpush2.msra.mxu0 0.0
    %1459 = vmatprep.subr.mxu0 0.0
    %1460 = vmatpush2.msra.mxu0 0.0
    %1461 = vmatprep.subr.mxu0 0.0
    %1462 = vmatpush2.msra.mxu0 0.0
    %1463 = vmatprep.subr.mxu0 0.0
    %1464 = vmatpush2.msra.mxu0 0.0
    %1465 = vmatprep.subr.mxu0 0.0
    %1466 = vmatpush2.msra.mxu0 0.0
    %1467 = vmatprep.subr.mxu0 0.0
    %1468 = vmatpush2.msra.mxu0 0.0
    %1469 = vmatprep.subr.mxu0 0.0
    %1470 = vmatpush2.msra.mxu0 0.0
    %1471 = vmatprep.subr.mxu0 0.0
    %1472 = vmatpush2.msra.mxu0 0.0
    %1473 = vmatprep.mubr.f32.mxu0 0.0
    %1474 = vmatmul.mubr.f32.gmra.mxu0 %v1407
    %v1475 = vpop.f32.mrf.mxu0
    %v1476 = vadd.f32 0.0, %v1475
    %v1477 = vpop.f32.mrf.mxu0
    %1478 = vdwg.mxu0
    %v1479 = vadd.f32 %v239, %v1476
    %v1480 = vxor.u32 %v1479, 2147483648
    %v1481 = vmul.f32 %v1480, 1.442695
    %v1482 = vpow.pop %v1481
    %v1483 = vadd.f32 %v1482, 1.0
    %v1484 = vrcp.pop %v1483
    %v1485 = vmul.f32 1.0, %v1484
    %v1486 = vtanh.pop %v1479
    %v1488 = vrot.slane %v1213, 6
    %v1490 = vmul.f32 %v1485, %v1488
    %1492 = vrot.lane.b32.xlu0 %v1486, 64
    %v1493 = vpop.permute.xlu0 %1492
    %v1495 = vmul.f32 %v1485, %v1493
    %1497 = vrot.lane.b32.xlu0 %v1495, 32
    %v1498 = vpop.permute.xlu0 %1497
    %v1500 = vadd.f32 %v1490, %v1498
    %v1501 = vtanh.pop %v1500
    %1503 = vrot.lane.b32.xlu0 %v1501, 64
    %v1504 = vpop.permute.xlu0 %1503
    %v1506 = vmul.f32 %v1485, %v1504
    %1507 = vrot.lane.b32.xlu0 %v1322, 32
    %v1508 = vpop.permute.xlu0 %1507
    %v1509 = vsel %vm159, %v1508, 0
    %1511 = vmatprep.subr.mxu0 0.0
    %1512 = vmatpush1.msra.mxu0 0.0
    %1513 = vmatprep.subr.mxu0 0.0
    %1514 = vmatpush1.msra.mxu0 0.0
    %1515 = vmatprep.subr.mxu0 0.0
    %1516 = vmatpush1.msra.mxu0 0.0
    %1517 = vmatprep.subr.mxu0 0.0
    %1518 = vmatpush1.msra.mxu0 0.0
    %1519 = vmatprep.subr.mxu0 0.0
    %1520 = vmatpush1.msra.mxu0 0.0
    %1521 = vmatprep.subr.mxu0 0.0
    %1522 = vmatpush1.msra.mxu0 0.0
    %1523 = vmatprep.subr.mxu0 0.0
    %1524 = vmatpush1.msra.mxu0 0.0
    %1525 = vmatprep.subr.mxu0 0.0
    %1526 = vmatpush1.msra.mxu0 0.0
    %1527 = vmatprep.subr.mxu0 0.0
    %1528 = vmatpush1.msra.mxu0 0.0
    %1529 = vmatprep.subr.mxu0 0.0
    %1530 = vmatpush1.msra.mxu0 0.0
    %1531 = vmatprep.subr.mxu0 0.0
    %1532 = vmatpush1.msra.mxu0 0.0
    %1533 = vmatprep.subr.mxu0 0.0
    %1534 = vmatpush1.msra.mxu0 0.0
    %1535 = vmatprep.subr.mxu0 0.0
    %1536 = vmatpush1.msra.mxu0 %v250
    %1537 = vmatprep.subr.mxu0 0.0
    %1538 = vmatpush1.msra.mxu0 %v249
    %1539 = vmatprep.subr.mxu0 0.0
    %1540 = vmatpush1.msra.mxu0 %v248
    %1541 = vmatprep.subr.mxu0 0.0
    %1542 = vmatpush1.msra.mxu0 %v247
    %1543 = vmatprep.subr.mxu0 0.0
    %1544 = vmatpush2.msra.mxu0 0.0
    %1545 = vmatprep.subr.mxu0 0.0
    %1546 = vmatpush2.msra.mxu0 0.0
    %1547 = vmatprep.subr.mxu0 0.0
    %1548 = vmatpush2.msra.mxu0 0.0
    %1549 = vmatprep.subr.mxu0 0.0
    %1550 = vmatpush2.msra.mxu0 0.0
    %1551 = vmatprep.subr.mxu0 0.0
    %1552 = vmatpush2.msra.mxu0 0.0
    %1553 = vmatprep.subr.mxu0 0.0
    %1554 = vmatpush2.msra.mxu0 0.0
    %1555 = vmatprep.subr.mxu0 0.0
    %1556 = vmatpush2.msra.mxu0 0.0
    %1557 = vmatprep.subr.mxu0 0.0
    %1558 = vmatpush2.msra.mxu0 0.0
    %1559 = vmatprep.subr.mxu0 0.0
    %1560 = vmatpush2.msra.mxu0 0.0
    %1561 = vmatprep.subr.mxu0 0.0
    %1562 = vmatpush2.msra.mxu0 0.0
    %1563 = vmatprep.subr.mxu0 0.0
    %1564 = vmatpush2.msra.mxu0 0.0
    %1565 = vmatprep.subr.mxu0 0.0
    %1566 = vmatpush2.msra.mxu0 0.0
    %1567 = vmatprep.subr.mxu0 0.0
    %1568 = vmatpush2.msra.mxu0 0.0
    %1569 = vmatprep.subr.mxu0 0.0
    %1570 = vmatpush2.msra.mxu0 0.0
    %1571 = vmatprep.subr.mxu0 0.0
    %1572 = vmatpush2.msra.mxu0 0.0
    %1573 = vmatprep.subr.mxu0 0.0
    %1574 = vmatpush2.msra.mxu0 0.0
    %1575 = vmatprep.mubr.f32.mxu0 0.0
    %1576 = vmatmul.mubr.f32.gmra.mxu0 %v1509
    %v1577 = vpop.f32.mrf.mxu0
    %v1578 = vadd.f32 0.0, %v1577
    %v1579 = vpop.f32.mrf.mxu0
    %1580 = vdwg.mxu0
    %v1582 = vrot.slane %v1578, 2
    %v1584 = vadd.f32 %v235, %v1582
    %v1585 = vxor.u32 %v1584, 2147483648
    %v1586 = vmul.f32 %v1585, 1.442695
    %v1587 = vpow.pop %v1586
    %v1588 = vadd.f32 %v1587, 1.0
    %v1589 = vrcp.pop %v1588
    %v1590 = vmul.f32 1.0, %v1589
    %v1591 = vtanh.pop %v1584
    %v1593 = vrot.slane %v1316, 2
    %v1595 = vmul.f32 %v1590, %v1593
    %1597 = vrot.lane.b32.xlu0 %v1591, 64
    %v1598 = vpop.permute.xlu0 %1597
    %v1600 = vmul.f32 %v1590, %v1598
    %1602 = vrot.lane.b32.xlu0 %v1600, 32
    %v1603 = vpop.permute.xlu0 %1602
    %v1605 = vadd.f32 %v1595, %v1603
    %v1606 = vtanh.pop %v1605
    %1608 = vrot.lane.b32.xlu0 %v1606, 64
    %v1609 = vpop.permute.xlu0 %1608
    %v1611 = vmul.f32 %v1590, %v1609
    %v1614 = vunpack.c.l.s4 1966171168
    %v1615 = vunpack.c.0.s8 %v1614
    %v1616 = vlaneseq
    %v1617 = vshrl.u32 %v1616, 7
    %v1618 = vsub.s32 %v1615, %v1617
    %v1619 = vrot.slane %v1506, %v1618
    %v1620 = vcombine.high %v1619, %v1619
    %v1622 = vunpack.c.l.s4 1966171168
    %v1623 = vunpack.c.0.s8 %v1622
    %v1624 = vlaneseq
    %v1625 = vshrl.u32 %v1624, 7
    %v1626 = vsub.s32 %v1623, %v1625
    %v1627 = vrot.slane %v1619, %v1626
    %v1629 = vunpack.c.l.s4 1966171168
    %v1630 = vunpack.c.0.s8 %v1629
    %v1631 = vlaneseq
    %v1632 = vshrl.u32 %v1631, 7
    %v1633 = vsub.s32 %v1630, %v1632
    %v1634 = vrot.slane %v1620, %v1633
    %v1635 = vlaneseq
    %v1636 = vshrl.u32 %v1635, 7
    %v1637 = vsub.s32 0, %v1636
    %v1638 = vrot.slane %v1627, %v1637
    %v1639 = vlaneseq
    %v1640 = vshrl.u32 %v1639, 7
    %v1641 = vsub.s32 0, %v1640
    %v1642 = vrot.slane %v1634, %v1641
    %1643 = vrot.lane.b32.xlu0 %v1638, 32
    %v1644 = vpop.permute.xlu0 %1643
    %1645 = vrot.lane.b32.xlu0 %v1642, 32
    %v1646 = vpop.permute.xlu0 %1645
    %1649 = vst.msk [vmem:[#allocation2 + $0x4] sm:$0x1] %vm484, %v1644
    %1650 = vst.msk [vmem:[#allocation2 + $0xc] sm:$0x1] %vm484, %v1646
    %v1652 = vcombine.high %v1611, %v1611
    %v1654 = vunpack.c.l.s4 1966171168
    %v1655 = vunpack.c.0.s8 %v1654
    %v1656 = vlaneseq
    %v1657 = vshrl.u32 %v1656, 7
    %v1658 = vsub.s32 %v1655, %v1657
    %v1659 = vrot.slane %v1652, %v1658
    %v1660 = vcombine.high %v1659, %v1659
    %v1662 = vunpack.c.l.s4 1966171168
    %v1663 = vunpack.c.0.s8 %v1662
    %v1664 = vlaneseq
    %v1665 = vshrl.u32 %v1664, 7
    %v1666 = vsub.s32 %v1663, %v1665
    %v1667 = vrot.slane %v1659, %v1666
    %v1669 = vunpack.c.l.s4 1966171168
    %v1670 = vunpack.c.0.s8 %v1669
    %v1671 = vlaneseq
    %v1672 = vshrl.u32 %v1671, 7
    %v1673 = vsub.s32 %v1670, %v1672
    %v1674 = vrot.slane %v1660, %v1673
    %v1675 = vcombine.high %v1667, %v1667
    %v1676 = vcombine.high %v1674, %v1674
    %v1677 = vlaneseq
    %v1678 = vshrl.u32 %v1677, 7
    %v1679 = vsub.s32 0, %v1678
    %v1680 = vrot.slane %v1675, %v1679
    %v1681 = vlaneseq
    %v1682 = vshrl.u32 %v1681, 7
    %v1683 = vsub.s32 0, %v1682
    %v1684 = vrot.slane %v1676, %v1683
    %1685 = vrot.lane.b32.xlu0 %v1680, 32
    %v1686 = vpop.permute.xlu0 %1685
    %1687 = vrot.lane.b32.xlu0 %v1684, 32
    %v1688 = vpop.permute.xlu0 %1687
    %1691 = vst.msk [vmem:[#allocation3 + $0x3] sm:$0x1] %vm484, %v1686
    %1692 = vst.msk [vmem:[#allocation3 + $0xb] sm:$0x1] %vm484, %v1688
    %1693 = vrot.lane.b32.xlu0 %v1506, 32
    %v1694 = vpop.permute.xlu0 %1693
    %v1695 = vsel %vm159, %v1694, 0
    %1697 = vmatprep.subr.mxu0 0.0
    %1698 = vmatpush1.msra.mxu0 0.0
    %1699 = vmatprep.subr.mxu0 0.0
    %1700 = vmatpush1.msra.mxu0 0.0
    %1701 = vmatprep.subr.mxu0 0.0
    %1702 = vmatpush1.msra.mxu0 0.0
    %1703 = vmatprep.subr.mxu0 0.0
    %1704 = vmatpush1.msra.mxu0 0.0
    %1705 = vmatprep.subr.mxu0 0.0
    %1706 = vmatpush1.msra.mxu0 0.0
    %1707 = vmatprep.subr.mxu0 0.0
    %1708 = vmatpush1.msra.mxu0 0.0
    %1709 = vmatprep.subr.mxu0 0.0
    %1710 = vmatpush1.msra.mxu0 0.0
    %1711 = vmatprep.subr.mxu0 0.0
    %1712 = vmatpush1.msra.mxu0 0.0
    %1713 = vmatprep.subr.mxu0 0.0
    %1714 = vmatpush1.msra.mxu0 0.0
    %1715 = vmatprep.subr.mxu0 0.0
    %1716 = vmatpush1.msra.mxu0 0.0
    %1717 = vmatprep.subr.mxu0 0.0
    %1718 = vmatpush1.msra.mxu0 0.0
    %1719 = vmatprep.subr.mxu0 0.0
    %1720 = vmatpush1.msra.mxu0 0.0
    %1721 = vmatprep.subr.mxu0 0.0
    %1722 = vmatpush1.msra.mxu0 %v246
    %1723 = vmatprep.subr.mxu0 0.0
    %1724 = vmatpush1.msra.mxu0 %v245
    %1725 = vmatprep.subr.mxu0 0.0
    %1726 = vmatpush1.msra.mxu0 %v244
    %1727 = vmatprep.subr.mxu0 0.0
    %1728 = vmatpush1.msra.mxu0 %v243
    %1729 = vmatprep.subr.mxu0 0.0
    %1730 = vmatpush2.msra.mxu0 0.0
    %1731 = vmatprep.subr.mxu0 0.0
    %1732 = vmatpush2.msra.mxu0 0.0
    %1733 = vmatprep.subr.mxu0 0.0
    %1734 = vmatpush2.msra.mxu0 0.0
    %1735 = vmatprep.subr.mxu0 0.0
    %1736 = vmatpush2.msra.mxu0 0.0
    %1737 = vmatprep.subr.mxu0 0.0
    %1738 = vmatpush2.msra.mxu0 0.0
    %1739 = vmatprep.subr.mxu0 0.0
    %1740 = vmatpush2.msra.mxu0 0.0
    %1741 = vmatprep.subr.mxu0 0.0
    %1742 = vmatpush2.msra.mxu0 0.0
    %1743 = vmatprep.subr.mxu0 0.0
    %1744 = vmatpush2.msra.mxu0 0.0
    %1745 = vmatprep.subr.mxu0 0.0
    %1746 = vmatpush2.msra.mxu0 0.0
    %1747 = vmatprep.subr.mxu0 0.0
    %1748 = vmatpush2.msra.mxu0 0.0
    %1749 = vmatprep.subr.mxu0 0.0
    %1750 = vmatpush2.msra.mxu0 0.0
    %1751 = vmatprep.subr.mxu0 0.0
    %1752 = vmatpush2.msra.mxu0 0.0
    %1753 = vmatprep.subr.mxu0 0.0
    %1754 = vmatpush2.msra.mxu0 0.0
    %1755 = vmatprep.subr.mxu0 0.0
    %1756 = vmatpush2.msra.mxu0 0.0
    %1757 = vmatprep.subr.mxu0 0.0
    %1758 = vmatpush2.msra.mxu0 0.0
    %1759 = vmatprep.subr.mxu0 0.0
    %1760 = vmatpush2.msra.mxu0 0.0
    %1761 = vmatprep.mubr.f32.mxu0 0.0
    %1762 = vmatmul.mubr.f32.gmra.mxu0 %v1695
    %v1763 = vpop.f32.mrf.mxu0
    %v1764 = vadd.f32 0.0, %v1763
    %v1765 = vpop.f32.mrf.mxu0
    %1766 = vdwg.mxu0
    %v1768 = vrot.slane %v1764, 6
    %v1770 = vadd.f32 %v239, %v1768
    %v1771 = vxor.u32 %v1770, 2147483648
    %v1772 = vmul.f32 %v1771, 1.442695
    %v1773 = vpow.pop %v1772
    %v1774 = vadd.f32 %v1773, 1.0
    %v1775 = vrcp.pop %v1774
    %v1776 = vmul.f32 1.0, %v1775
    %v1777 = vtanh.pop %v1770
    %v1779 = vrot.slane %v1500, 6
    %v1781 = vmul.f32 %v1776, %v1779
    %1783 = vrot.lane.b32.xlu0 %v1777, 64
    %v1784 = vpop.permute.xlu0 %1783
    %v1786 = vmul.f32 %v1776, %v1784
    %1788 = vrot.lane.b32.xlu0 %v1786, 32
    %v1789 = vpop.permute.xlu0 %1788
    %v1791 = vadd.f32 %v1781, %v1789
    %v1792 = vtanh.pop %v1791
    %1794 = vrot.lane.b32.xlu0 %v1792, 64
    %v1795 = vpop.permute.xlu0 %1794
    %v1797 = vmul.f32 %v1776, %v1795
    %v1798 = vrot.slane %v1611, 6
    %1799 = vrot.lane.b32.xlu0 %v1798, 32
    %v1800 = vpop.permute.xlu0 %1799
    %v1801 = vsel %vm159, %v1800, 0
    %1803 = vmatprep.subr.mxu0 0.0
    %1804 = vmatpush1.msra.mxu0 0.0
    %1805 = vmatprep.subr.mxu0 0.0
    %1806 = vmatpush1.msra.mxu0 0.0
    %1807 = vmatprep.subr.mxu0 0.0
    %1808 = vmatpush1.msra.mxu0 0.0
    %1809 = vmatprep.subr.mxu0 0.0
    %1810 = vmatpush1.msra.mxu0 0.0
    %1811 = vmatprep.subr.mxu0 0.0
    %1812 = vmatpush1.msra.mxu0 0.0
    %1813 = vmatprep.subr.mxu0 0.0
    %1814 = vmatpush1.msra.mxu0 0.0
    %1815 = vmatprep.subr.mxu0 0.0
    %1816 = vmatpush1.msra.mxu0 0.0
    %1817 = vmatprep.subr.mxu0 0.0
    %1818 = vmatpush1.msra.mxu0 0.0
    %1819 = vmatprep.subr.mxu0 0.0
    %1820 = vmatpush1.msra.mxu0 0.0
    %1821 = vmatprep.subr.mxu0 0.0
    %1822 = vmatpush1.msra.mxu0 0.0
    %1823 = vmatprep.subr.mxu0 0.0
    %1824 = vmatpush1.msra.mxu0 0.0
    %1825 = vmatprep.subr.mxu0 0.0
    %1826 = vmatpush1.msra.mxu0 0.0
    %1827 = vmatprep.subr.mxu0 0.0
    %1828 = vmatpush1.msra.mxu0 %v250
    %1829 = vmatprep.subr.mxu0 0.0
    %1830 = vmatpush1.msra.mxu0 %v249
    %1831 = vmatprep.subr.mxu0 0.0
    %1832 = vmatpush1.msra.mxu0 %v248
    %1833 = vmatprep.subr.mxu0 0.0
    %1834 = vmatpush1.msra.mxu0 %v247
    %1835 = vmatprep.subr.mxu0 0.0
    %1836 = vmatpush2.msra.mxu0 0.0
    %1837 = vmatprep.subr.mxu0 0.0
    %1838 = vmatpush2.msra.mxu0 0.0
    %1839 = vmatprep.subr.mxu0 0.0
    %1840 = vmatpush2.msra.mxu0 0.0
    %1841 = vmatprep.subr.mxu0 0.0
    %1842 = vmatpush2.msra.mxu0 0.0
    %1843 = vmatprep.subr.mxu0 0.0
    %1844 = vmatpush2.msra.mxu0 0.0
    %1845 = vmatprep.subr.mxu0 0.0
    %1846 = vmatpush2.msra.mxu0 0.0
    %1847 = vmatprep.subr.mxu0 0.0
    %1848 = vmatpush2.msra.mxu0 0.0
    %1849 = vmatprep.subr.mxu0 0.0
    %1850 = vmatpush2.msra.mxu0 0.0
    %1851 = vmatprep.subr.mxu0 0.0
    %1852 = vmatpush2.msra.mxu0 0.0
    %1853 = vmatprep.subr.mxu0 0.0
    %1854 = vmatpush2.msra.mxu0 0.0
    %1855 = vmatprep.subr.mxu0 0.0
    %1856 = vmatpush2.msra.mxu0 0.0
    %1857 = vmatprep.subr.mxu0 0.0
    %1858 = vmatpush2.msra.mxu0 0.0
    %1859 = vmatprep.subr.mxu0 0.0
    %1860 = vmatpush2.msra.mxu0 0.0
    %1861 = vmatprep.subr.mxu0 0.0
    %1862 = vmatpush2.msra.mxu0 0.0
    %1863 = vmatprep.subr.mxu0 0.0
    %1864 = vmatpush2.msra.mxu0 0.0
    %1865 = vmatprep.subr.mxu0 0.0
    %1866 = vmatpush2.msra.mxu0 0.0
    %1867 = vmatprep.mubr.f32.mxu0 0.0
    %1868 = vmatmul.mubr.f32.gmra.mxu0 %v1801
    %v1869 = vpop.f32.mrf.mxu0
    %v1870 = vadd.f32 0.0, %v1869
    %v1871 = vpop.f32.mrf.mxu0
    %1872 = vdwg.mxu0
    %v1874 = vrot.slane %v1870, 4
    %v1876 = vadd.f32 %v235, %v1874
    %v1877 = vxor.u32 %v1876, 2147483648
    %v1878 = vmul.f32 %v1877, 1.442695
    %v1879 = vpow.pop %v1878
    %v1880 = vadd.f32 %v1879, 1.0
    %v1881 = vrcp.pop %v1880
    %v1882 = vmul.f32 1.0, %v1881
    %v1883 = vtanh.pop %v1876
    %v1885 = vrot.slane %v1605, 2
    %v1887 = vmul.f32 %v1882, %v1885
    %1889 = vrot.lane.b32.xlu0 %v1883, 64
    %v1890 = vpop.permute.xlu0 %1889
    %v1892 = vmul.f32 %v1882, %v1890
    %1894 = vrot.lane.b32.xlu0 %v1892, 32
    %v1895 = vpop.permute.xlu0 %1894
    %v1897 = vadd.f32 %v1887, %v1895
    %v1898 = vtanh.pop %v1897
    %1900 = vrot.lane.b32.xlu0 %v1898, 64
    %v1901 = vpop.permute.xlu0 %1900
    %v1903 = vmul.f32 %v1882, %v1901
    %v1906 = vunpack.c.l.s4 1966171168
    %v1907 = vunpack.c.0.s8 %v1906
    %v1908 = vlaneseq
    %v1909 = vshrl.u32 %v1908, 7
    %v1910 = vsub.s32 %v1907, %v1909
    %v1911 = vrot.slane %v1797, %v1910
    %v1912 = vcombine.high %v1911, %v1911
    %v1914 = vunpack.c.l.s4 1966171168
    %v1915 = vunpack.c.0.s8 %v1914
    %v1916 = vlaneseq
    %v1917 = vshrl.u32 %v1916, 7
    %v1918 = vsub.s32 %v1915, %v1917
    %v1919 = vrot.slane %v1911, %v1918
    %v1921 = vunpack.c.l.s4 1966171168
    %v1922 = vunpack.c.0.s8 %v1921
    %v1923 = vlaneseq
    %v1924 = vshrl.u32 %v1923, 7
    %v1925 = vsub.s32 %v1922, %v1924
    %v1926 = vrot.slane %v1912, %v1925
    %v1927 = vcombine.high %v1919, %v1919
    %v1928 = vcombine.high %v1926, %v1926
    %v1929 = vlaneseq
    %v1930 = vshrl.u32 %v1929, 7
    %v1931 = vsub.s32 0, %v1930
    %v1932 = vrot.slane %v1927, %v1931
    %v1933 = vlaneseq
    %v1934 = vshrl.u32 %v1933, 7
    %v1935 = vsub.s32 0, %v1934
    %v1936 = vrot.slane %v1928, %v1935
    %1937 = vrot.lane.b32.xlu0 %v1932, 32
    %v1938 = vpop.permute.xlu0 %1937
    %1939 = vrot.lane.b32.xlu0 %v1936, 32
    %v1940 = vpop.permute.xlu0 %1939
    %1943 = vst.msk [vmem:[#allocation2 + $0x5] sm:$0x1] %vm484, %v1938
    %1944 = vst.msk [vmem:[#allocation2 + $0xd] sm:$0x1] %vm484, %v1940
    %v1946 = vcombine.high %v1903, %v1903
    %v1948 = vunpack.c.l.s4 1966171168
    %v1949 = vunpack.c.0.s8 %v1948
    %v1950 = vlaneseq
    %v1951 = vshrl.u32 %v1950, 7
    %v1952 = vsub.s32 %v1949, %v1951
    %v1953 = vrot.slane %v1946, %v1952
    %v1954 = vcombine.high %v1953, %v1953
    %v1956 = vunpack.c.l.s4 1966171168
    %v1957 = vunpack.c.0.s8 %v1956
    %v1958 = vlaneseq
    %v1959 = vshrl.u32 %v1958, 7
    %v1960 = vsub.s32 %v1957, %v1959
    %v1961 = vrot.slane %v1953, %v1960
    %v1963 = vunpack.c.l.s4 1966171168
    %v1964 = vunpack.c.0.s8 %v1963
    %v1965 = vlaneseq
    %v1966 = vshrl.u32 %v1965, 7
    %v1967 = vsub.s32 %v1964, %v1966
    %v1968 = vrot.slane %v1954, %v1967
    %v1969 = vlaneseq
    %v1970 = vshrl.u32 %v1969, 7
    %v1971 = vsub.s32 0, %v1970
    %v1972 = vrot.slane %v1961, %v1971
    %v1973 = vlaneseq
    %v1974 = vshrl.u32 %v1973, 7
    %v1975 = vsub.s32 0, %v1974
    %v1976 = vrot.slane %v1968, %v1975
    %1977 = vrot.lane.b32.xlu0 %v1972, 32
    %v1978 = vpop.permute.xlu0 %1977
    %1979 = vrot.lane.b32.xlu0 %v1976, 32
    %v1980 = vpop.permute.xlu0 %1979
    %1983 = vst.msk [vmem:[#allocation3 + $0x2] sm:$0x1] %vm484, %v1978
    %1984 = vst.msk [vmem:[#allocation3 + $0xa] sm:$0x1] %vm484, %v1980
    %v1985 = vrot.slane %v1797, 2
    %1986 = vrot.lane.b32.xlu0 %v1985, 32
    %v1987 = vpop.permute.xlu0 %1986
    %v1988 = vsel %vm159, %v1987, 0
    %1990 = vmatprep.subr.mxu0 0.0
    %1991 = vmatpush1.msra.mxu0 0.0
    %1992 = vmatprep.subr.mxu0 0.0
    %1993 = vmatpush1.msra.mxu0 0.0
    %1994 = vmatprep.subr.mxu0 0.0
    %1995 = vmatpush1.msra.mxu0 0.0
    %1996 = vmatprep.subr.mxu0 0.0
    %1997 = vmatpush1.msra.mxu0 0.0
    %1998 = vmatprep.subr.mxu0 0.0
    %1999 = vmatpush1.msra.mxu0 0.0
    %2000 = vmatprep.subr.mxu0 0.0
    %2001 = vmatpush1.msra.mxu0 0.0
    %2002 = vmatprep.subr.mxu0 0.0
    %2003 = vmatpush1.msra.mxu0 0.0
    %2004 = vmatprep.subr.mxu0 0.0
    %2005 = vmatpush1.msra.mxu0 0.0
    %2006 = vmatprep.subr.mxu0 0.0
    %2007 = vmatpush1.msra.mxu0 0.0
    %2008 = vmatprep.subr.mxu0 0.0
    %2009 = vmatpush1.msra.mxu0 0.0
    %2010 = vmatprep.subr.mxu0 0.0
    %2011 = vmatpush1.msra.mxu0 0.0
    %2012 = vmatprep.subr.mxu0 0.0
    %2013 = vmatpush1.msra.mxu0 0.0
    %2014 = vmatprep.subr.mxu0 0.0
    %2015 = vmatpush1.msra.mxu0 %v246
    %2016 = vmatprep.subr.mxu0 0.0
    %2017 = vmatpush1.msra.mxu0 %v245
    %2018 = vmatprep.subr.mxu0 0.0
    %2019 = vmatpush1.msra.mxu0 %v244
    %2020 = vmatprep.subr.mxu0 0.0
    %2021 = vmatpush1.msra.mxu0 %v243
    %2022 = vmatprep.subr.mxu0 0.0
    %2023 = vmatpush2.msra.mxu0 0.0
    %2024 = vmatprep.subr.mxu0 0.0
    %2025 = vmatpush2.msra.mxu0 0.0
    %2026 = vmatprep.subr.mxu0 0.0
    %2027 = vmatpush2.msra.mxu0 0.0
    %2028 = vmatprep.subr.mxu0 0.0
    %2029 = vmatpush2.msra.mxu0 0.0
    %2030 = vmatprep.subr.mxu0 0.0
    %2031 = vmatpush2.msra.mxu0 0.0
    %2032 = vmatprep.subr.mxu0 0.0
    %2033 = vmatpush2.msra.mxu0 0.0
    %2034 = vmatprep.subr.mxu0 0.0
    %2035 = vmatpush2.msra.mxu0 0.0
    %2036 = vmatprep.subr.mxu0 0.0
    %2037 = vmatpush2.msra.mxu0 0.0
    %2038 = vmatprep.subr.mxu0 0.0
    %2039 = vmatpush2.msra.mxu0 0.0
    %2040 = vmatprep.subr.mxu0 0.0
    %2041 = vmatpush2.msra.mxu0 0.0
    %2042 = vmatprep.subr.mxu0 0.0
    %2043 = vmatpush2.msra.mxu0 0.0
    %2044 = vmatprep.subr.mxu0 0.0
    %2045 = vmatpush2.msra.mxu0 0.0
    %2046 = vmatprep.subr.mxu0 0.0
    %2047 = vmatpush2.msra.mxu0 0.0
    %2048 = vmatprep.subr.mxu0 0.0
    %2049 = vmatpush2.msra.mxu0 0.0
    %2050 = vmatprep.subr.mxu0 0.0
    %2051 = vmatpush2.msra.mxu0 0.0
    %2052 = vmatprep.subr.mxu0 0.0
    %2053 = vmatpush2.msra.mxu0 0.0
    %2054 = vmatprep.mubr.f32.mxu0 0.0
    %2055 = vmatmul.mubr.f32.gmra.mxu0 %v1988
    %v2056 = vpop.f32.mrf.mxu0
    %v2057 = vadd.f32 0.0, %v2056
    %v2058 = vpop.f32.mrf.mxu0
    %2059 = vdwg.mxu0
    %v2061 = vrot.slane %v2057, 4
    %v2063 = vadd.f32 %v239, %v2061
    %v2064 = vxor.u32 %v2063, 2147483648
    %v2065 = vmul.f32 %v2064, 1.442695
    %v2066 = vpow.pop %v2065
    %v2067 = vadd.f32 %v2066, 1.0
    %v2068 = vrcp.pop %v2067
    %v2069 = vmul.f32 1.0, %v2068
    %v2070 = vtanh.pop %v2063
    %v2072 = vrot.slane %v1791, 6
    %v2074 = vmul.f32 %v2069, %v2072
    %2076 = vrot.lane.b32.xlu0 %v2070, 64
    %v2077 = vpop.permute.xlu0 %2076
    %v2079 = vmul.f32 %v2069, %v2077
    %2081 = vrot.lane.b32.xlu0 %v2079, 32
    %v2082 = vpop.permute.xlu0 %2081
    %v2084 = vadd.f32 %v2074, %v2082
    %v2085 = vtanh.pop %v2084
    %2087 = vrot.lane.b32.xlu0 %v2085, 64
    %v2088 = vpop.permute.xlu0 %2087
    %v2090 = vmul.f32 %v2069, %v2088
    %v2091 = vrot.slane %v1903, 4
    %2092 = vrot.lane.b32.xlu0 %v2091, 32
    %v2093 = vpop.permute.xlu0 %2092
    %v2094 = vsel %vm159, %v2093, 0
    %2096 = vmatprep.subr.mxu0 0.0
    %2097 = vmatpush1.msra.mxu0 0.0
    %2098 = vmatprep.subr.mxu0 0.0
    %2099 = vmatpush1.msra.mxu0 0.0
    %2100 = vmatprep.subr.mxu0 0.0
    %2101 = vmatpush1.msra.mxu0 0.0
    %2102 = vmatprep.subr.mxu0 0.0
    %2103 = vmatpush1.msra.mxu0 0.0
    %2104 = vmatprep.subr.mxu0 0.0
    %2105 = vmatpush1.msra.mxu0 0.0
    %2106 = vmatprep.subr.mxu0 0.0
    %2107 = vmatpush1.msra.mxu0 0.0
    %2108 = vmatprep.subr.mxu0 0.0
    %2109 = vmatpush1.msra.mxu0 0.0
    %2110 = vmatprep.subr.mxu0 0.0
    %2111 = vmatpush1.msra.mxu0 0.0
    %2112 = vmatprep.subr.mxu0 0.0
    %2113 = vmatpush1.msra.mxu0 0.0
    %2114 = vmatprep.subr.mxu0 0.0
    %2115 = vmatpush1.msra.mxu0 0.0
    %2116 = vmatprep.subr.mxu0 0.0
    %2117 = vmatpush1.msra.mxu0 0.0
    %2118 = vmatprep.subr.mxu0 0.0
    %2119 = vmatpush1.msra.mxu0 0.0
    %2120 = vmatprep.subr.mxu0 0.0
    %2121 = vmatpush1.msra.mxu0 %v250
    %2122 = vmatprep.subr.mxu0 0.0
    %2123 = vmatpush1.msra.mxu0 %v249
    %2124 = vmatprep.subr.mxu0 0.0
    %2125 = vmatpush1.msra.mxu0 %v248
    %2126 = vmatprep.subr.mxu0 0.0
    %2127 = vmatpush1.msra.mxu0 %v247
    %2128 = vmatprep.subr.mxu0 0.0
    %2129 = vmatpush2.msra.mxu0 0.0
    %2130 = vmatprep.subr.mxu0 0.0
    %2131 = vmatpush2.msra.mxu0 0.0
    %2132 = vmatprep.subr.mxu0 0.0
    %2133 = vmatpush2.msra.mxu0 0.0
    %2134 = vmatprep.subr.mxu0 0.0
    %2135 = vmatpush2.msra.mxu0 0.0
    %2136 = vmatprep.subr.mxu0 0.0
    %2137 = vmatpush2.msra.mxu0 0.0
    %2138 = vmatprep.subr.mxu0 0.0
    %2139 = vmatpush2.msra.mxu0 0.0
    %2140 = vmatprep.subr.mxu0 0.0
    %2141 = vmatpush2.msra.mxu0 0.0
    %2142 = vmatprep.subr.mxu0 0.0
    %2143 = vmatpush2.msra.mxu0 0.0
    %2144 = vmatprep.subr.mxu0 0.0
    %2145 = vmatpush2.msra.mxu0 0.0
    %2146 = vmatprep.subr.mxu0 0.0
    %2147 = vmatpush2.msra.mxu0 0.0
    %2148 = vmatprep.subr.mxu0 0.0
    %2149 = vmatpush2.msra.mxu0 0.0
    %2150 = vmatprep.subr.mxu0 0.0
    %2151 = vmatpush2.msra.mxu0 0.0
    %2152 = vmatprep.subr.mxu0 0.0
    %2153 = vmatpush2.msra.mxu0 0.0
    %2154 = vmatprep.subr.mxu0 0.0
    %2155 = vmatpush2.msra.mxu0 0.0
    %2156 = vmatprep.subr.mxu0 0.0
    %2157 = vmatpush2.msra.mxu0 0.0
    %2158 = vmatprep.subr.mxu0 0.0
    %2159 = vmatpush2.msra.mxu0 0.0
    %2160 = vmatprep.mubr.f32.mxu0 0.0
    %2161 = vmatmul.mubr.f32.gmra.mxu0 %v2094
    %v2162 = vpop.f32.mrf.mxu0
    %v2163 = vadd.f32 0.0, %v2162
    %v2164 = vpop.f32.mrf.mxu0
    %2165 = vdwg.mxu0
    %v2167 = vrot.slane %v2163, 6
    %v2169 = vadd.f32 %v235, %v2167
    %v2170 = vxor.u32 %v2169, 2147483648
    %v2171 = vmul.f32 %v2170, 1.442695
    %v2172 = vpow.pop %v2171
    %v2173 = vadd.f32 %v2172, 1.0
    %v2174 = vrcp.pop %v2173
    %v2175 = vmul.f32 1.0, %v2174
    %v2176 = vtanh.pop %v2169
    %v2178 = vrot.slane %v1897, 2
    %v2180 = vmul.f32 %v2175, %v2178
    %2182 = vrot.lane.b32.xlu0 %v2176, 64
    %v2183 = vpop.permute.xlu0 %2182
    %v2185 = vmul.f32 %v2175, %v2183
    %2187 = vrot.lane.b32.xlu0 %v2185, 32
    %v2188 = vpop.permute.xlu0 %2187
    %v2190 = vadd.f32 %v2180, %v2188
    %v2191 = vtanh.pop %v2190
    %2193 = vrot.lane.b32.xlu0 %v2191, 64
    %v2194 = vpop.permute.xlu0 %2193
    %v2196 = vmul.f32 %v2175, %v2194
    %v2198 = vcombine.high %v2090, %v2090
    %v2200 = vunpack.c.l.s4 1966171168
    %v2201 = vunpack.c.0.s8 %v2200
    %v2202 = vlaneseq
    %v2203 = vshrl.u32 %v2202, 7
    %v2204 = vsub.s32 %v2201, %v2203
    %v2205 = vrot.slane %v2198, %v2204
    %v2206 = vcombine.high %v2205, %v2205
    %v2208 = vunpack.c.l.s4 1966171168
    %v2209 = vunpack.c.0.s8 %v2208
    %v2210 = vlaneseq
    %v2211 = vshrl.u32 %v2210, 7
    %v2212 = vsub.s32 %v2209, %v2211
    %v2213 = vrot.slane %v2205, %v2212
    %v2215 = vunpack.c.l.s4 1966171168
    %v2216 = vunpack.c.0.s8 %v2215
    %v2217 = vlaneseq
    %v2218 = vshrl.u32 %v2217, 7
    %v2219 = vsub.s32 %v2216, %v2218
    %v2220 = vrot.slane %v2206, %v2219
    %v2221 = vlaneseq
    %v2222 = vshrl.u32 %v2221, 7
    %v2223 = vsub.s32 0, %v2222
    %v2224 = vrot.slane %v2213, %v2223
    %v2225 = vlaneseq
    %v2226 = vshrl.u32 %v2225, 7
    %v2227 = vsub.s32 0, %v2226
    %v2228 = vrot.slane %v2220, %v2227
    %2229 = vrot.lane.b32.xlu0 %v2224, 32
    %v2230 = vpop.permute.xlu0 %2229
    %2231 = vrot.lane.b32.xlu0 %v2228, 32
    %v2232 = vpop.permute.xlu0 %2231
    %2235 = vst.msk [vmem:[#allocation2 + $0x6] sm:$0x1] %vm484, %v2230
    %2236 = vst.msk [vmem:[#allocation2 + $0xe] sm:$0x1] %vm484, %v2232
    %v2239 = vunpack.c.l.s4 1966171168
    %v2240 = vunpack.c.0.s8 %v2239
    %v2241 = vlaneseq
    %v2242 = vshrl.u32 %v2241, 7
    %v2243 = vsub.s32 %v2240, %v2242
    %v2244 = vrot.slane %v2196, %v2243
    %v2245 = vcombine.high %v2244, %v2244
    %v2247 = vunpack.c.l.s4 1966171168
    %v2248 = vunpack.c.0.s8 %v2247
    %v2249 = vlaneseq
    %v2250 = vshrl.u32 %v2249, 7
    %v2251 = vsub.s32 %v2248, %v2250
    %v2252 = vrot.slane %v2244, %v2251
    %v2254 = vunpack.c.l.s4 1966171168
    %v2255 = vunpack.c.0.s8 %v2254
    %v2256 = vlaneseq
    %v2257 = vshrl.u32 %v2256, 7
    %v2258 = vsub.s32 %v2255, %v2257
    %v2259 = vrot.slane %v2245, %v2258
    %v2260 = vcombine.high %v2252, %v2252
    %v2261 = vcombine.high %v2259, %v2259
    %v2262 = vlaneseq
    %v2263 = vshrl.u32 %v2262, 7
    %v2264 = vsub.s32 0, %v2263
    %v2265 = vrot.slane %v2260, %v2264
    %v2266 = vlaneseq
    %v2267 = vshrl.u32 %v2266, 7
    %v2268 = vsub.s32 0, %v2267
    %v2269 = vrot.slane %v2261, %v2268
    %2270 = vrot.lane.b32.xlu0 %v2265, 32
    %v2271 = vpop.permute.xlu0 %2270
    %2272 = vrot.lane.b32.xlu0 %v2269, 32
    %v2273 = vpop.permute.xlu0 %2272
    %2276 = vst.msk [vmem:[#allocation3 + $0x1] sm:$0x1] %vm484, %v2271
    %2277 = vst.msk [vmem:[#allocation3 + $0x9] sm:$0x1] %vm484, %v2273
    %v2278 = vrot.slane %v2090, 4
    %2279 = vrot.lane.b32.xlu0 %v2278, 32
    %v2280 = vpop.permute.xlu0 %2279
    %v2281 = vsel %vm159, %v2280, 0
    %2283 = vmatprep.subr.mxu0 0.0
    %2284 = vmatpush1.msra.mxu0 0.0
    %2285 = vmatprep.subr.mxu0 0.0
    %2286 = vmatpush1.msra.mxu0 0.0
    %2287 = vmatprep.subr.mxu0 0.0
    %2288 = vmatpush1.msra.mxu0 0.0
    %2289 = vmatprep.subr.mxu0 0.0
    %2290 = vmatpush1.msra.mxu0 0.0
    %2291 = vmatprep.subr.mxu0 0.0
    %2292 = vmatpush1.msra.mxu0 0.0
    %2293 = vmatprep.subr.mxu0 0.0
    %2294 = vmatpush1.msra.mxu0 0.0
    %2295 = vmatprep.subr.mxu0 0.0
    %2296 = vmatpush1.msra.mxu0 0.0
    %2297 = vmatprep.subr.mxu0 0.0
    %2298 = vmatpush1.msra.mxu0 0.0
    %2299 = vmatprep.subr.mxu0 0.0
    %2300 = vmatpush1.msra.mxu0 0.0
    %2301 = vmatprep.subr.mxu0 0.0
    %2302 = vmatpush1.msra.mxu0 0.0
    %2303 = vmatprep.subr.mxu0 0.0
    %2304 = vmatpush1.msra.mxu0 0.0
    %2305 = vmatprep.subr.mxu0 0.0
    %2306 = vmatpush1.msra.mxu0 0.0
    %2307 = vmatprep.subr.mxu0 0.0
    %2308 = vmatpush1.msra.mxu0 %v246
    %2309 = vmatprep.subr.mxu0 0.0
    %2310 = vmatpush1.msra.mxu0 %v245
    %2311 = vmatprep.subr.mxu0 0.0
    %2312 = vmatpush1.msra.mxu0 %v244
    %2313 = vmatprep.subr.mxu0 0.0
    %2314 = vmatpush1.msra.mxu0 %v243
    %2315 = vmatprep.subr.mxu0 0.0
    %2316 = vmatpush2.msra.mxu0 0.0
    %2317 = vmatprep.subr.mxu0 0.0
    %2318 = vmatpush2.msra.mxu0 0.0
    %2319 = vmatprep.subr.mxu0 0.0
    %2320 = vmatpush2.msra.mxu0 0.0
    %2321 = vmatprep.subr.mxu0 0.0
    %2322 = vmatpush2.msra.mxu0 0.0
    %2323 = vmatprep.subr.mxu0 0.0
    %2324 = vmatpush2.msra.mxu0 0.0
    %2325 = vmatprep.subr.mxu0 0.0
    %2326 = vmatpush2.msra.mxu0 0.0
    %2327 = vmatprep.subr.mxu0 0.0
    %2328 = vmatpush2.msra.mxu0 0.0
    %2329 = vmatprep.subr.mxu0 0.0
    %2330 = vmatpush2.msra.mxu0 0.0
    %2331 = vmatprep.subr.mxu0 0.0
    %2332 = vmatpush2.msra.mxu0 0.0
    %2333 = vmatprep.subr.mxu0 0.0
    %2334 = vmatpush2.msra.mxu0 0.0
    %2335 = vmatprep.subr.mxu0 0.0
    %2336 = vmatpush2.msra.mxu0 0.0
    %2337 = vmatprep.subr.mxu0 0.0
    %2338 = vmatpush2.msra.mxu0 0.0
    %2339 = vmatprep.subr.mxu0 0.0
    %2340 = vmatpush2.msra.mxu0 0.0
    %2341 = vmatprep.subr.mxu0 0.0
    %2342 = vmatpush2.msra.mxu0 0.0
    %2343 = vmatprep.subr.mxu0 0.0
    %2344 = vmatpush2.msra.mxu0 0.0
    %2345 = vmatprep.subr.mxu0 0.0
    %2346 = vmatpush2.msra.mxu0 0.0
    %2347 = vmatprep.mubr.f32.mxu0 0.0
    %2348 = vmatmul.mubr.f32.gmra.mxu0 %v2281
    %v2349 = vpop.f32.mrf.mxu0
    %v2350 = vadd.f32 0.0, %v2349
    %v2351 = vpop.f32.mrf.mxu0
    %2352 = vdwg.mxu0
    %v2354 = vrot.slane %v2350, 2
    %v2356 = vadd.f32 %v239, %v2354
    %v2357 = vxor.u32 %v2356, 2147483648
    %v2358 = vmul.f32 %v2357, 1.442695
    %v2359 = vpow.pop %v2358
    %v2360 = vadd.f32 %v2359, 1.0
    %v2361 = vrcp.pop %v2360
    %v2362 = vmul.f32 1.0, %v2361
    %v2363 = vtanh.pop %v2356
    %v2365 = vrot.slane %v2084, 6
    %v2367 = vmul.f32 %v2362, %v2365
    %2369 = vrot.lane.b32.xlu0 %v2363, 64
    %v2370 = vpop.permute.xlu0 %2369
    %v2372 = vmul.f32 %v2362, %v2370
    %2374 = vrot.lane.b32.xlu0 %v2372, 32
    %v2375 = vpop.permute.xlu0 %2374
    %v2377 = vadd.f32 %v2367, %v2375
    %v2378 = vtanh.pop %v2377
    %2380 = vrot.lane.b32.xlu0 %v2378, 64
    %v2381 = vpop.permute.xlu0 %2380
    %v2383 = vmul.f32 %v2362, %v2381
    %v2384 = vrot.slane %v2196, 2
    %2385 = vrot.lane.b32.xlu0 %v2384, 32
    %v2386 = vpop.permute.xlu0 %2385
    %v2387 = vsel %vm159, %v2386, 0
    %2389 = vmatprep.subr.mxu0 0.0
    %2390 = vmatpush1.msra.mxu0 0.0
    %2391 = vmatprep.subr.mxu0 0.0
    %2392 = vmatpush1.msra.mxu0 0.0
    %2393 = vmatprep.subr.mxu0 0.0
    %2394 = vmatpush1.msra.mxu0 0.0
    %2395 = vmatprep.subr.mxu0 0.0
    %2396 = vmatpush1.msra.mxu0 0.0
    %2397 = vmatprep.subr.mxu0 0.0
    %2398 = vmatpush1.msra.mxu0 0.0
    %2399 = vmatprep.subr.mxu0 0.0
    %2400 = vmatpush1.msra.mxu0 0.0
    %2401 = vmatprep.subr.mxu0 0.0
    %2402 = vmatpush1.msra.mxu0 0.0
    %2403 = vmatprep.subr.mxu0 0.0
    %2404 = vmatpush1.msra.mxu0 0.0
    %2405 = vmatprep.subr.mxu0 0.0
    %2406 = vmatpush1.msra.mxu0 0.0
    %2407 = vmatprep.subr.mxu0 0.0
    %2408 = vmatpush1.msra.mxu0 0.0
    %2409 = vmatprep.subr.mxu0 0.0
    %2410 = vmatpush1.msra.mxu0 0.0
    %2411 = vmatprep.subr.mxu0 0.0
    %2412 = vmatpush1.msra.mxu0 0.0
    %2413 = vmatprep.subr.mxu0 0.0
    %2414 = vmatpush1.msra.mxu0 %v250
    %2415 = vmatprep.subr.mxu0 0.0
    %2416 = vmatpush1.msra.mxu0 %v249
    %2417 = vmatprep.subr.mxu0 0.0
    %2418 = vmatpush1.msra.mxu0 %v248
    %2419 = vmatprep.subr.mxu0 0.0
    %2420 = vmatpush1.msra.mxu0 %v247
    %2421 = vmatprep.subr.mxu0 0.0
    %2422 = vmatpush2.msra.mxu0 0.0
    %2423 = vmatprep.subr.mxu0 0.0
    %2424 = vmatpush2.msra.mxu0 0.0
    %2425 = vmatprep.subr.mxu0 0.0
    %2426 = vmatpush2.msra.mxu0 0.0
    %2427 = vmatprep.subr.mxu0 0.0
    %2428 = vmatpush2.msra.mxu0 0.0
    %2429 = vmatprep.subr.mxu0 0.0
    %2430 = vmatpush2.msra.mxu0 0.0
    %2431 = vmatprep.subr.mxu0 0.0
    %2432 = vmatpush2.msra.mxu0 0.0
    %2433 = vmatprep.subr.mxu0 0.0
    %2434 = vmatpush2.msra.mxu0 0.0
    %2435 = vmatprep.subr.mxu0 0.0
    %2436 = vmatpush2.msra.mxu0 0.0
    %2437 = vmatprep.subr.mxu0 0.0
    %2438 = vmatpush2.msra.mxu0 0.0
    %2439 = vmatprep.subr.mxu0 0.0
    %2440 = vmatpush2.msra.mxu0 0.0
    %2441 = vmatprep.subr.mxu0 0.0
    %2442 = vmatpush2.msra.mxu0 0.0
    %2443 = vmatprep.subr.mxu0 0.0
    %2444 = vmatpush2.msra.mxu0 0.0
    %2445 = vmatprep.subr.mxu0 0.0
    %2446 = vmatpush2.msra.mxu0 0.0
    %2447 = vmatprep.subr.mxu0 0.0
    %2448 = vmatpush2.msra.mxu0 0.0
    %2449 = vmatprep.subr.mxu0 0.0
    %2450 = vmatpush2.msra.mxu0 0.0
    %2451 = vmatprep.subr.mxu0 0.0
    %2452 = vmatpush2.msra.mxu0 0.0
    %2453 = vmatprep.mubr.f32.mxu0 0.0
    %2454 = vmatmul.mubr.f32.gmra.mxu0 %v2387
    %v2455 = vpop.f32.mrf.mxu0
    %v2456 = vadd.f32 0.0, %v2455
    %v2457 = vpop.f32.mrf.mxu0
    %2458 = vdwg.mxu0
    %v2459 = vadd.f32 %v235, %v2456
    %v2460 = vxor.u32 %v2459, 2147483648
    %v2461 = vmul.f32 %v2460, 1.442695
    %v2462 = vpow.pop %v2461
    %v2463 = vadd.f32 %v2462, 1.0
    %v2464 = vrcp.pop %v2463
    %v2465 = vmul.f32 1.0, %v2464
    %v2466 = vtanh.pop %v2459
    %v2468 = vrot.slane %v2190, 2
    %v2470 = vmul.f32 %v2465, %v2468
    %2472 = vrot.lane.b32.xlu0 %v2466, 64
    %v2473 = vpop.permute.xlu0 %2472
    %v2475 = vmul.f32 %v2465, %v2473
    %2477 = vrot.lane.b32.xlu0 %v2475, 32
    %v2478 = vpop.permute.xlu0 %2477
    %v2480 = vadd.f32 %v2470, %v2478
    %v2481 = vtanh.pop %v2480
    %2483 = vrot.lane.b32.xlu0 %v2481, 64
    %v2484 = vpop.permute.xlu0 %2483
    %v2486 = vmul.f32 %v2465, %v2484
    %v2488 = vcombine.high %v2383, %v2383
    %v2490 = vunpack.c.l.s4 1966171168
    %v2491 = vunpack.c.0.s8 %v2490
    %v2492 = vlaneseq
    %v2493 = vshrl.u32 %v2492, 7
    %v2494 = vsub.s32 %v2491, %v2493
    %v2495 = vrot.slane %v2488, %v2494
    %v2496 = vcombine.high %v2495, %v2495
    %v2498 = vunpack.c.l.s4 1966171168
    %v2499 = vunpack.c.0.s8 %v2498
    %v2500 = vlaneseq
    %v2501 = vshrl.u32 %v2500, 7
    %v2502 = vsub.s32 %v2499, %v2501
    %v2503 = vrot.slane %v2495, %v2502
    %v2505 = vunpack.c.l.s4 1966171168
    %v2506 = vunpack.c.0.s8 %v2505
    %v2507 = vlaneseq
    %v2508 = vshrl.u32 %v2507, 7
    %v2509 = vsub.s32 %v2506, %v2508
    %v2510 = vrot.slane %v2496, %v2509
    %v2511 = vcombine.high %v2503, %v2503
    %v2512 = vcombine.high %v2510, %v2510
    %v2513 = vlaneseq
    %v2514 = vshrl.u32 %v2513, 7
    %v2515 = vsub.s32 0, %v2514
    %v2516 = vrot.slane %v2511, %v2515
    %v2517 = vlaneseq
    %v2518 = vshrl.u32 %v2517, 7
    %v2519 = vsub.s32 0, %v2518
    %v2520 = vrot.slane %v2512, %v2519
    %2521 = vrot.lane.b32.xlu0 %v2516, 32
    %v2522 = vpop.permute.xlu0 %2521
    %2523 = vrot.lane.b32.xlu0 %v2520, 32
    %v2524 = vpop.permute.xlu0 %2523
    %2527 = vst.msk [vmem:[#allocation2 + $0x7] sm:$0x1] %vm484, %v2522
    %2528 = vst.msk [vmem:[#allocation2 + $0xf] sm:$0x1] %vm484, %v2524
    %v2531 = vunpack.c.l.s4 1966171168
    %v2532 = vunpack.c.0.s8 %v2531
    %v2533 = vlaneseq
    %v2534 = vshrl.u32 %v2533, 7
    %v2535 = vsub.s32 %v2532, %v2534
    %v2536 = vrot.slane %v2486, %v2535
    %v2537 = vcombine.high %v2536, %v2536
    %v2539 = vunpack.c.l.s4 1966171168
    %v2540 = vunpack.c.0.s8 %v2539
    %v2541 = vlaneseq
    %v2542 = vshrl.u32 %v2541, 7
    %v2543 = vsub.s32 %v2540, %v2542
    %v2544 = vrot.slane %v2536, %v2543
    %v2546 = vunpack.c.l.s4 1966171168
    %v2547 = vunpack.c.0.s8 %v2546
    %v2548 = vlaneseq
    %v2549 = vshrl.u32 %v2548, 7
    %v2550 = vsub.s32 %v2547, %v2549
    %v2551 = vrot.slane %v2537, %v2550
    %v2552 = vlaneseq
    %v2553 = vshrl.u32 %v2552, 7
    %v2554 = vsub.s32 0, %v2553
    %v2555 = vrot.slane %v2544, %v2554
    %v2556 = vlaneseq
    %v2557 = vshrl.u32 %v2556, 7
    %v2558 = vsub.s32 0, %v2557
    %v2559 = vrot.slane %v2551, %v2558
    %2560 = vrot.lane.b32.xlu0 %v2555, 32
    %v2561 = vpop.permute.xlu0 %2560
    %2562 = vrot.lane.b32.xlu0 %v2559, 32
    %v2563 = vpop.permute.xlu0 %2562
    %2566 = vst.msk [vmem:[#allocation3] sm:$0x1] %vm484, %v2561
    %2567 = vst.msk [vmem:[#allocation3 + $0x8] sm:$0x1] %vm484, %v2563
    %v2568 = vld [vmem:[#allocation2] sm:$0xff]
    %v2569 = vld [vmem:[#allocation2 + $0x8] sm:$0xff]
    %v2570 = vld [vmem:[#allocation3] sm:$0xff]
    %v2571 = vld [vmem:[#allocation3 + $0x8] sm:$0xff]
    %v2572 = vmul.f32 %v2568, %v2522
    %v2573 = vmul.f32 %v2569, %v2524
    %v2574 = vsel %vm159, %v2572, 0.0
    %2575 = vadd.xlane.f32.xlu0 %v2574
    %v2576 = vpop.xlane.xlu0 %2575
    %v2577 = vsel %vm159, %v2573, 0.0
    %2578 = vadd.xlane.f32.xlu0 %v2577
    %v2579 = vpop.xlane.xlu0 %2578
    %v2580 = vmul.f32 %v2570, %v2561
    %v2581 = vmul.f32 %v2571, %v2563
    %v2582 = vsel %vm159, %v2580, 0.0
    %2583 = vadd.xlane.f32.xlu0 %v2582
    %v2584 = vpop.xlane.xlu0 %2583
    %v2585 = vsel %vm159, %v2581, 0.0
    %2586 = vadd.xlane.f32.xlu0 %v2585
    %v2587 = vpop.xlane.xlu0 %2586
    %v2588 = vadd.f32 %v2576, %v2584
    %v2589 = vadd.f32 %v2579, %v2587
    %v2592 = vlaneseq
    %v2593 = vshrl.u32 %v2592, 7
    %v2594 = vsub.s32 %v33, %v2593
    %v2595 = vrot.slane %v2588, %v2594
    %v2596 = vlaneseq
    %v2597 = vshrl.u32 %v2596, 7
    %v2598 = vsub.s32 %v33, %v2597
    %v2599 = vrot.slane %v2589, %v2598
    %vm2600 = vcmask 1041409
    %v2601 = vsel %vm2600, %v2599, %v2595
    %vm2603 = vcmask 58368
    %v2604 = vsel %vm2603, %v2601, -inf
    %2605 = vmax.xlane.f32.xlu0 %v2604
    %v2606 = vpop.xlane.xlu0 %2605
    %v2608 = vlaneseq
    %v2609 = vshrl.u32 %v2608, 7
    %v2610 = vsub.s32 0, %v2609
    %v2611 = vrot.slane %v2606, %v2610
    %v2612 = vlaneseq
    %v2613 = vshrl.u32 %v2612, 7
    %v2614 = vsub.s32 1, %v2613
    %v2615 = vrot.slane %v2606, %v2614
    %v2618 = vsub.f32 %v2588, %v2611
    %v2619 = vsub.f32 %v2589, %v2615
    %v2620 = vmul.f32 %v2618, 1.442695
    %v2621 = vpow.pop %v2620
    %v2622 = vmul.f32 %v2619, 1.442695
    %v2623 = vpow.pop %v2622
    %2626 = vset.pattern.permute.xlu0 0
    %2627 = vperm.xlu0 %2626, %v2621
    %v2628 = vpop.permute.xlu0 %2627
    %2629 = vset.pattern.permute.xlu0 0
    %2630 = vperm.xlu0 %2629, %v2623
    %v2631 = vpop.permute.xlu0 %2630
    %v2632 = vlaneseq
    %v2633 = vshrl.u32 %v2632, 7
    %v2634 = vsub.s32 %v33, %v2633
    %v2635 = vrot.slane %v2628, %v2634
    %v2636 = vlaneseq
    %v2637 = vshrl.u32 %v2636, 7
    %v2638 = vsub.s32 %v33, %v2637
    %v2639 = vrot.slane %v2631, %v2638
    %v2640 = vsel %vm2600, %v2639, %v2635
    %v2642 = vsel %vm2603, %v2640, 0.0
    %2643 = vadd.xlane.f32.xlu0 %v2642
    %v2644 = vpop.xlane.xlu0 %2643
    %v2645 = vrcp.pop %v2644
    %v2647 = vlaneseq
    %v2648 = vshrl.u32 %v2647, 7
    %v2649 = vsub.s32 0, %v2648
    %v2650 = vrot.slane %v2645, %v2649
    %v2651 = vlaneseq
    %v2652 = vshrl.u32 %v2651, 7
    %v2653 = vsub.s32 1, %v2652
    %v2654 = vrot.slane %v2645, %v2653
    %v2657 = vmul.f32 %v2621, %v2650
    %v2658 = vmul.f32 %v2623, %v2654
    %2660 = vset.pattern.permute.xlu0 0
    %2661 = vperm.xlu0 %2660, %v2657
    %v2662 = vpop.permute.xlu0 %2661
    %2665 = vset.pattern.permute.xlu0 0
    %2666 = vperm.xlu0 %2665, %v2658
    %v2667 = vpop.permute.xlu0 %2666
    %v2669 = vmul.f32 %v2568, %v2662
    %v2670 = vmul.f32 %v2569, %v2667
    %v2671 = vsel %vm159, %v2669, 0.0
    %v2672 = vrot.slane %v2671, 4
    %v2673 = vadd.f32 %v2671, %v2672
    %v2674 = vrot.slane %v2673, 2
    %v2675 = vadd.f32 %v2673, %v2674
    %v2676 = vrot.slane %v2675, 1
    %v2677 = vadd.f32 %v2675, %v2676
    %v2678 = vsel %vm159, %v2670, 0.0
    %v2679 = vrot.slane %v2678, 4
    %v2680 = vadd.f32 %v2678, %v2679
    %v2681 = vrot.slane %v2680, 2
    %v2682 = vadd.f32 %v2680, %v2681
    %v2683 = vrot.slane %v2682, 1
    %v2684 = vadd.f32 %v2682, %v2683
    %v2685 = vmul.f32 %v2570, %v2662
    %v2686 = vmul.f32 %v2571, %v2667
    %v2687 = vsel %vm159, %v2685, 0.0
    %v2688 = vrot.slane %v2687, 4
    %v2689 = vadd.f32 %v2687, %v2688
    %v2690 = vrot.slane %v2689, 2
    %v2691 = vadd.f32 %v2689, %v2690
    %v2692 = vrot.slane %v2691, 1
    %v2693 = vadd.f32 %v2691, %v2692
    %v2694 = vsel %vm159, %v2686, 0.0
    %v2695 = vrot.slane %v2694, 4
    %v2696 = vadd.f32 %v2694, %v2695
    %v2697 = vrot.slane %v2696, 2
    %v2698 = vadd.f32 %v2696, %v2697
    %v2699 = vrot.slane %v2698, 1
    %v2700 = vadd.f32 %v2698, %v2699
    %v2703 = vsel %vm2600, %v2684, %v2677
    %v2707 = vsel %vm2600, %v2700, %v2693
    %2708 = vrot.lane.b32.xlu0 %v2707, 32
    %v2709 = vpop.permute.xlu0 %2708
    %v2711 = vsel %vm159, %v2703, %v2709
    %v2712 = vld [vmem:[%s6] sm:$0xff]
    %v2713 = vld [vmem:[%s6 + $0x8] sm:$0xff]
    %v2714 = vld [vmem:[%s6 + $0x10] sm:$0xff]
    %v2715 = vld [vmem:[%s6 + $0x18] sm:$0xff]
    %v2716 = vld [vmem:[%s6 + $0x20] sm:$0xff]
    %v2717 = vld [vmem:[%s6 + $0x28] sm:$0xff]
    %v2718 = vld [vmem:[%s6 + $0x30] sm:$0xff]
    %v2719 = vld [vmem:[%s6 + $0x38] sm:$0xff]
    %v2720 = vld [vmem:[%s7] sm:$0x1]
    %v2722 = vlaneseq
    %v2723 = vshrl.u32 %v2722, 7
    %v2724 = vsub.s32 0, %v2723
    %v2725 = vrot.slane %v2720, %v2724
    %vm2727 = vcmask 523264
    %v2729 = vsel %vm2727, %v2711, 0
    %2731 = vmatprep.subr.mxu0 0.0
    %2732 = vmatpush1.msra.mxu0 0.0
    %2733 = vmatprep.subr.mxu0 0.0
    %2734 = vmatpush1.msra.mxu0 0.0
    %2735 = vmatprep.subr.mxu0 0.0
    %2736 = vmatpush1.msra.mxu0 0.0
    %2737 = vmatprep.subr.mxu0 0.0
    %2738 = vmatpush1.msra.mxu0 0.0
    %2739 = vmatprep.subr.mxu0 0.0
    %2740 = vmatpush1.msra.mxu0 0.0
    %2741 = vmatprep.subr.mxu0 0.0
    %2742 = vmatpush1.msra.mxu0 0.0
    %2743 = vmatprep.subr.mxu0 0.0
    %2744 = vmatpush1.msra.mxu0 0.0
    %2745 = vmatprep.subr.mxu0 0.0
    %2746 = vmatpush1.msra.mxu0 0.0
    %2747 = vmatprep.subr.mxu0 0.0
    %2748 = vmatpush1.msra.mxu0 %v2719
    %2749 = vmatprep.subr.mxu0 0.0
    %2750 = vmatpush1.msra.mxu0 %v2718
    %2751 = vmatprep.subr.mxu0 0.0
    %2752 = vmatpush1.msra.mxu0 %v2717
    %2753 = vmatprep.subr.mxu0 0.0
    %2754 = vmatpush1.msra.mxu0 %v2716
    %2755 = vmatprep.subr.mxu0 0.0
    %2756 = vmatpush1.msra.mxu0 %v2715
    %2757 = vmatprep.subr.mxu0 0.0
    %2758 = vmatpush1.msra.mxu0 %v2714
    %2759 = vmatprep.subr.mxu0 0.0
    %2760 = vmatpush1.msra.mxu0 %v2713
    %2761 = vmatprep.subr.mxu0 0.0
    %2762 = vmatpush1.msra.mxu0 %v2712
    %2763 = vmatprep.subr.mxu0 0.0
    %2764 = vmatpush2.msra.mxu0 0.0
    %2765 = vmatprep.subr.mxu0 0.0
    %2766 = vmatpush2.msra.mxu0 0.0
    %2767 = vmatprep.subr.mxu0 0.0
    %2768 = vmatpush2.msra.mxu0 0.0
    %2769 = vmatprep.subr.mxu0 0.0
    %2770 = vmatpush2.msra.mxu0 0.0
    %2771 = vmatprep.subr.mxu0 0.0
    %2772 = vmatpush2.msra.mxu0 0.0
    %2773 = vmatprep.subr.mxu0 0.0
    %2774 = vmatpush2.msra.mxu0 0.0
    %2775 = vmatprep.subr.mxu0 0.0
    %2776 = vmatpush2.msra.mxu0 0.0
    %2777 = vmatprep.subr.mxu0 0.0
    %2778 = vmatpush2.msra.mxu0 0.0
    %2779 = vmatprep.subr.mxu0 0.0
    %2780 = vmatpush2.msra.mxu0 0.0
    %2781 = vmatprep.subr.mxu0 0.0
    %2782 = vmatpush2.msra.mxu0 0.0
    %2783 = vmatprep.subr.mxu0 0.0
    %2784 = vmatpush2.msra.mxu0 0.0
    %2785 = vmatprep.subr.mxu0 0.0
    %2786 = vmatpush2.msra.mxu0 0.0
    %2787 = vmatprep.subr.mxu0 0.0
    %2788 = vmatpush2.msra.mxu0 0.0
    %2789 = vmatprep.subr.mxu0 0.0
    %2790 = vmatpush2.msra.mxu0 0.0
    %2791 = vmatprep.subr.mxu0 0.0
    %2792 = vmatpush2.msra.mxu0 0.0
    %2793 = vmatprep.subr.mxu0 0.0
    %2794 = vmatpush2.msra.mxu0 0.0
    %2795 = vmatprep.mubr.f32.mxu0 0.0
    %2796 = vmatmul.mubr.f32.gmra.mxu0 %v2729
    %v2797 = vpop.f32.mrf.mxu0
    %v2798 = vadd.f32 %v2725, %v2797
    %v2799 = vpop.f32.mrf.mxu0
    %2800 = vdwg.mxu0
    %vm2801 = vcmask 50176
    %2802 = vst.msk [vmem:[#allocation4] sm:$0x3] %vm2801, %v2798
    // Predicated region
    $region34: #{tpu_custom_call.1} parent=1 // pred_check
      _
    $region35: #{tpu_custom_call.1} parent=1 // pred_check_branch
      %2804 = sbr.rel (0) target = $region37
    $region36: #{tpu_custom_call.1} parent=1 // pred_region
      %s2806 = ssub.s32 32, 32
      %2807 = vsyncadd [#allocation5], %s2806
      %s2809 = sshll.u32 [#allocation4], 4
      %s2810 = int_to_ptr.vmem [resolvable:$true] %s2809
      %2812 = dma.vmem_to_hbm [thread:$0]  %s2810, 32, %s8, [#allocation5]
    $region37: #{tpu_custom_call.1} parent=1 // pred_fallthru
      _
    // Predicated region
    $region38: #{tpu_custom_call.1} parent=1 // pred_check
      _
    $region39: #{tpu_custom_call.1} parent=1 // pred_check_branch
      %2814 = sbr.rel (0) target = $region41
    $region40: #{tpu_custom_call.1} parent=1 // pred_region
      %2815 = dma.done [#allocation5], 32
    $region41: #{tpu_custom_call.1} parent=1 // pred_fallthru
      _
    %2816 = vsyncpa [#allocation5], 1

</llo_original>
